<compile_context>
chip_gen: v6e
topology: v6e:2x2x1
jax: 0.10.0
libtpu: 0.0.40
codegen_flags: <defaults>
</compile_context>

<pallas_src>
import functools

import jax
import jax.numpy as jnp
import numpy as np
from jax import lax
from jax.experimental import pallas as pl
from jax.experimental.pallas import tpu as pltpu


# ----------------------------------------------------------------------------
# Fused Pallas kernel: whole encoder stack, one batch tile per grid entry,
# layers iterated on the inner ("arbitrary") grid axis with activations
# resident in VMEM scratch.
# ----------------------------------------------------------------------------
def _fused_encoder_kernel(
    x_ref,
    wqkv_ref, bqkv_ref,
    wo_ref, bo_ref,
    ln1_g_ref, ln1_b_ref,
    w1_ref, b1_ref, w2_ref, b2_ref,
    ln2_g_ref, ln2_b_ref,
    hid_ref, attn_ref,
    x_scr,
    *, num_heads, batch_tile, eps=1e-5,
):
    l = pl.program_id(1)

    # First layer of this batch tile: load activations into the resident scratch.
    @pl.when(l == 0)
    def _():
        x_scr[...] = x_ref[...]

    x = x_scr[...]                                    # (BT*S, D) float32
    n_rows, D = x.shape
    S = n_rows // batch_tile
    hd = D // num_heads
    scale = 1.0 / float(np.sqrt(hd))

    def layer_norm(z, g, b):
        mu = jnp.mean(z, axis=-1, keepdims=True)
        var = jnp.mean((z - mu) ** 2, axis=-1, keepdims=True)
        return (z - mu) * lax.rsqrt(var + eps) * g + b

    # ---- Self-attention ----------------------------------------------------
    # Fused QKV in-projection: one MXU matmul + one bias add (weights are
    # pre-transposed and lane-concatenated on the host -> y = x @ [WqT|WkT|WvT]).
    qkv = jnp.dot(x, wqkv_ref[0], preferred_element_type=jnp.float32) + bqkv_ref[0]
    q = qkv[:, :D] * scale
    k = qkv[:, D:2 * D]
    v = qkv[:, 2 * D:]

    q3 = q.reshape(batch_tile, S, D)
    k3 = k.reshape(batch_tile, S, D)
    v3 = v.reshape(batch_tile, S, D)

    woT = wo_ref[0]                                   # (D, D), pre-transposed
    attn_acc = jnp.zeros((batch_tile, S, S), jnp.float32)
    attn_out = jnp.zeros((n_rows, D), jnp.float32)
    for h in range(num_heads):                        # static unroll, H is small
        sl = slice(h * hd, (h + 1) * hd)
        qh, kh, vh = q3[:, :, sl], k3[:, :, sl], v3[:, :, sl]
        s_bh = jnp.einsum("bqd,bkd->bqk", qh, kh,
                          preferred_element_type=jnp.float32)      # (BT, S, S)
        s_bh = s_bh - jnp.max(s_bh, axis=-1, keepdims=True)
        e = jnp.exp(s_bh)
        p = e * pl.reciprocal(jnp.sum(e, axis=-1, keepdims=True))   # exact recip
        attn_acc = attn_acc + p
        ctx_h = jnp.einsum("bqk,bkd->bqd", p, vh,
                           preferred_element_type=jnp.float32)      # (BT, S, hd)
        # Fold the output projection per head -> no lane-dim concat of heads.
        attn_out = attn_out + jnp.dot(ctx_h.reshape(n_rows, hd), woT[sl, :],
                                      preferred_element_type=jnp.float32)

    # Head-averaged attention weights (PyTorch MultiheadAttention default).
    attn_ref[0] = attn_acc * (1.0 / num_heads)
    attn_out = attn_out + bo_ref[0]

    # ---- Residual + LayerNorm 1 ---------------------------------------------
    src = layer_norm(x + attn_out, ln1_g_ref[0], ln1_b_ref[0])

    # ---- Feed-forward (ReLU) + residual + LayerNorm 2 ------------------------
    h1 = jnp.dot(src, w1_ref[0], preferred_element_type=jnp.float32) + b1_ref[0]
    h1 = jnp.maximum(h1, 0.0)
    ff = jnp.dot(h1, w2_ref[0], preferred_element_type=jnp.float32) + b2_ref[0]
    y = layer_norm(src + ff, ln2_g_ref[0], ln2_b_ref[0])

    hid_ref[0] = y                                    # per-layer hidden output
    x_scr[...] = y                                    # carry to the next layer


# ----------------------------------------------------------------------------
# Host-side (one-time) parameter prep: stack per-layer params along L,
# pre-transpose every weight so the kernel does x @ W with no in-kernel .T,
# and fuse Wq/Wk/Wv (and their biases) into a single QKV projection.
# ----------------------------------------------------------------------------
def stack_layer_params(layer_params):
    st = lambda name: jnp.stack([p[name] for p in layer_params])
    tr = lambda a: jnp.transpose(a, (0, 2, 1))
    wqT, wkT, wvT = tr(st("wq")), tr(st("wk")), tr(st("wv"))
    return {
        "wqkvT": jnp.concatenate([wqT, wkT, wvT], axis=-1),        # (L, D, 3D)
        "bqkv": jnp.concatenate([st("bq"), st("bk"), st("bv")], axis=-1),
        "woT": tr(st("wo")),
        "w1T": tr(st("w1")), "w2T": tr(st("w2")),
        "bo": st("bo"), "b1": st("b1"), "b2": st("b2"),
        "ln1_g": st("ln1_g"), "ln1_b": st("ln1_b"),
        "ln2_g": st("ln2_g"), "ln2_b": st("ln2_b"),
    }


# ----------------------------------------------------------------------------
# CustomTransformerEncoder.forward  (norm=None, mask=None, padding_mask=None)
# Input `src` follows PyTorch layout (S, B, D).
# Returns (output (S,B,D), hidden (L,S,B,D), attn (L,B,S,S)).
# ----------------------------------------------------------------------------
def custom_transformer_encoder(src_sbd, stacked, num_heads, batch_tile=None):
    S, B, D = src_sbd.shape
    L = stacked["woT"].shape[0]
    F = stacked["w1T"].shape[2]
    if batch_tile is None:
        # One tile = whole batch: max MXU row occupancy, fewest grid steps
        # (v5e/v6e single core).  On v7x pass batch_tile = B // 2 so the
        # "parallel" batch-tile axis feeds both TensorCores.
        batch_tile = B
    assert B % batch_tile == 0
    nb = B // batch_tile
    rows = batch_tile * S

    x = jnp.transpose(src_sbd, (1, 0, 2)).reshape(B * S, D)   # (B*S, D)

    def wspec(d0, d1):   # stacked (L, d0, d1) param, one layer slice per step
        return pl.BlockSpec((1, d0, d1), lambda b, l: (l, 0, 0))

    in_specs = [
        pl.BlockSpec((rows, D), lambda b, l: (b, 0)),          # x (batch tile)
        wspec(D, 3 * D), wspec(1, 3 * D),                      # fused wqkvT / bqkv
        wspec(D, D), wspec(1, D),                              # woT bo
        wspec(1, D), wspec(1, D),                              # ln1 gamma/beta
        wspec(D, F), wspec(1, F),                              # w1T b1
        wspec(F, D), wspec(1, D),                              # w2T b2
        wspec(1, D), wspec(1, D),                              # ln2 gamma/beta
    ]
    out_specs = (
        pl.BlockSpec((1, rows, D), lambda b, l: (l, b, 0)),              # hidden
        pl.BlockSpec((1, batch_tile, S, S), lambda b, l: (l, b, 0, 0)),  # attn
    )

    kernel = functools.partial(_fused_encoder_kernel,
                               num_heads=num_heads, batch_tile=batch_tile)
    hidden, attn = pl.pallas_call(
        kernel,
        grid_spec=pltpu.PrefetchScalarGridSpec(
            num_scalar_prefetch=0,
            grid=(nb, L),                               # (batch tiles, layers)
            in_specs=in_specs,
            out_specs=out_specs,
            scratch_shapes=[pltpu.VMEM((rows, D), jnp.float32)],
        ),
        out_shape=(
            jax.ShapeDtypeStruct((L, B * S, D), jnp.float32),
            jax.ShapeDtypeStruct((L, B, S, S), jnp.float32),
        ),
        compiler_params=pltpu.CompilerParams(
            dimension_semantics=("parallel", "arbitrary")),
    )(
        x,
        stacked["wqkvT"], stacked["bqkv"],
        stacked["woT"], stacked["bo"],
        stacked["ln1_g"], stacked["ln1_b"],
        stacked["w1T"], stacked["b1"], stacked["w2T"], stacked["b2"],
        stacked["ln2_g"], stacked["ln2_b"],
    )

    hidden_sbd = jnp.transpose(hidden.reshape(L, B, S, D), (0, 2, 1, 3))
    output = hidden_sbd[-1]                       # norm=None -> last hidden
    return output, hidden_sbd, attn


# ----------------------------------------------------------------------------
# Pure-JAX reference (mirrors PyTorch eval-mode semantics) for verification.
# ----------------------------------------------------------------------------
def _layer_ref(x, p, num_heads, eps=1e-5):
    B, S, D = x.shape
    hd = D // num_heads
    scale = 1.0 / np.sqrt(hd)
    q = (x @ p["wq"].T + p["bq"]) * scale
    k = x @ p["wk"].T + p["bk"]
    v = x @ p["wv"].T + p["bv"]
    qh = q.reshape(B, S, num_heads, hd).transpose(0, 2, 1, 3)
    kh = k.reshape(B, S, num_heads, hd).transpose(0, 2, 1, 3)
    vh = v.reshape(B, S, num_heads, hd).transpose(0, 2, 1, 3)
    scores = jnp.einsum("bhqd,bhkd->bhqk", qh, kh)
    probs = jax.nn.softmax(scores, axis=-1)
    attn_w = probs.mean(axis=1)                       # (B, S, S)
    ctx = jnp.einsum("bhqk,bhkd->bhqd", probs, vh).transpose(0, 2, 1, 3).reshape(B, S, D)
    attn_out = ctx @ p["wo"].T + p["bo"]
    src = x + attn_out
    mu = src.mean(-1, keepdims=True)
    var = ((src - mu) ** 2).mean(-1, keepdims=True)
    src = (src - mu) / jnp.sqrt(var + eps) * p["ln1_g"] + p["ln1_b"]
    ff = jnp.maximum(src @ p["w1"].T + p["b1"], 0.0) @ p["w2"].T + p["b2"]
    src2 = src + ff
    mu2 = src2.mean(-1, keepdims=True)
    var2 = ((src2 - mu2) ** 2).mean(-1, keepdims=True)
    y = (src2 - mu2) / jnp.sqrt(var2 + eps) * p["ln2_g"] + p["ln2_b"]
    return y, attn_w


def _encoder_ref(src_sbd, layer_params, num_heads):
    x = jnp.transpose(src_sbd, (1, 0, 2))
    hiddens, attns = [], []
    for p in layer_params:
        x, w = _layer_ref(x, p, num_heads)
        hiddens.append(jnp.transpose(x, (1, 0, 2)))
        attns.append(w)
    return jnp.transpose(x, (1, 0, 2)), jnp.stack(hiddens), jnp.stack(attns)


# ----------------------------------------------------------------------------
# Deterministic parameter construction.
# ----------------------------------------------------------------------------
def make_layer_params(key, d_model, dim_ff):
    ks = jax.random.split(key, 8)
    s = 0.05
    return {
        "wq": s * jax.random.normal(ks[0], (d_model, d_model), jnp.float32),
        "wk": s * jax.random.normal(ks[1], (d_model, d_model), jnp.float32),
        "wv": s * jax.random.normal(ks[2], (d_model, d_model), jnp.float32),
        "bq": s * jax.random.normal(ks[3], (1, d_model), jnp.float32),
        "bk": jnp.zeros((1, d_model), jnp.float32),
        "bv": jnp.zeros((1, d_model), jnp.float32),
        "wo": s * jax.random.normal(ks[4], (d_model, d_model), jnp.float32),
        "bo": jnp.zeros((1, d_model), jnp.float32),
        "ln1_g": jnp.ones((1, d_model), jnp.float32),
        "ln1_b": jnp.zeros((1, d_model), jnp.float32),
        "w1": s * jax.random.normal(ks[5], (dim_ff, d_model), jnp.float32),
        "b1": s * jax.random.normal(ks[6], (1, dim_ff), jnp.float32),
        "w2": s * jax.random.normal(ks[7], (d_model, dim_ff), jnp.float32),
        "b2": jnp.zeros((1, d_model), jnp.float32),
        "ln2_g": jnp.ones((1, d_model), jnp.float32),
        "ln2_b": jnp.zeros((1, d_model), jnp.float32),
    }


if __name__ == "__main__":
    SEQ, BATCH, D_MODEL, N_HEAD, DIM_FF, N_LAYERS = 8, 2, 32, 4, 64, 2

    root = jax.random.PRNGKey(0)
    k_in, *k_layers = jax.random.split(root, N_LAYERS + 1)
    src = jax.random.normal(k_in, (SEQ, BATCH, D_MODEL), jnp.float32)  # (S, B, D)
    params = [make_layer_params(k, D_MODEL, DIM_FF) for k in k_layers]
    stacked = stack_layer_params(params)   # one-time stack + transpose + QKV fuse

    # Fully fused call: whole batch in one grid entry (v5e/v6e default).
    out, hidden, attn = custom_transformer_encoder(src, stacked, N_HEAD)
    jax.block_until_ready((out, hidden, attn))

    out_r, hidden_r, attn_r = _encoder_ref(src, params, N_HEAD)
    np.testing.assert_allclose(np.asarray(out), np.asarray(out_r), rtol=1e-4, atol=1e-4)
    np.testing.assert_allclose(np.asarray(hidden), np.asarray(hidden_r), rtol=1e-4, atol=1e-4)
    np.testing.assert_allclose(np.asarray(attn), np.asarray(attn_r), rtol=1e-4, atol=1e-4)

    # v7x-style variant: parallel batch-tile axis (one batch element per core).
    out2, hidden2, attn2 = custom_transformer_encoder(src, stacked, N_HEAD,
                                                      batch_tile=1)
    jax.block_until_ready((out2, hidden2, attn2))
    np.testing.assert_allclose(np.asarray(out2), np.asarray(out_r), rtol=1e-4, atol=1e-4)
    np.testing.assert_allclose(np.asarray(hidden2), np.asarray(hidden_r), rtol=1e-4, atol=1e-4)
    np.testing.assert_allclose(np.asarray(attn2), np.asarray(attn_r), rtol=1e-4, atol=1e-4)

    assert out.shape == (SEQ, BATCH, D_MODEL)
    assert hidden.shape == (N_LAYERS, SEQ, BATCH, D_MODEL)
    assert attn.shape == (N_LAYERS, BATCH, SEQ, SEQ)
    print("KERNEL_OK")
</pallas_src>

<mosaic_0001>
module attributes {stable_mosaic.version = 11 : i64} {
  func.func @_fused_encoder_kernel(%arg0: i32, %arg1: i32, %arg2: memref<16x32xf32, #tpu.memory_space<vmem>>, %arg3: memref<1x32x96xf32, #tpu.memory_space<vmem>>, %arg4: memref<1x1x96xf32, #tpu.memory_space<vmem>>, %arg5: memref<1x32x32xf32, #tpu.memory_space<vmem>>, %arg6: memref<1x1x32xf32, #tpu.memory_space<vmem>>, %arg7: memref<1x1x32xf32, #tpu.memory_space<vmem>>, %arg8: memref<1x1x32xf32, #tpu.memory_space<vmem>>, %arg9: memref<1x32x64xf32, #tpu.memory_space<vmem>>, %arg10: memref<1x1x64xf32, #tpu.memory_space<vmem>>, %arg11: memref<1x64x32xf32, #tpu.memory_space<vmem>>, %arg12: memref<1x1x32xf32, #tpu.memory_space<vmem>>, %arg13: memref<1x1x32xf32, #tpu.memory_space<vmem>>, %arg14: memref<1x1x32xf32, #tpu.memory_space<vmem>>, %arg15: memref<1x16x32xf32, #tpu.memory_space<vmem>>, %arg16: memref<1x2x8x8xf32, #tpu.memory_space<vmem>>, %arg17: memref<16x32xf32, #tpu.memory_space<vmem>>) attributes {dimension_semantics = [#tpu.dimension_semantics<parallel>, #tpu.dimension_semantics<arbitrary>], iteration_bounds = array<i64: 1, 2>, scalar_prefetch = 0 : i64, scratch_operands = 1 : i64, tpu.core_type = #tpu.core_type<tc>, window_params = [{transform_indices = @transform_0, window_bounds = array<i64: 16, 32>}, {transform_indices = @transform_1, window_bounds = array<i64: 1, 32, 96>}, {transform_indices = @transform_2, window_bounds = array<i64: 1, 1, 96>}, {transform_indices = @transform_3, window_bounds = array<i64: 1, 32, 32>}, {transform_indices = @transform_4, window_bounds = array<i64: 1, 1, 32>}, {transform_indices = @transform_5, window_bounds = array<i64: 1, 1, 32>}, {transform_indices = @transform_6, window_bounds = array<i64: 1, 1, 32>}, {transform_indices = @transform_7, window_bounds = array<i64: 1, 32, 64>}, {transform_indices = @transform_8, window_bounds = array<i64: 1, 1, 64>}, {transform_indices = @transform_9, window_bounds = array<i64: 1, 64, 32>}, {transform_indices = @transform_10, window_bounds = array<i64: 1, 1, 32>}, {transform_indices = @transform_11, window_bounds = array<i64: 1, 1, 32>}, {transform_indices = @transform_12, window_bounds = array<i64: 1, 1, 32>}, {transform_indices = @transform_13, window_bounds = array<i64: 1, 16, 32>}, {transform_indices = @transform_14, window_bounds = array<i64: 1, 2, 8, 8>}]} {
    %c0_i32 = arith.constant 0 : i32
    %0 = arith.cmpi eq, %arg1, %c0_i32 : i32
    %1 = arith.extui %0 : i1 to i32
    %c0_i32_0 = arith.constant 0 : i32
    %2 = arith.cmpi ne, %1, %c0_i32_0 : i32
    scf.if %2 {
      %c0_84 = arith.constant 0 : index
      %c0_85 = arith.constant 0 : index
      %186 = vector.load %arg2[%c0_84, %c0_85] : memref<16x32xf32, #tpu.memory_space<vmem>>, vector<16x32xf32>
      %c0_86 = arith.constant 0 : index
      %c0_87 = arith.constant 0 : index
      %187 = vector.load %arg17[%c0_86, %c0_87] : memref<16x32xf32, #tpu.memory_space<vmem>>, vector<16x32xf32>
      tpu.vector_store %arg17[%c0_86, %c0_87], %186 {strides = array<i32>} : memref<16x32xf32, #tpu.memory_space<vmem>>, vector<16x32xf32>,
    } else {
    }
    %c0 = arith.constant 0 : index
    %c0_1 = arith.constant 0 : index
    %3 = vector.load %arg17[%c0, %c0_1] : memref<16x32xf32, #tpu.memory_space<vmem>>, vector<16x32xf32>
    %c0_2 = arith.constant 0 : index
    %c0_3 = arith.constant 0 : index
    %c0_4 = arith.constant 0 : index
    %4 = vector.load %arg3[%c0_2, %c0_3, %c0_4] : memref<1x32x96xf32, #tpu.memory_space<vmem>>, vector<1x32x96xf32>
    %5 = vector.shape_cast %4 : vector<1x32x96xf32> to vector<32x96xf32>
    %cst = arith.constant dense<0.000000e+00> : vector<16x96xf32>
    %6 = tpu.matmul %3, %5, %cst {dimension_numbers = #tpu.dot_dimension_numbers<[1], [0], [0], [1], [0, 0, 1, 1], [], []>} : vector<16x32xf32>, vector<32x96xf32>, vector<16x96xf32> -> vector<16x96xf32>
    %c0_5 = arith.constant 0 : index
    %c0_6 = arith.constant 0 : index
    %c0_7 = arith.constant 0 : index
    %7 = vector.load %arg4[%c0_5, %c0_6, %c0_7] : memref<1x1x96xf32, #tpu.memory_space<vmem>>, vector<1x1x96xf32>
    %8 = vector.shape_cast %7 : vector<1x1x96xf32> to vector<1x96xf32>
    %9 = vector.broadcast %8 : vector<1x96xf32> to vector<16x96xf32>
    %10 = arith.addf %6, %9 : vector<16x96xf32>
    %11 = vector.extract_strided_slice %10 {offsets = [0, 0], sizes = [16, 32], strides = [1, 1]} : vector<16x96xf32> to vector<16x32xf32>
    %cst_8 = arith.constant 0.353553385 : f32
    %12 = vector.broadcast %cst_8 : f32 to vector<16x32xf32>
    %13 = arith.mulf %11, %12 : vector<16x32xf32>
    %14 = vector.extract_strided_slice %10 {offsets = [0, 32], sizes = [16, 32], strides = [1, 1]} : vector<16x96xf32> to vector<16x32xf32>
    %15 = vector.extract_strided_slice %10 {offsets = [0, 64], sizes = [16, 32], strides = [1, 1]} : vector<16x96xf32> to vector<16x32xf32>
    %16 = vector.shape_cast %13 : vector<16x32xf32> to vector<2x8x32xf32>
    %17 = vector.shape_cast %14 : vector<16x32xf32> to vector<2x8x32xf32>
    %18 = vector.shape_cast %15 : vector<16x32xf32> to vector<2x8x32xf32>
    %c0_9 = arith.constant 0 : index
    %c0_10 = arith.constant 0 : index
    %c0_11 = arith.constant 0 : index
    %19 = vector.load %arg5[%c0_9, %c0_10, %c0_11] : memref<1x32x32xf32, #tpu.memory_space<vmem>>, vector<1x32x32xf32>
    %20 = vector.shape_cast %19 : vector<1x32x32xf32> to vector<32x32xf32>
    %cst_12 = arith.constant 0.000000e+00 : f32
    %21 = vector.broadcast %cst_12 : f32 to vector<2x8x8xf32>
    %cst_13 = arith.constant 0.000000e+00 : f32
    %22 = vector.broadcast %cst_13 : f32 to vector<16x32xf32>
    %23 = vector.extract_strided_slice %16 {offsets = [0, 0, 0], sizes = [2, 8, 8], strides = [1, 1, 1]} : vector<2x8x32xf32> to vector<2x8x8xf32>
    %24 = vector.extract_strided_slice %17 {offsets = [0, 0, 0], sizes = [2, 8, 8], strides = [1, 1, 1]} : vector<2x8x32xf32> to vector<2x8x8xf32>
    %25 = vector.extract_strided_slice %18 {offsets = [0, 0, 0], sizes = [2, 8, 8], strides = [1, 1, 1]} : vector<2x8x32xf32> to vector<2x8x8xf32>
    "tpu.trace_start"() <{level = 10 : i32, message = "bqd,bkd->bqk"}> : () -> ()
    %cst_14 = arith.constant dense<0.000000e+00> : vector<2x8x8xf32>
    %26 = tpu.matmul %23, %24, %cst_14 {dimension_numbers = #tpu.dot_dimension_numbers<[2], [2], [1], [1], [0, 0, 0, 1, 1, 1], [0], [0]>} : vector<2x8x8xf32>, vector<2x8x8xf32>, vector<2x8x8xf32> -> vector<2x8x8xf32>
    "tpu.trace_stop"() : () -> ()
    %cst_15 = arith.constant dense<0xFF800000> : vector<2x8xf32>
    %27 = vector.multi_reduction <maximumf>, %26, %cst_15 [2] : vector<2x8x8xf32> to vector<2x8xf32>
    %28 = vector.shape_cast %27 : vector<2x8xf32> to vector<2x8x1xf32>
    %29 = vector.broadcast %28 : vector<2x8x1xf32> to vector<2x8x8xf32>
    %30 = arith.subf %26, %29 : vector<2x8x8xf32>
    %31 = math.exp %30 : vector<2x8x8xf32>
    %cst_16 = arith.constant dense<0.000000e+00> : vector<2x8xf32>
    %32 = vector.multi_reduction <add>, %31, %cst_16 [2] : vector<2x8x8xf32> to vector<2x8xf32>
    %33 = vector.shape_cast %32 : vector<2x8xf32> to vector<2x8x1xf32>
    %34 = tpu.reciprocal %33 : vector<2x8x1xf32> -> vector<2x8x1xf32>
    %35 = vector.broadcast %34 : vector<2x8x1xf32> to vector<2x8x8xf32>
    %36 = arith.mulf %31, %35 : vector<2x8x8xf32>
    %37 = arith.addf %21, %36 : vector<2x8x8xf32>
    "tpu.trace_start"() <{level = 10 : i32, message = "bqk,bkd->bqd"}> : () -> ()
    %cst_17 = arith.constant dense<0.000000e+00> : vector<2x8x8xf32>
    %38 = tpu.matmul %36, %25, %cst_17 {dimension_numbers = #tpu.dot_dimension_numbers<[2], [1], [1], [2], [0, 0, 0, 1, 1, 2], [0], [0]>} : vector<2x8x8xf32>, vector<2x8x8xf32>, vector<2x8x8xf32> -> vector<2x8x8xf32>
    "tpu.trace_stop"() : () -> ()
    %39 = vector.shape_cast %38 : vector<2x8x8xf32> to vector<16x8xf32>
    %40 = vector.extract_strided_slice %20 {offsets = [0, 0], sizes = [8, 32], strides = [1, 1]} : vector<32x32xf32> to vector<8x32xf32>
    %cst_18 = arith.constant dense<0.000000e+00> : vector<16x32xf32>
    %41 = tpu.matmul %39, %40, %cst_18 {dimension_numbers = #tpu.dot_dimension_numbers<[1], [0], [0], [1], [0, 0, 1, 1], [], []>} : vector<16x8xf32>, vector<8x32xf32>, vector<16x32xf32> -> vector<16x32xf32>
    %42 = arith.addf %22, %41 : vector<16x32xf32>
    %43 = vector.extract_strided_slice %16 {offsets = [0, 0, 8], sizes = [2, 8, 8], strides = [1, 1, 1]} : vector<2x8x32xf32> to vector<2x8x8xf32>
    %44 = vector.extract_strided_slice %17 {offsets = [0, 0, 8], sizes = [2, 8, 8], strides = [1, 1, 1]} : vector<2x8x32xf32> to vector<2x8x8xf32>
    %45 = vector.extract_strided_slice %18 {offsets = [0, 0, 8], sizes = [2, 8, 8], strides = [1, 1, 1]} : vector<2x8x32xf32> to vector<2x8x8xf32>
    "tpu.trace_start"() <{level = 10 : i32, message = "bqd,bkd->bqk"}> : () -> ()
    %cst_19 = arith.constant dense<0.000000e+00> : vector<2x8x8xf32>
    %46 = tpu.matmul %43, %44, %cst_19 {dimension_numbers = #tpu.dot_dimension_numbers<[2], [2], [1], [1], [0, 0, 0, 1, 1, 1], [0], [0]>} : vector<2x8x8xf32>, vector<2x8x8xf32>, vector<2x8x8xf32> -> vector<2x8x8xf32>
    "tpu.trace_stop"() : () -> ()
    %cst_20 = arith.constant dense<0xFF800000> : vector<2x8xf32>
    %47 = vector.multi_reduction <maximumf>, %46, %cst_20 [2] : vector<2x8x8xf32> to vector<2x8xf32>
    %48 = vector.shape_cast %47 : vector<2x8xf32> to vector<2x8x1xf32>
    %49 = vector.broadcast %48 : vector<2x8x1xf32> to vector<2x8x8xf32>
    %50 = arith.subf %46, %49 : vector<2x8x8xf32>
    %51 = math.exp %50 : vector<2x8x8xf32>
    %cst_21 = arith.constant dense<0.000000e+00> : vector<2x8xf32>
    %52 = vector.multi_reduction <add>, %51, %cst_21 [2] : vector<2x8x8xf32> to vector<2x8xf32>
    %53 = vector.shape_cast %52 : vector<2x8xf32> to vector<2x8x1xf32>
    %54 = tpu.reciprocal %53 : vector<2x8x1xf32> -> vector<2x8x1xf32>
    %55 = vector.broadcast %54 : vector<2x8x1xf32> to vector<2x8x8xf32>
    %56 = arith.mulf %51, %55 : vector<2x8x8xf32>
    %57 = arith.addf %37, %56 : vector<2x8x8xf32>
    "tpu.trace_start"() <{level = 10 : i32, message = "bqk,bkd->bqd"}> : () -> ()
    %cst_22 = arith.constant dense<0.000000e+00> : vector<2x8x8xf32>
    %58 = tpu.matmul %56, %45, %cst_22 {dimension_numbers = #tpu.dot_dimension_numbers<[2], [1], [1], [2], [0, 0, 0, 1, 1, 2], [0], [0]>} : vector<2x8x8xf32>, vector<2x8x8xf32>, vector<2x8x8xf32> -> vector<2x8x8xf32>
    "tpu.trace_stop"() : () -> ()
    %59 = vector.shape_cast %58 : vector<2x8x8xf32> to vector<16x8xf32>
    %60 = vector.extract_strided_slice %20 {offsets = [8, 0], sizes = [8, 32], strides = [1, 1]} : vector<32x32xf32> to vector<8x32xf32>
    %cst_23 = arith.constant dense<0.000000e+00> : vector<16x32xf32>
    %61 = tpu.matmul %59, %60, %cst_23 {dimension_numbers = #tpu.dot_dimension_numbers<[1], [0], [0], [1], [0, 0, 1, 1], [], []>} : vector<16x8xf32>, vector<8x32xf32>, vector<16x32xf32> -> vector<16x32xf32>
    %62 = arith.addf %42, %61 : vector<16x32xf32>
    %63 = vector.extract_strided_slice %16 {offsets = [0, 0, 16], sizes = [2, 8, 8], strides = [1, 1, 1]} : vector<2x8x32xf32> to vector<2x8x8xf32>
    %64 = vector.extract_strided_slice %17 {offsets = [0, 0, 16], sizes = [2, 8, 8], strides = [1, 1, 1]} : vector<2x8x32xf32> to vector<2x8x8xf32>
    %65 = vector.extract_strided_slice %18 {offsets = [0, 0, 16], sizes = [2, 8, 8], strides = [1, 1, 1]} : vector<2x8x32xf32> to vector<2x8x8xf32>
    "tpu.trace_start"() <{level = 10 : i32, message = "bqd,bkd->bqk"}> : () -> ()
    %cst_24 = arith.constant dense<0.000000e+00> : vector<2x8x8xf32>
    %66 = tpu.matmul %63, %64, %cst_24 {dimension_numbers = #tpu.dot_dimension_numbers<[2], [2], [1], [1], [0, 0, 0, 1, 1, 1], [0], [0]>} : vector<2x8x8xf32>, vector<2x8x8xf32>, vector<2x8x8xf32> -> vector<2x8x8xf32>
    "tpu.trace_stop"() : () -> ()
    %cst_25 = arith.constant dense<0xFF800000> : vector<2x8xf32>
    %67 = vector.multi_reduction <maximumf>, %66, %cst_25 [2] : vector<2x8x8xf32> to vector<2x8xf32>
    %68 = vector.shape_cast %67 : vector<2x8xf32> to vector<2x8x1xf32>
    %69 = vector.broadcast %68 : vector<2x8x1xf32> to vector<2x8x8xf32>
    %70 = arith.subf %66, %69 : vector<2x8x8xf32>
    %71 = math.exp %70 : vector<2x8x8xf32>
    %cst_26 = arith.constant dense<0.000000e+00> : vector<2x8xf32>
    %72 = vector.multi_reduction <add>, %71, %cst_26 [2] : vector<2x8x8xf32> to vector<2x8xf32>
    %73 = vector.shape_cast %72 : vector<2x8xf32> to vector<2x8x1xf32>
    %74 = tpu.reciprocal %73 : vector<2x8x1xf32> -> vector<2x8x1xf32>
    %75 = vector.broadcast %74 : vector<2x8x1xf32> to vector<2x8x8xf32>
    %76 = arith.mulf %71, %75 : vector<2x8x8xf32>
    %77 = arith.addf %57, %76 : vector<2x8x8xf32>
    "tpu.trace_start"() <{level = 10 : i32, message = "bqk,bkd->bqd"}> : () -> ()
    %cst_27 = arith.constant dense<0.000000e+00> : vector<2x8x8xf32>
    %78 = tpu.matmul %76, %65, %cst_27 {dimension_numbers = #tpu.dot_dimension_numbers<[2], [1], [1], [2], [0, 0, 0, 1, 1, 2], [0], [0]>} : vector<2x8x8xf32>, vector<2x8x8xf32>, vector<2x8x8xf32> -> vector<2x8x8xf32>
    "tpu.trace_stop"() : () -> ()
    %79 = vector.shape_cast %78 : vector<2x8x8xf32> to vector<16x8xf32>
    %80 = vector.extract_strided_slice %20 {offsets = [16, 0], sizes = [8, 32], strides = [1, 1]} : vector<32x32xf32> to vector<8x32xf32>
    %cst_28 = arith.constant dense<0.000000e+00> : vector<16x32xf32>
    %81 = tpu.matmul %79, %80, %cst_28 {dimension_numbers = #tpu.dot_dimension_numbers<[1], [0], [0], [1], [0, 0, 1, 1], [], []>} : vector<16x8xf32>, vector<8x32xf32>, vector<16x32xf32> -> vector<16x32xf32>
    %82 = arith.addf %62, %81 : vector<16x32xf32>
    %83 = vector.extract_strided_slice %16 {offsets = [0, 0, 24], sizes = [2, 8, 8], strides = [1, 1, 1]} : vector<2x8x32xf32> to vector<2x8x8xf32>
    %84 = vector.extract_strided_slice %17 {offsets = [0, 0, 24], sizes = [2, 8, 8], strides = [1, 1, 1]} : vector<2x8x32xf32> to vector<2x8x8xf32>
    %85 = vector.extract_strided_slice %18 {offsets = [0, 0, 24], sizes = [2, 8, 8], strides = [1, 1, 1]} : vector<2x8x32xf32> to vector<2x8x8xf32>
    "tpu.trace_start"() <{level = 10 : i32, message = "bqd,bkd->bqk"}> : () -> ()
    %cst_29 = arith.constant dense<0.000000e+00> : vector<2x8x8xf32>
    %86 = tpu.matmul %83, %84, %cst_29 {dimension_numbers = #tpu.dot_dimension_numbers<[2], [2], [1], [1], [0, 0, 0, 1, 1, 1], [0], [0]>} : vector<2x8x8xf32>, vector<2x8x8xf32>, vector<2x8x8xf32> -> vector<2x8x8xf32>
    "tpu.trace_stop"() : () -> ()
    %cst_30 = arith.constant dense<0xFF800000> : vector<2x8xf32>
    %87 = vector.multi_reduction <maximumf>, %86, %cst_30 [2] : vector<2x8x8xf32> to vector<2x8xf32>
    %88 = vector.shape_cast %87 : vector<2x8xf32> to vector<2x8x1xf32>
    %89 = vector.broadcast %88 : vector<2x8x1xf32> to vector<2x8x8xf32>
    %90 = arith.subf %86, %89 : vector<2x8x8xf32>
    %91 = math.exp %90 : vector<2x8x8xf32>
    %cst_31 = arith.constant dense<0.000000e+00> : vector<2x8xf32>
    %92 = vector.multi_reduction <add>, %91, %cst_31 [2] : vector<2x8x8xf32> to vector<2x8xf32>
    %93 = vector.shape_cast %92 : vector<2x8xf32> to vector<2x8x1xf32>
    %94 = tpu.reciprocal %93 : vector<2x8x1xf32> -> vector<2x8x1xf32>
    %95 = vector.broadcast %94 : vector<2x8x1xf32> to vector<2x8x8xf32>
    %96 = arith.mulf %91, %95 : vector<2x8x8xf32>
    %97 = arith.addf %77, %96 : vector<2x8x8xf32>
    "tpu.trace_start"() <{level = 10 : i32, message = "bqk,bkd->bqd"}> : () -> ()
    %cst_32 = arith.constant dense<0.000000e+00> : vector<2x8x8xf32>
    %98 = tpu.matmul %96, %85, %cst_32 {dimension_numbers = #tpu.dot_dimension_numbers<[2], [1], [1], [2], [0, 0, 0, 1, 1, 2], [0], [0]>} : vector<2x8x8xf32>, vector<2x8x8xf32>, vector<2x8x8xf32> -> vector<2x8x8xf32>
    "tpu.trace_stop"() : () -> ()
    %99 = vector.shape_cast %98 : vector<2x8x8xf32> to vector<16x8xf32>
    %100 = vector.extract_strided_slice %20 {offsets = [24, 0], sizes = [8, 32], strides = [1, 1]} : vector<32x32xf32> to vector<8x32xf32>
    %cst_33 = arith.constant dense<0.000000e+00> : vector<16x32xf32>
    %101 = tpu.matmul %99, %100, %cst_33 {dimension_numbers = #tpu.dot_dimension_numbers<[1], [0], [0], [1], [0, 0, 1, 1], [], []>} : vector<16x8xf32>, vector<8x32xf32>, vector<16x32xf32> -> vector<16x32xf32>
    %102 = arith.addf %82, %101 : vector<16x32xf32>
    %cst_34 = arith.constant 2.500000e-01 : f32
    %103 = vector.broadcast %cst_34 : f32 to vector<2x8x8xf32>
    %104 = arith.mulf %97, %103 : vector<2x8x8xf32>
    %c0_35 = arith.constant 0 : index
    %c0_36 = arith.constant 0 : index
    %c0_37 = arith.constant 0 : index
    %c0_38 = arith.constant 0 : index
    %105 = vector.load %arg16[%c0_35, %c0_36, %c0_37, %c0_38] : memref<1x2x8x8xf32, #tpu.memory_space<vmem>>, vector<1x2x8x8xf32>
    %106 = vector.shape_cast %105 : vector<1x2x8x8xf32> to vector<2x8x8xf32>
    %107 = vector.shape_cast %104 : vector<2x8x8xf32> to vector<1x2x8x8xf32>
    tpu.vector_store %arg16[%c0_35, %c0_36, %c0_37, %c0_38], %107 {strides = array<i32>} : memref<1x2x8x8xf32, #tpu.memory_space<vmem>>, vector<1x2x8x8xf32>,
    %c0_39 = arith.constant 0 : index
    %c0_40 = arith.constant 0 : index
    %c0_41 = arith.constant 0 : index
    %108 = vector.load %arg6[%c0_39, %c0_40, %c0_41] : memref<1x1x32xf32, #tpu.memory_space<vmem>>, vector<1x1x32xf32>
    %109 = vector.shape_cast %108 : vector<1x1x32xf32> to vector<1x32xf32>
    %110 = vector.broadcast %109 : vector<1x32xf32> to vector<16x32xf32>
    %111 = arith.addf %102, %110 : vector<16x32xf32>
    %112 = arith.addf %3, %111 : vector<16x32xf32>
    %c0_42 = arith.constant 0 : index
    %c0_43 = arith.constant 0 : index
    %c0_44 = arith.constant 0 : index
    %113 = vector.load %arg7[%c0_42, %c0_43, %c0_44] : memref<1x1x32xf32, #tpu.memory_space<vmem>>, vector<1x1x32xf32>
    %114 = vector.shape_cast %113 : vector<1x1x32xf32> to vector<1x32xf32>
    %c0_45 = arith.constant 0 : index
    %c0_46 = arith.constant 0 : index
    %c0_47 = arith.constant 0 : index
    %115 = vector.load %arg8[%c0_45, %c0_46, %c0_47] : memref<1x1x32xf32, #tpu.memory_space<vmem>>, vector<1x1x32xf32>
    %116 = vector.shape_cast %115 : vector<1x1x32xf32> to vector<1x32xf32>
    %cst_48 = arith.constant dense<0.000000e+00> : vector<16xf32>
    %117 = vector.multi_reduction <add>, %112, %cst_48 [1] : vector<16x32xf32> to vector<16xf32>
    %118 = vector.shape_cast %117 : vector<16xf32> to vector<16x1xf32>
    %cst_49 = arith.constant 3.200000e+01 : f32
    %119 = vector.broadcast %cst_49 : f32 to vector<16x1xf32>
    %120 = arith.divf %118, %119 : vector<16x1xf32>
    %121 = vector.broadcast %120 : vector<16x1xf32> to vector<16x32xf32>
    %122 = arith.subf %112, %121 : vector<16x32xf32>
    %123 = arith.mulf %122, %122 : vector<16x32xf32>
    %cst_50 = arith.constant dense<0.000000e+00> : vector<16xf32>
    %124 = vector.multi_reduction <add>, %123, %cst_50 [1] : vector<16x32xf32> to vector<16xf32>
    %125 = vector.shape_cast %124 : vector<16xf32> to vector<16x1xf32>
    %cst_51 = arith.constant 3.200000e+01 : f32
    %126 = vector.broadcast %cst_51 : f32 to vector<16x1xf32>
    %127 = arith.divf %125, %126 : vector<16x1xf32>
    %128 = vector.broadcast %120 : vector<16x1xf32> to vector<16x32xf32>
    %129 = arith.subf %112, %128 : vector<16x32xf32>
    %cst_52 = arith.constant 9.99999974E-6 : f32
    %130 = vector.broadcast %cst_52 : f32 to vector<16x1xf32>
    %131 = arith.addf %127, %130 : vector<16x1xf32>
    %132 = math.rsqrt %131 : vector<16x1xf32>
    %133 = vector.broadcast %132 : vector<16x1xf32> to vector<16x32xf32>
    %134 = arith.mulf %129, %133 : vector<16x32xf32>
    %135 = vector.broadcast %114 : vector<1x32xf32> to vector<16x32xf32>
    %136 = arith.mulf %134, %135 : vector<16x32xf32>
    %137 = vector.broadcast %116 : vector<1x32xf32> to vector<16x32xf32>
    %138 = arith.addf %136, %137 : vector<16x32xf32>
    %c0_53 = arith.constant 0 : index
    %c0_54 = arith.constant 0 : index
    %c0_55 = arith.constant 0 : index
    %139 = vector.load %arg9[%c0_53, %c0_54, %c0_55] : memref<1x32x64xf32, #tpu.memory_space<vmem>>, vector<1x32x64xf32>
    %140 = vector.shape_cast %139 : vector<1x32x64xf32> to vector<32x64xf32>
    %cst_56 = arith.constant dense<0.000000e+00> : vector<16x64xf32>
    %141 = tpu.matmul %138, %140, %cst_56 {dimension_numbers = #tpu.dot_dimension_numbers<[1], [0], [0], [1], [0, 0, 1, 1], [], []>} : vector<16x32xf32>, vector<32x64xf32>, vector<16x64xf32> -> vector<16x64xf32>
    %c0_57 = arith.constant 0 : index
    %c0_58 = arith.constant 0 : index
    %c0_59 = arith.constant 0 : index
    %142 = vector.load %arg10[%c0_57, %c0_58, %c0_59] : memref<1x1x64xf32, #tpu.memory_space<vmem>>, vector<1x1x64xf32>
    %143 = vector.shape_cast %142 : vector<1x1x64xf32> to vector<1x64xf32>
    %144 = vector.broadcast %143 : vector<1x64xf32> to vector<16x64xf32>
    %145 = arith.addf %141, %144 : vector<16x64xf32>
    %cst_60 = arith.constant 0.000000e+00 : f32
    %146 = vector.broadcast %cst_60 : f32 to vector<16x64xf32>
    %147 = arith.maximumf %145, %146 : vector<16x64xf32>
    %c0_61 = arith.constant 0 : index
    %c0_62 = arith.constant 0 : index
    %c0_63 = arith.constant 0 : index
    %148 = vector.load %arg11[%c0_61, %c0_62, %c0_63] : memref<1x64x32xf32, #tpu.memory_space<vmem>>, vector<1x64x32xf32>
    %149 = vector.shape_cast %148 : vector<1x64x32xf32> to vector<64x32xf32>
    %cst_64 = arith.constant dense<0.000000e+00> : vector<16x32xf32>
    %150 = tpu.matmul %147, %149, %cst_64 {dimension_numbers = #tpu.dot_dimension_numbers<[1], [0], [0], [1], [0, 0, 1, 1], [], []>} : vector<16x64xf32>, vector<64x32xf32>, vector<16x32xf32> -> vector<16x32xf32>
    %c0_65 = arith.constant 0 : index
    %c0_66 = arith.constant 0 : index
    %c0_67 = arith.constant 0 : index
    %151 = vector.load %arg12[%c0_65, %c0_66, %c0_67] : memref<1x1x32xf32, #tpu.memory_space<vmem>>, vector<1x1x32xf32>
    %152 = vector.shape_cast %151 : vector<1x1x32xf32> to vector<1x32xf32>
    %153 = vector.broadcast %152 : vector<1x32xf32> to vector<16x32xf32>
    %154 = arith.addf %150, %153 : vector<16x32xf32>
    %155 = arith.addf %138, %154 : vector<16x32xf32>
    %c0_68 = arith.constant 0 : index
    %c0_69 = arith.constant 0 : index
    %c0_70 = arith.constant 0 : index
    %156 = vector.load %arg13[%c0_68, %c0_69, %c0_70] : memref<1x1x32xf32, #tpu.memory_space<vmem>>, vector<1x1x32xf32>
    %157 = vector.shape_cast %156 : vector<1x1x32xf32> to vector<1x32xf32>
    %c0_71 = arith.constant 0 : index
    %c0_72 = arith.constant 0 : index
    %c0_73 = arith.constant 0 : index
    %158 = vector.load %arg14[%c0_71, %c0_72, %c0_73] : memref<1x1x32xf32, #tpu.memory_space<vmem>>, vector<1x1x32xf32>
    %159 = vector.shape_cast %158 : vector<1x1x32xf32> to vector<1x32xf32>
    %cst_74 = arith.constant dense<0.000000e+00> : vector<16xf32>
    %160 = vector.multi_reduction <add>, %155, %cst_74 [1] : vector<16x32xf32> to vector<16xf32>
    %161 = vector.shape_cast %160 : vector<16xf32> to vector<16x1xf32>
    %cst_75 = arith.constant 3.200000e+01 : f32
    %162 = vector.broadcast %cst_75 : f32 to vector<16x1xf32>
    %163 = arith.divf %161, %162 : vector<16x1xf32>
    %164 = vector.broadcast %163 : vector<16x1xf32> to vector<16x32xf32>
    %165 = arith.subf %155, %164 : vector<16x32xf32>
    %166 = arith.mulf %165, %165 : vector<16x32xf32>
    %cst_76 = arith.constant dense<0.000000e+00> : vector<16xf32>
    %167 = vector.multi_reduction <add>, %166, %cst_76 [1] : vector<16x32xf32> to vector<16xf32>
    %168 = vector.shape_cast %167 : vector<16xf32> to vector<16x1xf32>
    %cst_77 = arith.constant 3.200000e+01 : f32
    %169 = vector.broadcast %cst_77 : f32 to vector<16x1xf32>
    %170 = arith.divf %168, %169 : vector<16x1xf32>
    %171 = vector.broadcast %163 : vector<16x1xf32> to vector<16x32xf32>
    %172 = arith.subf %155, %171 : vector<16x32xf32>
    %cst_78 = arith.constant 9.99999974E-6 : f32
    %173 = vector.broadcast %cst_78 : f32 to vector<16x1xf32>
    %174 = arith.addf %170, %173 : vector<16x1xf32>
    %175 = math.rsqrt %174 : vector<16x1xf32>
    %176 = vector.broadcast %175 : vector<16x1xf32> to vector<16x32xf32>
    %177 = arith.mulf %172, %176 : vector<16x32xf32>
    %178 = vector.broadcast %157 : vector<1x32xf32> to vector<16x32xf32>
    %179 = arith.mulf %177, %178 : vector<16x32xf32>
    %180 = vector.broadcast %159 : vector<1x32xf32> to vector<16x32xf32>
    %181 = arith.addf %179, %180 : vector<16x32xf32>
    %c0_79 = arith.constant 0 : index
    %c0_80 = arith.constant 0 : index
    %c0_81 = arith.constant 0 : index
    %182 = vector.load %arg15[%c0_79, %c0_80, %c0_81] : memref<1x16x32xf32, #tpu.memory_space<vmem>>, vector<1x16x32xf32>
    %183 = vector.shape_cast %182 : vector<1x16x32xf32> to vector<16x32xf32>
    %184 = vector.shape_cast %181 : vector<16x32xf32> to vector<1x16x32xf32>
    tpu.vector_store %arg15[%c0_79, %c0_80, %c0_81], %184 {strides = array<i32>} : memref<1x16x32xf32, #tpu.memory_space<vmem>>, vector<1x16x32xf32>,
    %c0_82 = arith.constant 0 : index
    %c0_83 = arith.constant 0 : index
    %185 = vector.load %arg17[%c0_82, %c0_83] : memref<16x32xf32, #tpu.memory_space<vmem>>, vector<16x32xf32>
    tpu.vector_store %arg17[%c0_82, %c0_83], %181 {strides = array<i32>} : memref<16x32xf32, #tpu.memory_space<vmem>>, vector<16x32xf32>,
    return
  }
  func.func @transform_0(%arg0: i32, %arg1: i32) -> (i32, i32) {
    %c0_i32 = arith.constant 0 : i32
    %c0_i32_0 = arith.constant 0 : i32
    return %arg0, %c0_i32 : i32, i32
  }
  func.func @transform_1(%arg0: i32, %arg1: i32) -> (i32, i32, i32) {
    %c0_i32 = arith.constant 0 : i32
    %c0_i32_0 = arith.constant 0 : i32
    %c0_i32_1 = arith.constant 0 : i32
    return %arg1, %c0_i32, %c0_i32_0 : i32, i32, i32
  }
  func.func @transform_2(%arg0: i32, %arg1: i32) -> (i32, i32, i32) {
    %c0_i32 = arith.constant 0 : i32
    %c0_i32_0 = arith.constant 0 : i32
    %c0_i32_1 = arith.constant 0 : i32
    return %arg1, %c0_i32, %c0_i32_0 : i32, i32, i32
  }
  func.func @transform_3(%arg0: i32, %arg1: i32) -> (i32, i32, i32) {
    %c0_i32 = arith.constant 0 : i32
    %c0_i32_0 = arith.constant 0 : i32
    %c0_i32_1 = arith.constant 0 : i32
    return %arg1, %c0_i32, %c0_i32_0 : i32, i32, i32
  }
  func.func @transform_4(%arg0: i32, %arg1: i32) -> (i32, i32, i32) {
    %c0_i32 = arith.constant 0 : i32
    %c0_i32_0 = arith.constant 0 : i32
    %c0_i32_1 = arith.constant 0 : i32
    return %arg1, %c0_i32, %c0_i32_0 : i32, i32, i32
  }
  func.func @transform_5(%arg0: i32, %arg1: i32) -> (i32, i32, i32) {
    %c0_i32 = arith.constant 0 : i32
    %c0_i32_0 = arith.constant 0 : i32
    %c0_i32_1 = arith.constant 0 : i32
    return %arg1, %c0_i32, %c0_i32_0 : i32, i32, i32
  }
  func.func @transform_6(%arg0: i32, %arg1: i32) -> (i32, i32, i32) {
    %c0_i32 = arith.constant 0 : i32
    %c0_i32_0 = arith.constant 0 : i32
    %c0_i32_1 = arith.constant 0 : i32
    return %arg1, %c0_i32, %c0_i32_0 : i32, i32, i32
  }
  func.func @transform_7(%arg0: i32, %arg1: i32) -> (i32, i32, i32) {
    %c0_i32 = arith.constant 0 : i32
    %c0_i32_0 = arith.constant 0 : i32
    %c0_i32_1 = arith.constant 0 : i32
    return %arg1, %c0_i32, %c0_i32_0 : i32, i32, i32
  }
  func.func @transform_8(%arg0: i32, %arg1: i32) -> (i32, i32, i32) {
    %c0_i32 = arith.constant 0 : i32
    %c0_i32_0 = arith.constant 0 : i32
    %c0_i32_1 = arith.constant 0 : i32
    return %arg1, %c0_i32, %c0_i32_0 : i32, i32, i32
  }
  func.func @transform_9(%arg0: i32, %arg1: i32) -> (i32, i32, i32) {
    %c0_i32 = arith.constant 0 : i32
    %c0_i32_0 = arith.constant 0 : i32
    %c0_i32_1 = arith.constant 0 : i32
    return %arg1, %c0_i32, %c0_i32_0 : i32, i32, i32
  }
  func.func @transform_10(%arg0: i32, %arg1: i32) -> (i32, i32, i32) {
    %c0_i32 = arith.constant 0 : i32
    %c0_i32_0 = arith.constant 0 : i32
    %c0_i32_1 = arith.constant 0 : i32
    return %arg1, %c0_i32, %c0_i32_0 : i32, i32, i32
  }
  func.func @transform_11(%arg0: i32, %arg1: i32) -> (i32, i32, i32) {
    %c0_i32 = arith.constant 0 : i32
    %c0_i32_0 = arith.constant 0 : i32
    %c0_i32_1 = arith.constant 0 : i32
    return %arg1, %c0_i32, %c0_i32_0 : i32, i32, i32
  }
  func.func @transform_12(%arg0: i32, %arg1: i32) -> (i32, i32, i32) {
    %c0_i32 = arith.constant 0 : i32
    %c0_i32_0 = arith.constant 0 : i32
    %c0_i32_1 = arith.constant 0 : i32
    return %arg1, %c0_i32, %c0_i32_0 : i32, i32, i32
  }
  func.func @transform_13(%arg0: i32, %arg1: i32) -> (i32, i32, i32) {
    %c0_i32 = arith.constant 0 : i32
    %c0_i32_0 = arith.constant 0 : i32
    return %arg1, %arg0, %c0_i32 : i32, i32, i32
  }
  func.func @transform_14(%arg0: i32, %arg1: i32) -> (i32, i32, i32, i32) {
    %c0_i32 = arith.constant 0 : i32
    %c0_i32_0 = arith.constant 0 : i32
    %c0_i32_1 = arith.constant 0 : i32
    return %arg1, %arg0, %c0_i32, %c0_i32_0 : i32, i32, i32, i32
  }
}

</mosaic_0001>

<llo_original>
// kernel: tpu_custom_call.1
$region0: #{tpu_custom_call.1}
  #allocation0 [shape = 'u32[]', space=smem, size = 0x4, offset = 0x4, fixed_abs, tag = 'smem constant byte address 0x4 - core index']
  #allocation1 [shape = 'u32[144,128]{1,0:T(1,128)}', space=vmem, size = 0x12000, scoped, tag = 'internal scratch']
  #allocation2 [shape = 'f32[16,32]{1,0:T(8,128)}', space=vmem, size = 0x2000, scoped, tag = 'scratch operand']
  %s0 = inlined_call_operand.hbm [shape: f32[16,32], index: 0, kind: input, shape index: {}]
  %s1 = inlined_call_operand.vmem [shape: f32[2,32,96], index: 1, kind: input, shape index: {}]
  %s2 = inlined_call_operand.vmem [shape: f32[2,1,96], index: 2, kind: input, shape index: {}]
  %s3 = inlined_call_operand.vmem [shape: f32[2,32,32], index: 3, kind: input, shape index: {}]
  %s4 = inlined_call_operand.vmem [shape: f32[2,1,32], index: 4, kind: input, shape index: {}]
  %s5 = inlined_call_operand.vmem [shape: f32[2,1,32], index: 5, kind: input, shape index: {}]
  %s6 = inlined_call_operand.vmem [shape: f32[2,1,32], index: 6, kind: input, shape index: {}]
  %s7 = inlined_call_operand.vmem [shape: f32[2,32,64], index: 7, kind: input, shape index: {}]
  %s8 = inlined_call_operand.vmem [shape: f32[2,1,64], index: 8, kind: input, shape index: {}]
  %s9 = inlined_call_operand.vmem [shape: f32[2,64,32], index: 9, kind: input, shape index: {}]
  %s10 = inlined_call_operand.vmem [shape: f32[2,1,32], index: 10, kind: input, shape index: {}]
  %s11 = inlined_call_operand.vmem [shape: f32[2,1,32], index: 11, kind: input, shape index: {}]
  %s12 = inlined_call_operand.vmem [shape: f32[2,1,32], index: 12, kind: input, shape index: {}]
  %s13 = inlined_call_operand.hbm [shape: f32[2,16,32], index: 13, kind: output, shape index: {0}]
  %s14 = inlined_call_operand.hbm [shape: f32[2,2,8,8], index: 14, kind: output, shape index: {1}]
  %15 = xla_tuple %s13, %s14
  %s16 = sld [smem:[#allocation0]]
  $region101: #{tpu_custom_call.1} parent=0
    _
  %s18 = ssub.s32 1, %s16
  %s19 = scalar_select 0, %s18, %s16
  $region1: #{tpu_custom_call.1} parent=0
    #allocation3 [shape = 'u8[8192]{0}', space=vmem, size = 0x2000, scoped, tag = 'input window, operand 0, single buffered']
    #allocation4 [shape = 's32[2]{0}', space=sflag, size = 0x8, scoped, tag = 'scoped memory for tpu_custom_call.1']
    #allocation5 [shape = 's32[2]{0}', space=sflag, size = 0x8, scoped, tag = 'scoped memory for tpu_custom_call.1']
    #allocation6 [shape = 'u8[16384]{0}', space=vmem, size = 0x4000, scoped, tag = 'output window, operand 0']
    #allocation7 [shape = 'u8[16384]{0}', space=vmem, size = 0x4000, scoped, tag = 'output window, operand 1']
    #allocation8 [shape = 's32[2]{0}', space=sflag, size = 0x8, scoped, tag = 'scoped memory for tpu_custom_call.1']
    %20 = vsyncpa [#allocation4], 0
    %21 = vsyncpa [#allocation5], 0
    %s22 = scalar_lea.sflag [#allocation5], 1
    %23 = vsyncpa %s22, 0
    %24 = vsyncpa [#allocation8], 0
    %s25 = scalar_lea.sflag [#allocation8], 1
    %26 = vsyncpa %s25, 0
    loop: start=0, step=1, limit=4
    $region2: #{tpu_custom_call.1} parent=1 // loop_pre_header
      _
    $region3: #{tpu_custom_call.1} parent=1 // loop_header
      %s28 = sphi 0, %s32
      %p29 = scmp.ge.s32.totalorder %s28, 4
      %s35 = sphi 0, %s47
      %s36 = sphi 0, %s43
      %s37 = sphi 0, %s35
      %s38 = sphi 0, %s36
      %s39 = sphi 0, %s37
      %s40 = sphi 0, %s38
      %s50 = sphi 0, %s52
      %s53 = sphi 0, %s50
      %s54 = sphi 0, %s53
      %s70 = sphi 0, %s54
      %s76 = sphi 0, %s78
      %s79 = sphi 0, %s76
      %s80 = sphi 0, %s79
      %s96 = sphi 0, %s80
      %s102 = sphi 0, %s104
      %s105 = sphi 0, %s102
      %s106 = sphi 0, %s105
      %s122 = sphi 0, %s106
      %s128 = sphi 0, %s130
      %s131 = sphi 0, %s128
      %s132 = sphi 0, %s131
      %s148 = sphi 0, %s132
      %s154 = sphi 0, %s156
      %s157 = sphi 0, %s154
      %s158 = sphi 0, %s157
      %s174 = sphi 0, %s158
      %s180 = sphi 0, %s182
      %s183 = sphi 0, %s180
      %s184 = sphi 0, %s183
      %s200 = sphi 0, %s184
      %s206 = sphi 0, %s208
      %s209 = sphi 0, %s206
      %s210 = sphi 0, %s209
      %s226 = sphi 0, %s210
      %s232 = sphi 0, %s234
      %s235 = sphi 0, %s232
      %s236 = sphi 0, %s235
      %s252 = sphi 0, %s236
      %s258 = sphi 0, %s260
      %s261 = sphi 0, %s258
      %s262 = sphi 0, %s261
      %s278 = sphi 0, %s262
      %s284 = sphi 0, %s286
      %s287 = sphi 0, %s284
      %s288 = sphi 0, %s287
      %s304 = sphi 0, %s288
      %s310 = sphi 0, %s312
      %s313 = sphi 0, %s310
      %s314 = sphi 0, %s313
      %s330 = sphi 0, %s314
      %s336 = sphi 0, %s338
      %s339 = sphi 0, %s336
      %s340 = sphi 0, %s339
      %s356 = sphi 0, %s340
      %s362 = sphi 0, %s364
      %s365 = sphi 0, %s362
      %s366 = sphi 0, %s365
      %s382 = sphi 0, %s366
      %s390 = sphi 0, %s392
      %s393 = sphi 0, %s390
      %s394 = sphi 0, %s393
      %s410 = sphi 0, %s394
      %s418 = sphi 0, %s420
      %s421 = sphi 0, %s418
      %s422 = sphi 0, %s421
      %s438 = sphi 0, %s422
    $region4: #{tpu_custom_call.1} parent=1 // loop_header_branch
      %31 = sbr.rel (%p29) target = $region8
    $region5: #{tpu_custom_call.1} parent=1 // loop_body
      %s33 = ssub.s32 %s28, 1
      %s34 = ssub.s32 %s28, 2
      %s41 = sadd.s32 1, %s36
      %p42 = scmp.ge.s32.totalorder %s41, 2
      %s43 = scalar_select %p42, 0, %s41
      %s44 = sadd.s32 1, %s35
      %s45 = scalar_select %p42, %s44, %s35
      %p46 = scmp.ge.s32.totalorder %s45, 1
      %s47 = scalar_select %p46, 0, %s45
      %s48 = ssub.s32 %s35, %s47
      %p49 = scmp.eq.s32.totalorder %s48, 0
      %s51 = sadd.s32 %s50, 1
      %s52 = scalar_select %p49, %s50, %s51
      %p55 = pneg %p49
      %p56 = scmp.eq.s32.totalorder %s28, 1
      %p57 = por %p55, %p56
      %p58 = scmp.ne.s32.totalorder %s50, %s53
      %p59 = scmp.eq.s32.totalorder %s28, 0
      %p60 = por %p58, %p59
      %p61 = scmp.ne.s32.totalorder %s50, %s53
      %p62 = scmp.eq.s32.totalorder %s33, 1
      %p63 = por %p61, %p62
      %p64 = scmp.ne.s32.totalorder %s53, %s54
      %p65 = scmp.eq.s32.totalorder %s33, 0
      %p66 = por %p64, %p65
      %p67 = scmp.ne.s32.totalorder %s53, %s54
      %p68 = scmp.eq.s32.totalorder %s34, 1
      %p69 = por %p67, %p68
      %p71 = scmp.ne.s32.totalorder %s54, %s70
      %p72 = scmp.eq.s32.totalorder %s34, 0
      %p73 = por %p71, %p72
      %s74 = ssub.s32 %s36, %s43
      %p75 = scmp.eq.s32.totalorder %s74, 0
      %s77 = sadd.s32 %s76, 1
      %s78 = scalar_select %p75, %s76, %s77
      %p81 = pneg %p75
      %p82 = scmp.eq.s32.totalorder %s28, 1
      %p83 = por %p81, %p82
      %p84 = scmp.ne.s32.totalorder %s76, %s79
      %p85 = scmp.eq.s32.totalorder %s28, 0
      %p86 = por %p84, %p85
      %p87 = scmp.ne.s32.totalorder %s76, %s79
      %p88 = scmp.eq.s32.totalorder %s33, 1
      %p89 = por %p87, %p88
      %p90 = scmp.ne.s32.totalorder %s79, %s80
      %p91 = scmp.eq.s32.totalorder %s33, 0
      %p92 = por %p90, %p91
      %p93 = scmp.ne.s32.totalorder %s79, %s80
      %p94 = scmp.eq.s32.totalorder %s34, 1
      %p95 = por %p93, %p94
      %p97 = scmp.ne.s32.totalorder %s80, %s96
      %p98 = scmp.eq.s32.totalorder %s34, 0
      %p99 = por %p97, %p98
      %s100 = ssub.s32 %s36, %s43
      %p101 = scmp.eq.s32.totalorder %s100, 0
      %s103 = sadd.s32 %s102, 1
      %s104 = scalar_select %p101, %s102, %s103
      %p107 = pneg %p101
      %p108 = scmp.eq.s32.totalorder %s28, 1
      %p109 = por %p107, %p108
      %p110 = scmp.ne.s32.totalorder %s102, %s105
      %p111 = scmp.eq.s32.totalorder %s28, 0
      %p112 = por %p110, %p111
      %p113 = scmp.ne.s32.totalorder %s102, %s105
      %p114 = scmp.eq.s32.totalorder %s33, 1
      %p115 = por %p113, %p114
      %p116 = scmp.ne.s32.totalorder %s105, %s106
      %p117 = scmp.eq.s32.totalorder %s33, 0
      %p118 = por %p116, %p117
      %p119 = scmp.ne.s32.totalorder %s105, %s106
      %p120 = scmp.eq.s32.totalorder %s34, 1
      %p121 = por %p119, %p120
      %p123 = scmp.ne.s32.totalorder %s106, %s122
      %p124 = scmp.eq.s32.totalorder %s34, 0
      %p125 = por %p123, %p124
      %s126 = ssub.s32 %s36, %s43
      %p127 = scmp.eq.s32.totalorder %s126, 0
      %s129 = sadd.s32 %s128, 1
      %s130 = scalar_select %p127, %s128, %s129
      %p133 = pneg %p127
      %p134 = scmp.eq.s32.totalorder %s28, 1
      %p135 = por %p133, %p134
      %p136 = scmp.ne.s32.totalorder %s128, %s131
      %p137 = scmp.eq.s32.totalorder %s28, 0
      %p138 = por %p136, %p137
      %p139 = scmp.ne.s32.totalorder %s128, %s131
      %p140 = scmp.eq.s32.totalorder %s33, 1
      %p141 = por %p139, %p140
      %p142 = scmp.ne.s32.totalorder %s131, %s132
      %p143 = scmp.eq.s32.totalorder %s33, 0
      %p144 = por %p142, %p143
      %p145 = scmp.ne.s32.totalorder %s131, %s132
      %p146 = scmp.eq.s32.totalorder %s34, 1
      %p147 = por %p145, %p146
      %p149 = scmp.ne.s32.totalorder %s132, %s148
      %p150 = scmp.eq.s32.totalorder %s34, 0
      %p151 = por %p149, %p150
      %s152 = ssub.s32 %s36, %s43
      %p153 = scmp.eq.s32.totalorder %s152, 0
      %s155 = sadd.s32 %s154, 1
      %s156 = scalar_select %p153, %s154, %s155
      %p159 = pneg %p153
      %p160 = scmp.eq.s32.totalorder %s28, 1
      %p161 = por %p159, %p160
      %p162 = scmp.ne.s32.totalorder %s154, %s157
      %p163 = scmp.eq.s32.totalorder %s28, 0
      %p164 = por %p162, %p163
      %p165 = scmp.ne.s32.totalorder %s154, %s157
      %p166 = scmp.eq.s32.totalorder %s33, 1
      %p167 = por %p165, %p166
      %p168 = scmp.ne.s32.totalorder %s157, %s158
      %p169 = scmp.eq.s32.totalorder %s33, 0
      %p170 = por %p168, %p169
      %p171 = scmp.ne.s32.totalorder %s157, %s158
      %p172 = scmp.eq.s32.totalorder %s34, 1
      %p173 = por %p171, %p172
      %p175 = scmp.ne.s32.totalorder %s158, %s174
      %p176 = scmp.eq.s32.totalorder %s34, 0
      %p177 = por %p175, %p176
      %s178 = ssub.s32 %s36, %s43
      %p179 = scmp.eq.s32.totalorder %s178, 0
      %s181 = sadd.s32 %s180, 1
      %s182 = scalar_select %p179, %s180, %s181
      %p185 = pneg %p179
      %p186 = scmp.eq.s32.totalorder %s28, 1
      %p187 = por %p185, %p186
      %p188 = scmp.ne.s32.totalorder %s180, %s183
      %p189 = scmp.eq.s32.totalorder %s28, 0
      %p190 = por %p188, %p189
      %p191 = scmp.ne.s32.totalorder %s180, %s183
      %p192 = scmp.eq.s32.totalorder %s33, 1
      %p193 = por %p191, %p192
      %p194 = scmp.ne.s32.totalorder %s183, %s184
      %p195 = scmp.eq.s32.totalorder %s33, 0
      %p196 = por %p194, %p195
      %p197 = scmp.ne.s32.totalorder %s183, %s184
      %p198 = scmp.eq.s32.totalorder %s34, 1
      %p199 = por %p197, %p198
      %p201 = scmp.ne.s32.totalorder %s184, %s200
      %p202 = scmp.eq.s32.totalorder %s34, 0
      %p203 = por %p201, %p202
      %s204 = ssub.s32 %s36, %s43
      %p205 = scmp.eq.s32.totalorder %s204, 0
      %s207 = sadd.s32 %s206, 1
      %s208 = scalar_select %p205, %s206, %s207
      %p211 = pneg %p205
      %p212 = scmp.eq.s32.totalorder %s28, 1
      %p213 = por %p211, %p212
      %p214 = scmp.ne.s32.totalorder %s206, %s209
      %p215 = scmp.eq.s32.totalorder %s28, 0
      %p216 = por %p214, %p215
      %p217 = scmp.ne.s32.totalorder %s206, %s209
      %p218 = scmp.eq.s32.totalorder %s33, 1
      %p219 = por %p217, %p218
      %p220 = scmp.ne.s32.totalorder %s209, %s210
      %p221 = scmp.eq.s32.totalorder %s33, 0
      %p222 = por %p220, %p221
      %p223 = scmp.ne.s32.totalorder %s209, %s210
      %p224 = scmp.eq.s32.totalorder %s34, 1
      %p225 = por %p223, %p224
      %p227 = scmp.ne.s32.totalorder %s210, %s226
      %p228 = scmp.eq.s32.totalorder %s34, 0
      %p229 = por %p227, %p228
      %s230 = ssub.s32 %s36, %s43
      %p231 = scmp.eq.s32.totalorder %s230, 0
      %s233 = sadd.s32 %s232, 1
      %s234 = scalar_select %p231, %s232, %s233
      %p237 = pneg %p231
      %p238 = scmp.eq.s32.totalorder %s28, 1
      %p239 = por %p237, %p238
      %p240 = scmp.ne.s32.totalorder %s232, %s235
      %p241 = scmp.eq.s32.totalorder %s28, 0
      %p242 = por %p240, %p241
      %p243 = scmp.ne.s32.totalorder %s232, %s235
      %p244 = scmp.eq.s32.totalorder %s33, 1
      %p245 = por %p243, %p244
      %p246 = scmp.ne.s32.totalorder %s235, %s236
      %p247 = scmp.eq.s32.totalorder %s33, 0
      %p248 = por %p246, %p247
      %p249 = scmp.ne.s32.totalorder %s235, %s236
      %p250 = scmp.eq.s32.totalorder %s34, 1
      %p251 = por %p249, %p250
      %p253 = scmp.ne.s32.totalorder %s236, %s252
      %p254 = scmp.eq.s32.totalorder %s34, 0
      %p255 = por %p253, %p254
      %s256 = ssub.s32 %s36, %s43
      %p257 = scmp.eq.s32.totalorder %s256, 0
      %s259 = sadd.s32 %s258, 1
      %s260 = scalar_select %p257, %s258, %s259
      %p263 = pneg %p257
      %p264 = scmp.eq.s32.totalorder %s28, 1
      %p265 = por %p263, %p264
      %p266 = scmp.ne.s32.totalorder %s258, %s261
      %p267 = scmp.eq.s32.totalorder %s28, 0
      %p268 = por %p266, %p267
      %p269 = scmp.ne.s32.totalorder %s258, %s261
      %p270 = scmp.eq.s32.totalorder %s33, 1
      %p271 = por %p269, %p270
      %p272 = scmp.ne.s32.totalorder %s261, %s262
      %p273 = scmp.eq.s32.totalorder %s33, 0
      %p274 = por %p272, %p273
      %p275 = scmp.ne.s32.totalorder %s261, %s262
      %p276 = scmp.eq.s32.totalorder %s34, 1
      %p277 = por %p275, %p276
      %p279 = scmp.ne.s32.totalorder %s262, %s278
      %p280 = scmp.eq.s32.totalorder %s34, 0
      %p281 = por %p279, %p280
      %s282 = ssub.s32 %s36, %s43
      %p283 = scmp.eq.s32.totalorder %s282, 0
      %s285 = sadd.s32 %s284, 1
      %s286 = scalar_select %p283, %s284, %s285
      %p289 = pneg %p283
      %p290 = scmp.eq.s32.totalorder %s28, 1
      %p291 = por %p289, %p290
      %p292 = scmp.ne.s32.totalorder %s284, %s287
      %p293 = scmp.eq.s32.totalorder %s28, 0
      %p294 = por %p292, %p293
      %p295 = scmp.ne.s32.totalorder %s284, %s287
      %p296 = scmp.eq.s32.totalorder %s33, 1
      %p297 = por %p295, %p296
      %p298 = scmp.ne.s32.totalorder %s287, %s288
      %p299 = scmp.eq.s32.totalorder %s33, 0
      %p300 = por %p298, %p299
      %p301 = scmp.ne.s32.totalorder %s287, %s288
      %p302 = scmp.eq.s32.totalorder %s34, 1
      %p303 = por %p301, %p302
      %p305 = scmp.ne.s32.totalorder %s288, %s304
      %p306 = scmp.eq.s32.totalorder %s34, 0
      %p307 = por %p305, %p306
      %s308 = ssub.s32 %s36, %s43
      %p309 = scmp.eq.s32.totalorder %s308, 0
      %s311 = sadd.s32 %s310, 1
      %s312 = scalar_select %p309, %s310, %s311
      %p315 = pneg %p309
      %p316 = scmp.eq.s32.totalorder %s28, 1
      %p317 = por %p315, %p316
      %p318 = scmp.ne.s32.totalorder %s310, %s313
      %p319 = scmp.eq.s32.totalorder %s28, 0
      %p320 = por %p318, %p319
      %p321 = scmp.ne.s32.totalorder %s310, %s313
      %p322 = scmp.eq.s32.totalorder %s33, 1
      %p323 = por %p321, %p322
      %p324 = scmp.ne.s32.totalorder %s313, %s314
      %p325 = scmp.eq.s32.totalorder %s33, 0
      %p326 = por %p324, %p325
      %p327 = scmp.ne.s32.totalorder %s313, %s314
      %p328 = scmp.eq.s32.totalorder %s34, 1
      %p329 = por %p327, %p328
      %p331 = scmp.ne.s32.totalorder %s314, %s330
      %p332 = scmp.eq.s32.totalorder %s34, 0
      %p333 = por %p331, %p332
      %s334 = ssub.s32 %s36, %s43
      %p335 = scmp.eq.s32.totalorder %s334, 0
      %s337 = sadd.s32 %s336, 1
      %s338 = scalar_select %p335, %s336, %s337
      %p341 = pneg %p335
      %p342 = scmp.eq.s32.totalorder %s28, 1
      %p343 = por %p341, %p342
      %p344 = scmp.ne.s32.totalorder %s336, %s339
      %p345 = scmp.eq.s32.totalorder %s28, 0
      %p346 = por %p344, %p345
      %p347 = scmp.ne.s32.totalorder %s336, %s339
      %p348 = scmp.eq.s32.totalorder %s33, 1
      %p349 = por %p347, %p348
      %p350 = scmp.ne.s32.totalorder %s339, %s340
      %p351 = scmp.eq.s32.totalorder %s33, 0
      %p352 = por %p350, %p351
      %p353 = scmp.ne.s32.totalorder %s339, %s340
      %p354 = scmp.eq.s32.totalorder %s34, 1
      %p355 = por %p353, %p354
      %p357 = scmp.ne.s32.totalorder %s340, %s356
      %p358 = scmp.eq.s32.totalorder %s34, 0
      %p359 = por %p357, %p358
      %s360 = ssub.s32 %s36, %s43
      %p361 = scmp.eq.s32.totalorder %s360, 0
      %s363 = sadd.s32 %s362, 1
      %s364 = scalar_select %p361, %s362, %s363
      %p367 = pneg %p361
      %p368 = scmp.eq.s32.totalorder %s28, 1
      %p369 = por %p367, %p368
      %p370 = scmp.ne.s32.totalorder %s362, %s365
      %p371 = scmp.eq.s32.totalorder %s28, 0
      %p372 = por %p370, %p371
      %p373 = scmp.ne.s32.totalorder %s362, %s365
      %p374 = scmp.eq.s32.totalorder %s33, 1
      %p375 = por %p373, %p374
      %p376 = scmp.ne.s32.totalorder %s365, %s366
      %p377 = scmp.eq.s32.totalorder %s33, 0
      %p378 = por %p376, %p377
      %p379 = scmp.ne.s32.totalorder %s365, %s366
      %p380 = scmp.eq.s32.totalorder %s34, 1
      %p381 = por %p379, %p380
      %p383 = scmp.ne.s32.totalorder %s366, %s382
      %p384 = scmp.eq.s32.totalorder %s34, 0
      %p385 = por %p383, %p384
      %s386 = ssub.s32 %s36, %s43
      %s387 = ssub.s32 %s35, %s47
      %s388 = sor.u32 %s386, %s387
      %p389 = scmp.eq.s32.totalorder %s388, 0
      %s391 = sadd.s32 %s390, 1
      %s392 = scalar_select %p389, %s390, %s391
      %p395 = pneg %p389
      %p396 = scmp.eq.s32.totalorder %s28, 1
      %p397 = por %p395, %p396
      %p398 = scmp.ne.s32.totalorder %s390, %s393
      %p399 = scmp.eq.s32.totalorder %s28, 0
      %p400 = por %p398, %p399
      %p401 = scmp.ne.s32.totalorder %s390, %s393
      %p402 = scmp.eq.s32.totalorder %s33, 1
      %p403 = por %p401, %p402
      %p404 = scmp.ne.s32.totalorder %s393, %s394
      %p405 = scmp.eq.s32.totalorder %s33, 0
      %p406 = por %p404, %p405
      %p407 = scmp.ne.s32.totalorder %s393, %s394
      %p408 = scmp.eq.s32.totalorder %s34, 1
      %p409 = por %p407, %p408
      %p411 = scmp.ne.s32.totalorder %s394, %s410
      %p412 = scmp.eq.s32.totalorder %s34, 0
      %p413 = por %p411, %p412
      %s414 = ssub.s32 %s36, %s43
      %s415 = ssub.s32 %s35, %s47
      %s416 = sor.u32 %s414, %s415
      %p417 = scmp.eq.s32.totalorder %s416, 0
      %s419 = sadd.s32 %s418, 1
      %s420 = scalar_select %p417, %s418, %s419
      %p423 = pneg %p417
      %p424 = scmp.eq.s32.totalorder %s28, 1
      %p425 = por %p423, %p424
      %p426 = scmp.ne.s32.totalorder %s418, %s421
      %p427 = scmp.eq.s32.totalorder %s28, 0
      %p428 = por %p426, %p427
      %p429 = scmp.ne.s32.totalorder %s418, %s421
      %p430 = scmp.eq.s32.totalorder %s33, 1
      %p431 = por %p429, %p430
      %p432 = scmp.ne.s32.totalorder %s421, %s422
      %p433 = scmp.eq.s32.totalorder %s33, 0
      %p434 = por %p432, %p433
      %p435 = scmp.ne.s32.totalorder %s421, %s422
      %p436 = scmp.eq.s32.totalorder %s34, 1
      %p437 = por %p435, %p436
      %p439 = scmp.ne.s32.totalorder %s422, %s438
      %p440 = scmp.eq.s32.totalorder %s34, 0
      %p441 = por %p439, %p440
      %p442 = scmp.le.s32.totalorder 1, %s28
      %p443 = scmp.lt.s32.totalorder %s28, 3
      %p444 = pnand %p442, %p443
      %p445 = pneg %p444
      // Predicated region
      $region9: #{tpu_custom_call.1} parent=5 // pred_check
        _
      $region10: #{tpu_custom_call.1} parent=5 // pred_check_branch
        %447 = sbr.rel (%p444) target = $region12
      $region11: #{tpu_custom_call.1} parent=5 // pred_region
        %s448 = ssub.s32 %s28, 1
        // Predicated region
        $region13: #{tpu_custom_call.1} parent=11 // pred_check
          %p449 = pneg %p66
        $region14: #{tpu_custom_call.1} parent=11 // pred_check_branch
          %451 = sbr.rel (%p449) target = $region16
        $region15: #{tpu_custom_call.1} parent=11 // pred_region
          %s452 = smul.u32 2, %s37
          %s454 = ssub.s32 256, 256
          %455 = vsyncadd [#allocation4], %s454
          %s456 = smul.addr %s452, 128
          %s457 = scalar_lea.hbm %s0, %s456
          %s458 = sshll.u32 [#allocation3], 4
          %s459 = int_to_ptr.vmem [resolvable:$true] %s458
          %464 = dma.hbm_to_vmem [thread:$0]  %s457, 256, %s459, [#allocation4], 128, 128, 8
        $region16: #{tpu_custom_call.1} parent=11 // pred_fallthru
          _
      $region12: #{tpu_custom_call.1} parent=5 // pred_fallthru
        _
      %p465 = scmp.lt.s32.totalorder %s28, 2
      // Predicated region
      $region17: #{tpu_custom_call.1} parent=5 // pred_check
        %p466 = pneg %p465
      $region18: #{tpu_custom_call.1} parent=5 // pred_check_branch
        %468 = sbr.rel (%p466) target = $region20
      $region19: #{tpu_custom_call.1} parent=5 // pred_region
        // Predicated region
        $region21: #{tpu_custom_call.1} parent=19 // pred_check
          %p469 = pneg %p86
        $region22: #{tpu_custom_call.1} parent=19 // pred_check_branch
          %471 = sbr.rel (%p469) target = $region24
        $region23: #{tpu_custom_call.1} parent=19 // pred_region
          %p472 = scmp.lt.s32.totalorder %s36, 1
          %s473 = scalar_select %p472, %s36, 1
          %s474 = smul.addr %s473, 4
          %s475 = smul.addr %s474, 8
          %s476 = scalar_lea.vmem %s1, %s475
        $region24: #{tpu_custom_call.1} parent=19 // pred_fallthru
          _
        // Predicated region
        $region25: #{tpu_custom_call.1} parent=19 // pred_check
          %p477 = pneg %p112
        $region26: #{tpu_custom_call.1} parent=19 // pred_check_branch
          %479 = sbr.rel (%p477) target = $region28
        $region27: #{tpu_custom_call.1} parent=19 // pred_region
          %p480 = scmp.lt.s32.totalorder %s36, 1
          %s481 = scalar_select %p480, %s36, 1
          %s482 = scalar_lea.vmem %s2, %s481
        $region28: #{tpu_custom_call.1} parent=19 // pred_fallthru
          _
        // Predicated region
        $region29: #{tpu_custom_call.1} parent=19 // pred_check
          %p483 = pneg %p138
        $region30: #{tpu_custom_call.1} parent=19 // pred_check_branch
          %485 = sbr.rel (%p483) target = $region32
        $region31: #{tpu_custom_call.1} parent=19 // pred_region
          %p486 = scmp.lt.s32.totalorder %s36, 1
          %s487 = scalar_select %p486, %s36, 1
          %s488 = smul.addr %s487, 4
          %s489 = smul.addr %s488, 8
          %s490 = scalar_lea.vmem %s3, %s489
        $region32: #{tpu_custom_call.1} parent=19 // pred_fallthru
          _
        // Predicated region
        $region33: #{tpu_custom_call.1} parent=19 // pred_check
          %p491 = pneg %p164
        $region34: #{tpu_custom_call.1} parent=19 // pred_check_branch
          %493 = sbr.rel (%p491) target = $region36
        $region35: #{tpu_custom_call.1} parent=19 // pred_region
          %p494 = scmp.lt.s32.totalorder %s36, 1
          %s495 = scalar_select %p494, %s36, 1
          %s496 = scalar_lea.vmem %s4, %s495
        $region36: #{tpu_custom_call.1} parent=19 // pred_fallthru
          _
        // Predicated region
        $region37: #{tpu_custom_call.1} parent=19 // pred_check
          %p497 = pneg %p190
        $region38: #{tpu_custom_call.1} parent=19 // pred_check_branch
          %499 = sbr.rel (%p497) target = $region40
        $region39: #{tpu_custom_call.1} parent=19 // pred_region
          %p500 = scmp.lt.s32.totalorder %s36, 1
          %s501 = scalar_select %p500, %s36, 1
          %s502 = scalar_lea.vmem %s5, %s501
        $region40: #{tpu_custom_call.1} parent=19 // pred_fallthru
          _
        // Predicated region
        $region41: #{tpu_custom_call.1} parent=19 // pred_check
          %p503 = pneg %p216
        $region42: #{tpu_custom_call.1} parent=19 // pred_check_branch
          %505 = sbr.rel (%p503) target = $region44
        $region43: #{tpu_custom_call.1} parent=19 // pred_region
          %p506 = scmp.lt.s32.totalorder %s36, 1
          %s507 = scalar_select %p506, %s36, 1
          %s508 = scalar_lea.vmem %s6, %s507
        $region44: #{tpu_custom_call.1} parent=19 // pred_fallthru
          _
        // Predicated region
        $region45: #{tpu_custom_call.1} parent=19 // pred_check
          %p509 = pneg %p242
        $region46: #{tpu_custom_call.1} parent=19 // pred_check_branch
          %511 = sbr.rel (%p509) target = $region48
        $region47: #{tpu_custom_call.1} parent=19 // pred_region
          %p512 = scmp.lt.s32.totalorder %s36, 1
          %s513 = scalar_select %p512, %s36, 1
          %s514 = smul.addr %s513, 4
          %s515 = smul.addr %s514, 8
          %s516 = scalar_lea.vmem %s7, %s515
        $region48: #{tpu_custom_call.1} parent=19 // pred_fallthru
          _
        // Predicated region
        $region49: #{tpu_custom_call.1} parent=19 // pred_check
          %p517 = pneg %p268
        $region50: #{tpu_custom_call.1} parent=19 // pred_check_branch
          %519 = sbr.rel (%p517) target = $region52
        $region51: #{tpu_custom_call.1} parent=19 // pred_region
          %p520 = scmp.lt.s32.totalorder %s36, 1
          %s521 = scalar_select %p520, %s36, 1
          %s522 = scalar_lea.vmem %s8, %s521
        $region52: #{tpu_custom_call.1} parent=19 // pred_fallthru
          _
        // Predicated region
        $region53: #{tpu_custom_call.1} parent=19 // pred_check
          %p523 = pneg %p294
        $region54: #{tpu_custom_call.1} parent=19 // pred_check_branch
          %525 = sbr.rel (%p523) target = $region56
        $region55: #{tpu_custom_call.1} parent=19 // pred_region
          %p526 = scmp.lt.s32.totalorder %s36, 1
          %s527 = scalar_select %p526, %s36, 1
          %s528 = smul.addr %s527, 8
          %s529 = smul.addr %s528, 8
          %s530 = scalar_lea.vmem %s9, %s529
        $region56: #{tpu_custom_call.1} parent=19 // pred_fallthru
          _
        // Predicated region
        $region57: #{tpu_custom_call.1} parent=19 // pred_check
          %p531 = pneg %p320
        $region58: #{tpu_custom_call.1} parent=19 // pred_check_branch
          %533 = sbr.rel (%p531) target = $region60
        $region59: #{tpu_custom_call.1} parent=19 // pred_region
          %p534 = scmp.lt.s32.totalorder %s36, 1
          %s535 = scalar_select %p534, %s36, 1
          %s536 = scalar_lea.vmem %s10, %s535
        $region60: #{tpu_custom_call.1} parent=19 // pred_fallthru
          _
        // Predicated region
        $region61: #{tpu_custom_call.1} parent=19 // pred_check
          %p537 = pneg %p346
        $region62: #{tpu_custom_call.1} parent=19 // pred_check_branch
          %539 = sbr.rel (%p537) target = $region64
        $region63: #{tpu_custom_call.1} parent=19 // pred_region
          %p540 = scmp.lt.s32.totalorder %s36, 1
          %s541 = scalar_select %p540, %s36, 1
          %s542 = scalar_lea.vmem %s11, %s541
        $region64: #{tpu_custom_call.1} parent=19 // pred_fallthru
          _
        // Predicated region
        $region65: #{tpu_custom_call.1} parent=19 // pred_check
          %p543 = pneg %p372
        $region66: #{tpu_custom_call.1} parent=19 // pred_check_branch
          %545 = sbr.rel (%p543) target = $region68
        $region67: #{tpu_custom_call.1} parent=19 // pred_region
          %p546 = scmp.lt.s32.totalorder %s36, 1
          %s547 = scalar_select %p546, %s36, 1
          %s548 = scalar_lea.vmem %s12, %s547
        $region68: #{tpu_custom_call.1} parent=19 // pred_fallthru
          _
      $region20: #{tpu_custom_call.1} parent=5 // pred_fallthru
        _
      %p549 = scmp.le.s32.totalorder 1, %s28
      %p550 = scmp.lt.s32.totalorder %s28, 3
      %p551 = pnand %p549, %p550
      %p552 = pneg %p551
      // Predicated region
      $region69: #{tpu_custom_call.1} parent=5 // pred_check
        _
      $region70: #{tpu_custom_call.1} parent=5 // pred_check_branch
        %554 = sbr.rel (%p551) target = $region72
      $region71: #{tpu_custom_call.1} parent=5 // pred_region
        %s555 = ssub.s32 %s28, 1
        // Predicated region
        $region73: #{tpu_custom_call.1} parent=71 // pred_check
          %p556 = pneg %p66
        $region74: #{tpu_custom_call.1} parent=71 // pred_check_branch
          %558 = sbr.rel (%p556) target = $region76
        $region75: #{tpu_custom_call.1} parent=71 // pred_region
          %559 = dma.done [#allocation4], 256
        $region76: #{tpu_custom_call.1} parent=71 // pred_fallthru
          _
        %p560 = pneg %p66
        %p561 = pneg %p63
        %p562 = scmp.lt.s32.totalorder %s38, 1
        %s563 = scalar_select %p562, %s38, 1
        %s564 = smul.addr %s563, 4
        %s565 = smul.addr %s564, 8
        %s566 = scalar_lea.vmem %s1, %s565
        %p567 = pneg %p92
        %p568 = pneg %p89
        %p569 = scmp.lt.s32.totalorder %s38, 1
        %s570 = scalar_select %p569, %s38, 1
        %s571 = scalar_lea.vmem %s2, %s570
        %p572 = pneg %p118
        %p573 = pneg %p115
        %p574 = scmp.lt.s32.totalorder %s38, 1
        %s575 = scalar_select %p574, %s38, 1
        %s576 = smul.addr %s575, 4
        %s577 = smul.addr %s576, 8
        %s578 = scalar_lea.vmem %s3, %s577
        %p579 = pneg %p144
        %p580 = pneg %p141
        %p581 = scmp.lt.s32.totalorder %s38, 1
        %s582 = scalar_select %p581, %s38, 1
        %s583 = scalar_lea.vmem %s4, %s582
        %p584 = pneg %p170
        %p585 = pneg %p167
        %p586 = scmp.lt.s32.totalorder %s38, 1
        %s587 = scalar_select %p586, %s38, 1
        %s588 = scalar_lea.vmem %s5, %s587
        %p589 = pneg %p196
        %p590 = pneg %p193
        %p591 = scmp.lt.s32.totalorder %s38, 1
        %s592 = scalar_select %p591, %s38, 1
        %s593 = scalar_lea.vmem %s6, %s592
        %p594 = pneg %p222
        %p595 = pneg %p219
        %p596 = scmp.lt.s32.totalorder %s38, 1
        %s597 = scalar_select %p596, %s38, 1
        %s598 = smul.addr %s597, 4
        %s599 = smul.addr %s598, 8
        %s600 = scalar_lea.vmem %s7, %s599
        %p601 = pneg %p248
        %p602 = pneg %p245
        %p603 = scmp.lt.s32.totalorder %s38, 1
        %s604 = scalar_select %p603, %s38, 1
        %s605 = scalar_lea.vmem %s8, %s604
        %p606 = pneg %p274
        %p607 = pneg %p271
        %p608 = scmp.lt.s32.totalorder %s38, 1
        %s609 = scalar_select %p608, %s38, 1
        %s610 = smul.addr %s609, 8
        %s611 = smul.addr %s610, 8
        %s612 = scalar_lea.vmem %s9, %s611
        %p613 = pneg %p300
        %p614 = pneg %p297
        %p615 = scmp.lt.s32.totalorder %s38, 1
        %s616 = scalar_select %p615, %s38, 1
        %s617 = scalar_lea.vmem %s10, %s616
        %p618 = pneg %p326
        %p619 = pneg %p323
        %p620 = scmp.lt.s32.totalorder %s38, 1
        %s621 = scalar_select %p620, %s38, 1
        %s622 = scalar_lea.vmem %s11, %s621
        %p623 = pneg %p352
        %p624 = pneg %p349
        %p625 = scmp.lt.s32.totalorder %s38, 1
        %s626 = scalar_select %p625, %s38, 1
        %s627 = scalar_lea.vmem %s12, %s626
        %p628 = pneg %p378
        %p629 = pneg %p375
        %p630 = pneg %p406
        %p631 = pneg %p403
        %s632 = sand.u32 %s393, 1
        %s633 = scalar_lea.sflag [#allocation5], %s632
        %s634 = sand.u32 %s393, 1
        %s635 = smul.addr %s634, 16
        %s636 = scalar_lea.vmem [#allocation6], %s635
        %p637 = pneg %p434
        %p638 = pneg %p431
        %s639 = sand.u32 %s421, 1
        %s640 = scalar_lea.sflag [#allocation8], %s639
        %s641 = sand.u32 %s421, 1
        %s642 = smul.addr %s641, 16
        %s643 = scalar_lea.vmem [#allocation7], %s642
        %s644 = smul.u32 2, %s37
        %p645 = scmp.lt.s32.totalorder %s38, 1
        %s646 = scalar_select %p645, %s38, 1
        %s647 = smul.addr %s646, 4
        %s648 = smul.addr %s647, 8
        %s649 = scalar_lea.vmem %s1, %s648
        %p650 = scmp.lt.s32.totalorder %s38, 1
        %s651 = scalar_select %p650, %s38, 1
        %s652 = scalar_lea.vmem %s2, %s651
        %p653 = scmp.lt.s32.totalorder %s38, 1
        %s654 = scalar_select %p653, %s38, 1
        %s655 = smul.addr %s654, 4
        %s656 = smul.addr %s655, 8
        %s657 = scalar_lea.vmem %s3, %s656
        %p658 = scmp.lt.s32.totalorder %s38, 1
        %s659 = scalar_select %p658, %s38, 1
        %s660 = scalar_lea.vmem %s4, %s659
        %p661 = scmp.lt.s32.totalorder %s38, 1
        %s662 = scalar_select %p661, %s38, 1
        %s663 = scalar_lea.vmem %s5, %s662
        %p664 = scmp.lt.s32.totalorder %s38, 1
        %s665 = scalar_select %p664, %s38, 1
        %s666 = scalar_lea.vmem %s6, %s665
        %p667 = scmp.lt.s32.totalorder %s38, 1
        %s668 = scalar_select %p667, %s38, 1
        %s669 = smul.addr %s668, 4
        %s670 = smul.addr %s669, 8
        %s671 = scalar_lea.vmem %s7, %s670
        %p672 = scmp.lt.s32.totalorder %s38, 1
        %s673 = scalar_select %p672, %s38, 1
        %s674 = scalar_lea.vmem %s8, %s673
        %p675 = scmp.lt.s32.totalorder %s38, 1
        %s676 = scalar_select %p675, %s38, 1
        %s677 = smul.addr %s676, 8
        %s678 = smul.addr %s677, 8
        %s679 = scalar_lea.vmem %s9, %s678
        %p680 = scmp.lt.s32.totalorder %s38, 1
        %s681 = scalar_select %p680, %s38, 1
        %s682 = scalar_lea.vmem %s10, %s681
        %p683 = scmp.lt.s32.totalorder %s38, 1
        %s684 = scalar_select %p683, %s38, 1
        %s685 = scalar_lea.vmem %s11, %s684
        %p686 = scmp.lt.s32.totalorder %s38, 1
        %s687 = scalar_select %p686, %s38, 1
        %s688 = scalar_lea.vmem %s12, %s687
        %s689 = smul.u32 2, %s37
        %s690 = smul.u32 2, %s37
        %p691 = scmp.eq.s32.totalorder %s38, 0
        // Predicated region
        $region77: #{tpu_custom_call.1} parent=71 // pred_check
          %p692 = pneg %p691
        $region78: #{tpu_custom_call.1} parent=71 // pred_check_branch
          %694 = sbr.rel (%p692) target = $region80
        $region79: #{tpu_custom_call.1} parent=71 // pred_region
          %v695 = vld [vmem:[#allocation3] sm:$0xff]
          %v696 = vld [vmem:[#allocation3 + $0x8] sm:$0xff]
          %vm697 = vcmask 261120
          %698 = vst.msk [vmem:[#allocation2] sm:$0xff] %vm697, %v695
          %699 = vst.msk [vmem:[#allocation2 + $0x8] sm:$0xff] %vm697, %v696
        $region80: #{tpu_custom_call.1} parent=71 // pred_fallthru
          _
        %v700 = vld [vmem:[#allocation2] sm:$0xff]
        %v701 = vld [vmem:[#allocation2 + $0x8] sm:$0xff]
        %v702 = vld [vmem:[%s649] sm:$0xff]
        %v703 = vld [vmem:[%s649 + $0x8] sm:$0xff]
        %v704 = vld [vmem:[%s649 + $0x10] sm:$0xff]
        %v705 = vld [vmem:[%s649 + $0x18] sm:$0xff]
        %v706 = vld [vmem:[%s652] sm:$0x1]
        %v708 = vlaneseq
        %v709 = vshrl.u32 %v708, 7
        %v710 = vsub.s32 0, %v709
        %v711 = vrot.slane %v706, %v710
        %vm713 = vcmask 261120
        %v715 = vsel %vm713, %v700, 0
        %v718 = vsel %vm713, %v701, 0
        %720 = vmatprep.subr.mxu0 0.0
        %721 = vmatpush1.msra.mxu0 0.0
        %722 = vmatprep.subr.mxu0 0.0
        %723 = vmatpush1.msra.mxu0 0.0
        %724 = vmatprep.subr.mxu0 0.0
        %725 = vmatpush1.msra.mxu0 0.0
        %726 = vmatprep.subr.mxu0 0.0
        %727 = vmatpush1.msra.mxu0 0.0
        %728 = vmatprep.subr.mxu0 0.0
        %729 = vmatpush1.msra.mxu0 0.0
        %730 = vmatprep.subr.mxu0 0.0
        %731 = vmatpush1.msra.mxu0 0.0
        %732 = vmatprep.subr.mxu0 0.0
        %733 = vmatpush1.msra.mxu0 0.0
        %734 = vmatprep.subr.mxu0 0.0
        %735 = vmatpush1.msra.mxu0 0.0
        %736 = vmatprep.subr.mxu0 0.0
        %737 = vmatpush1.msra.mxu0 0.0
        %738 = vmatprep.subr.mxu0 0.0
        %739 = vmatpush1.msra.mxu0 0.0
        %740 = vmatprep.subr.mxu0 0.0
        %741 = vmatpush1.msra.mxu0 0.0
        %742 = vmatprep.subr.mxu0 0.0
        %743 = vmatpush1.msra.mxu0 0.0
        %744 = vmatprep.subr.mxu0 0.0
        %745 = vmatpush1.msra.mxu0 %v705
        %746 = vmatprep.subr.mxu0 0.0
        %747 = vmatpush1.msra.mxu0 %v704
        %748 = vmatprep.subr.mxu0 0.0
        %749 = vmatpush1.msra.mxu0 %v703
        %750 = vmatprep.subr.mxu0 0.0
        %751 = vmatpush1.msra.mxu0 %v702
        %752 = vmatprep.subr.mxu0 0.0
        %753 = vmatpush2.msra.mxu0 0.0
        %754 = vmatprep.subr.mxu0 0.0
        %755 = vmatpush2.msra.mxu0 0.0
        %756 = vmatprep.subr.mxu0 0.0
        %757 = vmatpush2.msra.mxu0 0.0
        %758 = vmatprep.subr.mxu0 0.0
        %759 = vmatpush2.msra.mxu0 0.0
        %760 = vmatprep.subr.mxu0 0.0
        %761 = vmatpush2.msra.mxu0 0.0
        %762 = vmatprep.subr.mxu0 0.0
        %763 = vmatpush2.msra.mxu0 0.0
        %764 = vmatprep.subr.mxu0 0.0
        %765 = vmatpush2.msra.mxu0 0.0
        %766 = vmatprep.subr.mxu0 0.0
        %767 = vmatpush2.msra.mxu0 0.0
        %768 = vmatprep.subr.mxu0 0.0
        %769 = vmatpush2.msra.mxu0 0.0
        %770 = vmatprep.subr.mxu0 0.0
        %771 = vmatpush2.msra.mxu0 0.0
        %772 = vmatprep.subr.mxu0 0.0
        %773 = vmatpush2.msra.mxu0 0.0
        %774 = vmatprep.subr.mxu0 0.0
        %775 = vmatpush2.msra.mxu0 0.0
        %776 = vmatprep.subr.mxu0 0.0
        %777 = vmatpush2.msra.mxu0 0.0
        %778 = vmatprep.subr.mxu0 0.0
        %779 = vmatpush2.msra.mxu0 0.0
        %780 = vmatprep.subr.mxu0 0.0
        %781 = vmatpush2.msra.mxu0 0.0
        %782 = vmatprep.subr.mxu0 0.0
        %783 = vmatpush2.msra.mxu0 0.0
        %784 = vmatprep.mubr.f32.mxu0 0.0
        %785 = vmatmul.mubr.f32.gmra.mxu0 %v715
        %v786 = vpop.f32.mrf.mxu0
        %v787 = vadd.f32 %v711, %v786
        %v788 = vpop.f32.mrf.mxu0
        %789 = vmatprep.mubr.f32.mxu0 0.0
        %790 = vmatmul.mubr.f32.gmra.mxu0 %v718
        %v791 = vpop.f32.mrf.mxu0
        %v792 = vadd.f32 %v711, %v791
        %v793 = vpop.f32.mrf.mxu0
        %794 = vdwg.mxu0
        %v795 = vmul.f32 %v787, 0.35355338
        %v796 = vmul.f32 %v792, 0.35355338
        %v797 = vld [vmem:[%s657] sm:$0xff]
        %v798 = vld [vmem:[%s657 + $0x8] sm:$0xff]
        %v799 = vld [vmem:[%s657 + $0x10] sm:$0xff]
        %v800 = vld [vmem:[%s657 + $0x18] sm:$0xff]
        %802 = vrot.lane.b32.xlu0 %v787, 96
        %v803 = vpop.permute.xlu0 %802
        %vm804 = vcmask 64512
        %v806 = vsel %vm804, %v795, 0
        %v808 = vsel %vm804, %v803, 0
        %810 = vmatprep.subr.mxu0 0.0
        %811 = vmatpush1.xpose.msra.mxu0 0.0
        %812 = vmatprep.subr.mxu0 0.0
        %813 = vmatpush1.xpose.msra.mxu0 0.0
        %814 = vmatprep.subr.mxu0 0.0
        %815 = vmatpush1.xpose.msra.mxu0 0.0
        %816 = vmatprep.subr.mxu0 0.0
        %817 = vmatpush1.xpose.msra.mxu0 0.0
        %818 = vmatprep.subr.mxu0 0.0
        %819 = vmatpush1.xpose.msra.mxu0 0.0
        %820 = vmatprep.subr.mxu0 0.0
        %821 = vmatpush1.xpose.msra.mxu0 0.0
        %822 = vmatprep.subr.mxu0 0.0
        %823 = vmatpush1.xpose.msra.mxu0 0.0
        %824 = vmatprep.subr.mxu0 0.0
        %825 = vmatpush1.xpose.msra.mxu0 0.0
        %826 = vmatprep.subr.mxu0 0.0
        %827 = vmatpush1.xpose.msra.mxu0 0.0
        %828 = vmatprep.subr.mxu0 0.0
        %829 = vmatpush1.xpose.msra.mxu0 0.0
        %830 = vmatprep.subr.mxu0 0.0
        %831 = vmatpush1.xpose.msra.mxu0 0.0
        %832 = vmatprep.subr.mxu0 0.0
        %833 = vmatpush1.xpose.msra.mxu0 0.0
        %834 = vmatprep.subr.mxu0 0.0
        %835 = vmatpush1.xpose.msra.mxu0 0.0
        %836 = vmatprep.subr.mxu0 0.0
        %837 = vmatpush1.xpose.msra.mxu0 0.0
        %838 = vmatprep.subr.mxu0 0.0
        %839 = vmatpush1.xpose.msra.mxu0 0.0
        %840 = vmatprep.subr.mxu0 0.0
        %841 = vmatpush1.xpose.msra.mxu0 %v808
        %842 = vmatprep.subr.mxu0 0.0
        %843 = vmatpush2.xpose.msra.mxu0 0.0
        %844 = vmatprep.subr.mxu0 0.0
        %845 = vmatpush2.xpose.msra.mxu0 0.0
        %846 = vmatprep.subr.mxu0 0.0
        %847 = vmatpush2.xpose.msra.mxu0 0.0
        %848 = vmatprep.subr.mxu0 0.0
        %849 = vmatpush2.xpose.msra.mxu0 0.0
        %850 = vmatprep.subr.mxu0 0.0
        %851 = vmatpush2.xpose.msra.mxu0 0.0
        %852 = vmatprep.subr.mxu0 0.0
        %853 = vmatpush2.xpose.msra.mxu0 0.0
        %854 = vmatprep.subr.mxu0 0.0
        %855 = vmatpush2.xpose.msra.mxu0 0.0
        %856 = vmatprep.subr.mxu0 0.0
        %857 = vmatpush2.xpose.msra.mxu0 0.0
        %858 = vmatprep.subr.mxu0 0.0
        %859 = vmatpush2.xpose.msra.mxu0 0.0
        %860 = vmatprep.subr.mxu0 0.0
        %861 = vmatpush2.xpose.msra.mxu0 0.0
        %862 = vmatprep.subr.mxu0 0.0
        %863 = vmatpush2.xpose.msra.mxu0 0.0
        %864 = vmatprep.subr.mxu0 0.0
        %865 = vmatpush2.xpose.msra.mxu0 0.0
        %866 = vmatprep.subr.mxu0 0.0
        %867 = vmatpush2.xpose.msra.mxu0 0.0
        %868 = vmatprep.subr.mxu0 0.0
        %869 = vmatpush2.xpose.msra.mxu0 0.0
        %870 = vmatprep.subr.mxu0 0.0
        %871 = vmatpush2.xpose.msra.mxu0 0.0
        %872 = vmatprep.subr.mxu0 0.0
        %873 = vmatpush2.xpose.msra.mxu0 0.0
        %874 = vmatprep.mubr.f32.mxu0 0.0
        %875 = vmatmul.mubr.f32.gmra.mxu0 %v806
        %v876 = vpop.f32.mrf.mxu0
        %v877 = vadd.f32 0.0, %v876
        %v878 = vpop.f32.mrf.mxu0
        %879 = vdwg.mxu0
        %881 = vrot.lane.b32.xlu0 %v792, 96
        %v882 = vpop.permute.xlu0 %881
        %v884 = vsel %vm804, %v796, 0
        %v886 = vsel %vm804, %v882, 0
        %888 = vmatprep.subr.mxu0 0.0
        %889 = vmatpush1.xpose.msra.mxu0 0.0
        %890 = vmatprep.subr.mxu0 0.0
        %891 = vmatpush1.xpose.msra.mxu0 0.0
        %892 = vmatprep.subr.mxu0 0.0
        %893 = vmatpush1.xpose.msra.mxu0 0.0
        %894 = vmatprep.subr.mxu0 0.0
        %895 = vmatpush1.xpose.msra.mxu0 0.0
        %896 = vmatprep.subr.mxu0 0.0
        %897 = vmatpush1.xpose.msra.mxu0 0.0
        %898 = vmatprep.subr.mxu0 0.0
        %899 = vmatpush1.xpose.msra.mxu0 0.0
        %900 = vmatprep.subr.mxu0 0.0
        %901 = vmatpush1.xpose.msra.mxu0 0.0
        %902 = vmatprep.subr.mxu0 0.0
        %903 = vmatpush1.xpose.msra.mxu0 0.0
        %904 = vmatprep.subr.mxu0 0.0
        %905 = vmatpush1.xpose.msra.mxu0 0.0
        %906 = vmatprep.subr.mxu0 0.0
        %907 = vmatpush1.xpose.msra.mxu0 0.0
        %908 = vmatprep.subr.mxu0 0.0
        %909 = vmatpush1.xpose.msra.mxu0 0.0
        %910 = vmatprep.subr.mxu0 0.0
        %911 = vmatpush1.xpose.msra.mxu0 0.0
        %912 = vmatprep.subr.mxu0 0.0
        %913 = vmatpush1.xpose.msra.mxu0 0.0
        %914 = vmatprep.subr.mxu0 0.0
        %915 = vmatpush1.xpose.msra.mxu0 0.0
        %916 = vmatprep.subr.mxu0 0.0
        %917 = vmatpush1.xpose.msra.mxu0 0.0
        %918 = vmatprep.subr.mxu0 0.0
        %919 = vmatpush1.xpose.msra.mxu0 %v886
        %920 = vmatprep.subr.mxu0 0.0
        %921 = vmatpush2.xpose.msra.mxu0 0.0
        %922 = vmatprep.subr.mxu0 0.0
        %923 = vmatpush2.xpose.msra.mxu0 0.0
        %924 = vmatprep.subr.mxu0 0.0
        %925 = vmatpush2.xpose.msra.mxu0 0.0
        %926 = vmatprep.subr.mxu0 0.0
        %927 = vmatpush2.xpose.msra.mxu0 0.0
        %928 = vmatprep.subr.mxu0 0.0
        %929 = vmatpush2.xpose.msra.mxu0 0.0
        %930 = vmatprep.subr.mxu0 0.0
        %931 = vmatpush2.xpose.msra.mxu0 0.0
        %932 = vmatprep.subr.mxu0 0.0
        %933 = vmatpush2.xpose.msra.mxu0 0.0
        %934 = vmatprep.subr.mxu0 0.0
        %935 = vmatpush2.xpose.msra.mxu0 0.0
        %936 = vmatprep.subr.mxu0 0.0
        %937 = vmatpush2.xpose.msra.mxu0 0.0
        %938 = vmatprep.subr.mxu0 0.0
        %939 = vmatpush2.xpose.msra.mxu0 0.0
        %940 = vmatprep.subr.mxu0 0.0
        %941 = vmatpush2.xpose.msra.mxu0 0.0
        %942 = vmatprep.subr.mxu0 0.0
        %943 = vmatpush2.xpose.msra.mxu0 0.0
        %944 = vmatprep.subr.mxu0 0.0
        %945 = vmatpush2.xpose.msra.mxu0 0.0
        %946 = vmatprep.subr.mxu0 0.0
        %947 = vmatpush2.xpose.msra.mxu0 0.0
        %948 = vmatprep.subr.mxu0 0.0
        %949 = vmatpush2.xpose.msra.mxu0 0.0
        %950 = vmatprep.subr.mxu0 0.0
        %951 = vmatpush2.xpose.msra.mxu0 0.0
        %952 = vmatprep.mubr.f32.mxu0 0.0
        %953 = vmatmul.mubr.f32.gmra.mxu0 %v884
        %v954 = vpop.f32.mrf.mxu0
        %v955 = vadd.f32 0.0, %v954
        %v956 = vpop.f32.mrf.mxu0
        %957 = vdwg.mxu0
        %v958 = vsel %vm804, %v877, -inf
        %959 = vmax.xlane.f32.xlu0 %v958
        %v960 = vpop.xlane.xlu0 %959
        %v961 = vsel %vm804, %v955, -inf
        %962 = vmax.xlane.f32.xlu0 %v961
        %v963 = vpop.xlane.xlu0 %962
        %v964 = vsub.f32 %v877, %v960
        %v965 = vsub.f32 %v955, %v963
        %v966 = vmul.f32 %v964, 1.442695
        %v967 = vpow.pop %v966
        %v968 = vmul.f32 %v965, 1.442695
        %v969 = vpow.pop %v968
        %v970 = vsel %vm804, %v967, 0.0
        %971 = vadd.xlane.f32.xlu0 %v970
        %v972 = vpop.xlane.xlu0 %971
        %v973 = vsel %vm804, %v969, 0.0
        %974 = vadd.xlane.f32.xlu0 %v973
        %v975 = vpop.xlane.xlu0 %974
        %v976 = vrcp.pop %v972
        %v977 = vrcp.pop %v975
        %v978 = vmul.f32 %v967, %v976
        %v979 = vmul.f32 %v969, %v977
        %v980 = vadd.f32 %v978, 0.0
        %v981 = vadd.f32 %v979, 0.0
        %982 = vrot.lane.b32.xlu0 %v787, 64
        %v983 = vpop.permute.xlu0 %982
        %v986 = vsel %vm804, %v978, 0
        %988 = vmatprep.subr.mxu0 0.0
        %989 = vmatpush1.msra.mxu0 0.0
        %990 = vmatprep.subr.mxu0 0.0
        %991 = vmatpush1.msra.mxu0 0.0
        %992 = vmatprep.subr.mxu0 0.0
        %993 = vmatpush1.msra.mxu0 0.0
        %994 = vmatprep.subr.mxu0 0.0
        %995 = vmatpush1.msra.mxu0 0.0
        %996 = vmatprep.subr.mxu0 0.0
        %997 = vmatpush1.msra.mxu0 0.0
        %998 = vmatprep.subr.mxu0 0.0
        %999 = vmatpush1.msra.mxu0 0.0
        %1000 = vmatprep.subr.mxu0 0.0
        %1001 = vmatpush1.msra.mxu0 0.0
        %1002 = vmatprep.subr.mxu0 0.0
        %1003 = vmatpush1.msra.mxu0 0.0
        %1004 = vmatprep.subr.mxu0 0.0
        %1005 = vmatpush1.msra.mxu0 0.0
        %1006 = vmatprep.subr.mxu0 0.0
        %1007 = vmatpush1.msra.mxu0 0.0
        %1008 = vmatprep.subr.mxu0 0.0
        %1009 = vmatpush1.msra.mxu0 0.0
        %1010 = vmatprep.subr.mxu0 0.0
        %1011 = vmatpush1.msra.mxu0 0.0
        %1012 = vmatprep.subr.mxu0 0.0
        %1013 = vmatpush1.msra.mxu0 0.0
        %1014 = vmatprep.subr.mxu0 0.0
        %1015 = vmatpush1.msra.mxu0 0.0
        %1016 = vmatprep.subr.mxu0 0.0
        %1017 = vmatpush1.msra.mxu0 0.0
        %1018 = vmatprep.subr.mxu0 0.0
        %1019 = vmatpush1.msra.mxu0 %v983
        %1020 = vmatprep.subr.mxu0 0.0
        %1021 = vmatpush2.msra.mxu0 0.0
        %1022 = vmatprep.subr.mxu0 0.0
        %1023 = vmatpush2.msra.mxu0 0.0
        %1024 = vmatprep.subr.mxu0 0.0
        %1025 = vmatpush2.msra.mxu0 0.0
        %1026 = vmatprep.subr.mxu0 0.0
        %1027 = vmatpush2.msra.mxu0 0.0
        %1028 = vmatprep.subr.mxu0 0.0
        %1029 = vmatpush2.msra.mxu0 0.0
        %1030 = vmatprep.subr.mxu0 0.0
        %1031 = vmatpush2.msra.mxu0 0.0
        %1032 = vmatprep.subr.mxu0 0.0
        %1033 = vmatpush2.msra.mxu0 0.0
        %1034 = vmatprep.subr.mxu0 0.0
        %1035 = vmatpush2.msra.mxu0 0.0
        %1036 = vmatprep.subr.mxu0 0.0
        %1037 = vmatpush2.msra.mxu0 0.0
        %1038 = vmatprep.subr.mxu0 0.0
        %1039 = vmatpush2.msra.mxu0 0.0
        %1040 = vmatprep.subr.mxu0 0.0
        %1041 = vmatpush2.msra.mxu0 0.0
        %1042 = vmatprep.subr.mxu0 0.0
        %1043 = vmatpush2.msra.mxu0 0.0
        %1044 = vmatprep.subr.mxu0 0.0
        %1045 = vmatpush2.msra.mxu0 0.0
        %1046 = vmatprep.subr.mxu0 0.0
        %1047 = vmatpush2.msra.mxu0 0.0
        %1048 = vmatprep.subr.mxu0 0.0
        %1049 = vmatpush2.msra.mxu0 0.0
        %1050 = vmatprep.subr.mxu0 0.0
        %1051 = vmatpush2.msra.mxu0 0.0
        %1052 = vmatprep.mubr.f32.mxu0 0.0
        %1053 = vmatmul.mubr.f32.gmra.mxu0 %v986
        %v1054 = vpop.f32.mrf.mxu0
        %v1055 = vadd.f32 0.0, %v1054
        %v1056 = vpop.f32.mrf.mxu0
        %1057 = vdwg.mxu0
        %1058 = vrot.lane.b32.xlu0 %v792, 64
        %v1059 = vpop.permute.xlu0 %1058
        %v1062 = vsel %vm804, %v979, 0
        %1064 = vmatprep.subr.mxu0 0.0
        %1065 = vmatpush1.msra.mxu0 0.0
        %1066 = vmatprep.subr.mxu0 0.0
        %1067 = vmatpush1.msra.mxu0 0.0
        %1068 = vmatprep.subr.mxu0 0.0
        %1069 = vmatpush1.msra.mxu0 0.0
        %1070 = vmatprep.subr.mxu0 0.0
        %1071 = vmatpush1.msra.mxu0 0.0
        %1072 = vmatprep.subr.mxu0 0.0
        %1073 = vmatpush1.msra.mxu0 0.0
        %1074 = vmatprep.subr.mxu0 0.0
        %1075 = vmatpush1.msra.mxu0 0.0
        %1076 = vmatprep.subr.mxu0 0.0
        %1077 = vmatpush1.msra.mxu0 0.0
        %1078 = vmatprep.subr.mxu0 0.0
        %1079 = vmatpush1.msra.mxu0 0.0
        %1080 = vmatprep.subr.mxu0 0.0
        %1081 = vmatpush1.msra.mxu0 0.0
        %1082 = vmatprep.subr.mxu0 0.0
        %1083 = vmatpush1.msra.mxu0 0.0
        %1084 = vmatprep.subr.mxu0 0.0
        %1085 = vmatpush1.msra.mxu0 0.0
        %1086 = vmatprep.subr.mxu0 0.0
        %1087 = vmatpush1.msra.mxu0 0.0
        %1088 = vmatprep.subr.mxu0 0.0
        %1089 = vmatpush1.msra.mxu0 0.0
        %1090 = vmatprep.subr.mxu0 0.0
        %1091 = vmatpush1.msra.mxu0 0.0
        %1092 = vmatprep.subr.mxu0 0.0
        %1093 = vmatpush1.msra.mxu0 0.0
        %1094 = vmatprep.subr.mxu0 0.0
        %1095 = vmatpush1.msra.mxu0 %v1059
        %1096 = vmatprep.subr.mxu0 0.0
        %1097 = vmatpush2.msra.mxu0 0.0
        %1098 = vmatprep.subr.mxu0 0.0
        %1099 = vmatpush2.msra.mxu0 0.0
        %1100 = vmatprep.subr.mxu0 0.0
        %1101 = vmatpush2.msra.mxu0 0.0
        %1102 = vmatprep.subr.mxu0 0.0
        %1103 = vmatpush2.msra.mxu0 0.0
        %1104 = vmatprep.subr.mxu0 0.0
        %1105 = vmatpush2.msra.mxu0 0.0
        %1106 = vmatprep.subr.mxu0 0.0
        %1107 = vmatpush2.msra.mxu0 0.0
        %1108 = vmatprep.subr.mxu0 0.0
        %1109 = vmatpush2.msra.mxu0 0.0
        %1110 = vmatprep.subr.mxu0 0.0
        %1111 = vmatpush2.msra.mxu0 0.0
        %1112 = vmatprep.subr.mxu0 0.0
        %1113 = vmatpush2.msra.mxu0 0.0
        %1114 = vmatprep.subr.mxu0 0.0
        %1115 = vmatpush2.msra.mxu0 0.0
        %1116 = vmatprep.subr.mxu0 0.0
        %1117 = vmatpush2.msra.mxu0 0.0
        %1118 = vmatprep.subr.mxu0 0.0
        %1119 = vmatpush2.msra.mxu0 0.0
        %1120 = vmatprep.subr.mxu0 0.0
        %1121 = vmatpush2.msra.mxu0 0.0
        %1122 = vmatprep.subr.mxu0 0.0
        %1123 = vmatpush2.msra.mxu0 0.0
        %1124 = vmatprep.subr.mxu0 0.0
        %1125 = vmatpush2.msra.mxu0 0.0
        %1126 = vmatprep.subr.mxu0 0.0
        %1127 = vmatpush2.msra.mxu0 0.0
        %1128 = vmatprep.mubr.f32.mxu0 0.0
        %1129 = vmatmul.mubr.f32.gmra.mxu0 %v1062
        %v1130 = vpop.f32.mrf.mxu0
        %v1131 = vadd.f32 0.0, %v1130
        %v1132 = vpop.f32.mrf.mxu0
        %1133 = vdwg.mxu0
        %1134 = vrot.lane.b32.xlu0 %v795, 120
        %v1135 = vpop.permute.xlu0 %1134
        %1136 = vrot.lane.b32.xlu0 %v787, 88
        %v1137 = vpop.permute.xlu0 %1136
        %v1138 = vsel %vm804, %v1135, 0
        %v1140 = vsel %vm804, %v1137, 0
        %1142 = vmatprep.subr.mxu0 0.0
        %1143 = vmatpush1.xpose.msra.mxu0 0.0
        %1144 = vmatprep.subr.mxu0 0.0
        %1145 = vmatpush1.xpose.msra.mxu0 0.0
        %1146 = vmatprep.subr.mxu0 0.0
        %1147 = vmatpush1.xpose.msra.mxu0 0.0
        %1148 = vmatprep.subr.mxu0 0.0
        %1149 = vmatpush1.xpose.msra.mxu0 0.0
        %1150 = vmatprep.subr.mxu0 0.0
        %1151 = vmatpush1.xpose.msra.mxu0 0.0
        %1152 = vmatprep.subr.mxu0 0.0
        %1153 = vmatpush1.xpose.msra.mxu0 0.0
        %1154 = vmatprep.subr.mxu0 0.0
        %1155 = vmatpush1.xpose.msra.mxu0 0.0
        %1156 = vmatprep.subr.mxu0 0.0
        %1157 = vmatpush1.xpose.msra.mxu0 0.0
        %1158 = vmatprep.subr.mxu0 0.0
        %1159 = vmatpush1.xpose.msra.mxu0 0.0
        %1160 = vmatprep.subr.mxu0 0.0
        %1161 = vmatpush1.xpose.msra.mxu0 0.0
        %1162 = vmatprep.subr.mxu0 0.0
        %1163 = vmatpush1.xpose.msra.mxu0 0.0
        %1164 = vmatprep.subr.mxu0 0.0
        %1165 = vmatpush1.xpose.msra.mxu0 0.0
        %1166 = vmatprep.subr.mxu0 0.0
        %1167 = vmatpush1.xpose.msra.mxu0 0.0
        %1168 = vmatprep.subr.mxu0 0.0
        %1169 = vmatpush1.xpose.msra.mxu0 0.0
        %1170 = vmatprep.subr.mxu0 0.0
        %1171 = vmatpush1.xpose.msra.mxu0 0.0
        %1172 = vmatprep.subr.mxu0 0.0
        %1173 = vmatpush1.xpose.msra.mxu0 %v1140
        %1174 = vmatprep.subr.mxu0 0.0
        %1175 = vmatpush2.xpose.msra.mxu0 0.0
        %1176 = vmatprep.subr.mxu0 0.0
        %1177 = vmatpush2.xpose.msra.mxu0 0.0
        %1178 = vmatprep.subr.mxu0 0.0
        %1179 = vmatpush2.xpose.msra.mxu0 0.0
        %1180 = vmatprep.subr.mxu0 0.0
        %1181 = vmatpush2.xpose.msra.mxu0 0.0
        %1182 = vmatprep.subr.mxu0 0.0
        %1183 = vmatpush2.xpose.msra.mxu0 0.0
        %1184 = vmatprep.subr.mxu0 0.0
        %1185 = vmatpush2.xpose.msra.mxu0 0.0
        %1186 = vmatprep.subr.mxu0 0.0
        %1187 = vmatpush2.xpose.msra.mxu0 0.0
        %1188 = vmatprep.subr.mxu0 0.0
        %1189 = vmatpush2.xpose.msra.mxu0 0.0
        %1190 = vmatprep.subr.mxu0 0.0
        %1191 = vmatpush2.xpose.msra.mxu0 0.0
        %1192 = vmatprep.subr.mxu0 0.0
        %1193 = vmatpush2.xpose.msra.mxu0 0.0
        %1194 = vmatprep.subr.mxu0 0.0
        %1195 = vmatpush2.xpose.msra.mxu0 0.0
        %1196 = vmatprep.subr.mxu0 0.0
        %1197 = vmatpush2.xpose.msra.mxu0 0.0
        %1198 = vmatprep.subr.mxu0 0.0
        %1199 = vmatpush2.xpose.msra.mxu0 0.0
        %1200 = vmatprep.subr.mxu0 0.0
        %1201 = vmatpush2.xpose.msra.mxu0 0.0
        %1202 = vmatprep.subr.mxu0 0.0
        %1203 = vmatpush2.xpose.msra.mxu0 0.0
        %1204 = vmatprep.subr.mxu0 0.0
        %1205 = vmatpush2.xpose.msra.mxu0 0.0
        %1206 = vmatprep.mubr.f32.mxu0 0.0
        %1207 = vmatmul.mubr.f32.gmra.mxu0 %v1138
        %v1208 = vpop.f32.mrf.mxu0
        %v1209 = vadd.f32 0.0, %v1208
        %v1210 = vpop.f32.mrf.mxu0
        %1211 = vdwg.mxu0
        %1212 = vrot.lane.b32.xlu0 %v796, 120
        %v1213 = vpop.permute.xlu0 %1212
        %1214 = vrot.lane.b32.xlu0 %v792, 88
        %v1215 = vpop.permute.xlu0 %1214
        %v1216 = vsel %vm804, %v1213, 0
        %v1218 = vsel %vm804, %v1215, 0
        %1220 = vmatprep.subr.mxu0 0.0
        %1221 = vmatpush1.xpose.msra.mxu0 0.0
        %1222 = vmatprep.subr.mxu0 0.0
        %1223 = vmatpush1.xpose.msra.mxu0 0.0
        %1224 = vmatprep.subr.mxu0 0.0
        %1225 = vmatpush1.xpose.msra.mxu0 0.0
        %1226 = vmatprep.subr.mxu0 0.0
        %1227 = vmatpush1.xpose.msra.mxu0 0.0
        %1228 = vmatprep.subr.mxu0 0.0
        %1229 = vmatpush1.xpose.msra.mxu0 0.0
        %1230 = vmatprep.subr.mxu0 0.0
        %1231 = vmatpush1.xpose.msra.mxu0 0.0
        %1232 = vmatprep.subr.mxu0 0.0
        %1233 = vmatpush1.xpose.msra.mxu0 0.0
        %1234 = vmatprep.subr.mxu0 0.0
        %1235 = vmatpush1.xpose.msra.mxu0 0.0
        %1236 = vmatprep.subr.mxu0 0.0
        %1237 = vmatpush1.xpose.msra.mxu0 0.0
        %1238 = vmatprep.subr.mxu0 0.0
        %1239 = vmatpush1.xpose.msra.mxu0 0.0
        %1240 = vmatprep.subr.mxu0 0.0
        %1241 = vmatpush1.xpose.msra.mxu0 0.0
        %1242 = vmatprep.subr.mxu0 0.0
        %1243 = vmatpush1.xpose.msra.mxu0 0.0
        %1244 = vmatprep.subr.mxu0 0.0
        %1245 = vmatpush1.xpose.msra.mxu0 0.0
        %1246 = vmatprep.subr.mxu0 0.0
        %1247 = vmatpush1.xpose.msra.mxu0 0.0
        %1248 = vmatprep.subr.mxu0 0.0
        %1249 = vmatpush1.xpose.msra.mxu0 0.0
        %1250 = vmatprep.subr.mxu0 0.0
        %1251 = vmatpush1.xpose.msra.mxu0 %v1218
        %1252 = vmatprep.subr.mxu0 0.0
        %1253 = vmatpush2.xpose.msra.mxu0 0.0
        %1254 = vmatprep.subr.mxu0 0.0
        %1255 = vmatpush2.xpose.msra.mxu0 0.0
        %1256 = vmatprep.subr.mxu0 0.0
        %1257 = vmatpush2.xpose.msra.mxu0 0.0
        %1258 = vmatprep.subr.mxu0 0.0
        %1259 = vmatpush2.xpose.msra.mxu0 0.0
        %1260 = vmatprep.subr.mxu0 0.0
        %1261 = vmatpush2.xpose.msra.mxu0 0.0
        %1262 = vmatprep.subr.mxu0 0.0
        %1263 = vmatpush2.xpose.msra.mxu0 0.0
        %1264 = vmatprep.subr.mxu0 0.0
        %1265 = vmatpush2.xpose.msra.mxu0 0.0
        %1266 = vmatprep.subr.mxu0 0.0
        %1267 = vmatpush2.xpose.msra.mxu0 0.0
        %1268 = vmatprep.subr.mxu0 0.0
        %1269 = vmatpush2.xpose.msra.mxu0 0.0
        %1270 = vmatprep.subr.mxu0 0.0
        %1271 = vmatpush2.xpose.msra.mxu0 0.0
        %1272 = vmatprep.subr.mxu0 0.0
        %1273 = vmatpush2.xpose.msra.mxu0 0.0
        %1274 = vmatprep.subr.mxu0 0.0
        %1275 = vmatpush2.xpose.msra.mxu0 0.0
        %1276 = vmatprep.subr.mxu0 0.0
        %1277 = vmatpush2.xpose.msra.mxu0 0.0
        %1278 = vmatprep.subr.mxu0 0.0
        %1279 = vmatpush2.xpose.msra.mxu0 0.0
        %1280 = vmatprep.subr.mxu0 0.0
        %1281 = vmatpush2.xpose.msra.mxu0 0.0
        %1282 = vmatprep.subr.mxu0 0.0
        %1283 = vmatpush2.xpose.msra.mxu0 0.0
        %1284 = vmatprep.mubr.f32.mxu0 0.0
        %1285 = vmatmul.mubr.f32.gmra.mxu0 %v1216
        %v1286 = vpop.f32.mrf.mxu0
        %v1287 = vadd.f32 0.0, %v1286
        %v1288 = vpop.f32.mrf.mxu0
        %1289 = vdwg.mxu0
        %v1290 = vsel %vm804, %v1209, -inf
        %1291 = vmax.xlane.f32.xlu0 %v1290
        %v1292 = vpop.xlane.xlu0 %1291
        %v1293 = vsel %vm804, %v1287, -inf
        %1294 = vmax.xlane.f32.xlu0 %v1293
        %v1295 = vpop.xlane.xlu0 %1294
        %v1296 = vsub.f32 %v1209, %v1292
        %v1297 = vsub.f32 %v1287, %v1295
        %v1298 = vmul.f32 %v1296, 1.442695
        %v1299 = vpow.pop %v1298
        %v1300 = vmul.f32 %v1297, 1.442695
        %v1301 = vpow.pop %v1300
        %v1302 = vsel %vm804, %v1299, 0.0
        %1303 = vadd.xlane.f32.xlu0 %v1302
        %v1304 = vpop.xlane.xlu0 %1303
        %v1305 = vsel %vm804, %v1301, 0.0
        %1306 = vadd.xlane.f32.xlu0 %v1305
        %v1307 = vpop.xlane.xlu0 %1306
        %v1308 = vrcp.pop %v1304
        %v1309 = vrcp.pop %v1307
        %v1310 = vmul.f32 %v1299, %v1308
        %v1311 = vmul.f32 %v1301, %v1309
        %v1312 = vadd.f32 %v980, %v1310
        %v1313 = vadd.f32 %v981, %v1311
        %1314 = vrot.lane.b32.xlu0 %v787, 56
        %v1315 = vpop.permute.xlu0 %1314
        %v1318 = vsel %vm804, %v1310, 0
        %1320 = vmatprep.subr.mxu0 0.0
        %1321 = vmatpush1.msra.mxu0 0.0
        %1322 = vmatprep.subr.mxu0 0.0
        %1323 = vmatpush1.msra.mxu0 0.0
        %1324 = vmatprep.subr.mxu0 0.0
        %1325 = vmatpush1.msra.mxu0 0.0
        %1326 = vmatprep.subr.mxu0 0.0
        %1327 = vmatpush1.msra.mxu0 0.0
        %1328 = vmatprep.subr.mxu0 0.0
        %1329 = vmatpush1.msra.mxu0 0.0
        %1330 = vmatprep.subr.mxu0 0.0
        %1331 = vmatpush1.msra.mxu0 0.0
        %1332 = vmatprep.subr.mxu0 0.0
        %1333 = vmatpush1.msra.mxu0 0.0
        %1334 = vmatprep.subr.mxu0 0.0
        %1335 = vmatpush1.msra.mxu0 0.0
        %1336 = vmatprep.subr.mxu0 0.0
        %1337 = vmatpush1.msra.mxu0 0.0
        %1338 = vmatprep.subr.mxu0 0.0
        %1339 = vmatpush1.msra.mxu0 0.0
        %1340 = vmatprep.subr.mxu0 0.0
        %1341 = vmatpush1.msra.mxu0 0.0
        %1342 = vmatprep.subr.mxu0 0.0
        %1343 = vmatpush1.msra.mxu0 0.0
        %1344 = vmatprep.subr.mxu0 0.0
        %1345 = vmatpush1.msra.mxu0 0.0
        %1346 = vmatprep.subr.mxu0 0.0
        %1347 = vmatpush1.msra.mxu0 0.0
        %1348 = vmatprep.subr.mxu0 0.0
        %1349 = vmatpush1.msra.mxu0 0.0
        %1350 = vmatprep.subr.mxu0 0.0
        %1351 = vmatpush1.msra.mxu0 %v1315
        %1352 = vmatprep.subr.mxu0 0.0
        %1353 = vmatpush2.msra.mxu0 0.0
        %1354 = vmatprep.subr.mxu0 0.0
        %1355 = vmatpush2.msra.mxu0 0.0
        %1356 = vmatprep.subr.mxu0 0.0
        %1357 = vmatpush2.msra.mxu0 0.0
        %1358 = vmatprep.subr.mxu0 0.0
        %1359 = vmatpush2.msra.mxu0 0.0
        %1360 = vmatprep.subr.mxu0 0.0
        %1361 = vmatpush2.msra.mxu0 0.0
        %1362 = vmatprep.subr.mxu0 0.0
        %1363 = vmatpush2.msra.mxu0 0.0
        %1364 = vmatprep.subr.mxu0 0.0
        %1365 = vmatpush2.msra.mxu0 0.0
        %1366 = vmatprep.subr.mxu0 0.0
        %1367 = vmatpush2.msra.mxu0 0.0
        %1368 = vmatprep.subr.mxu0 0.0
        %1369 = vmatpush2.msra.mxu0 0.0
        %1370 = vmatprep.subr.mxu0 0.0
        %1371 = vmatpush2.msra.mxu0 0.0
        %1372 = vmatprep.subr.mxu0 0.0
        %1373 = vmatpush2.msra.mxu0 0.0
        %1374 = vmatprep.subr.mxu0 0.0
        %1375 = vmatpush2.msra.mxu0 0.0
        %1376 = vmatprep.subr.mxu0 0.0
        %1377 = vmatpush2.msra.mxu0 0.0
        %1378 = vmatprep.subr.mxu0 0.0
        %1379 = vmatpush2.msra.mxu0 0.0
        %1380 = vmatprep.subr.mxu0 0.0
        %1381 = vmatpush2.msra.mxu0 0.0
        %1382 = vmatprep.subr.mxu0 0.0
        %1383 = vmatpush2.msra.mxu0 0.0
        %1384 = vmatprep.mubr.f32.mxu0 0.0
        %1385 = vmatmul.mubr.f32.gmra.mxu0 %v1318
        %v1386 = vpop.f32.mrf.mxu0
        %v1387 = vadd.f32 0.0, %v1386
        %v1388 = vpop.f32.mrf.mxu0
        %1389 = vdwg.mxu0
        %1390 = vrot.lane.b32.xlu0 %v792, 56
        %v1391 = vpop.permute.xlu0 %1390
        %v1394 = vsel %vm804, %v1311, 0
        %1396 = vmatprep.subr.mxu0 0.0
        %1397 = vmatpush1.msra.mxu0 0.0
        %1398 = vmatprep.subr.mxu0 0.0
        %1399 = vmatpush1.msra.mxu0 0.0
        %1400 = vmatprep.subr.mxu0 0.0
        %1401 = vmatpush1.msra.mxu0 0.0
        %1402 = vmatprep.subr.mxu0 0.0
        %1403 = vmatpush1.msra.mxu0 0.0
        %1404 = vmatprep.subr.mxu0 0.0
        %1405 = vmatpush1.msra.mxu0 0.0
        %1406 = vmatprep.subr.mxu0 0.0
        %1407 = vmatpush1.msra.mxu0 0.0
        %1408 = vmatprep.subr.mxu0 0.0
        %1409 = vmatpush1.msra.mxu0 0.0
        %1410 = vmatprep.subr.mxu0 0.0
        %1411 = vmatpush1.msra.mxu0 0.0
        %1412 = vmatprep.subr.mxu0 0.0
        %1413 = vmatpush1.msra.mxu0 0.0
        %1414 = vmatprep.subr.mxu0 0.0
        %1415 = vmatpush1.msra.mxu0 0.0
        %1416 = vmatprep.subr.mxu0 0.0
        %1417 = vmatpush1.msra.mxu0 0.0
        %1418 = vmatprep.subr.mxu0 0.0
        %1419 = vmatpush1.msra.mxu0 0.0
        %1420 = vmatprep.subr.mxu0 0.0
        %1421 = vmatpush1.msra.mxu0 0.0
        %1422 = vmatprep.subr.mxu0 0.0
        %1423 = vmatpush1.msra.mxu0 0.0
        %1424 = vmatprep.subr.mxu0 0.0
        %1425 = vmatpush1.msra.mxu0 0.0
        %1426 = vmatprep.subr.mxu0 0.0
        %1427 = vmatpush1.msra.mxu0 %v1391
        %1428 = vmatprep.subr.mxu0 0.0
        %1429 = vmatpush2.msra.mxu0 0.0
        %1430 = vmatprep.subr.mxu0 0.0
        %1431 = vmatpush2.msra.mxu0 0.0
        %1432 = vmatprep.subr.mxu0 0.0
        %1433 = vmatpush2.msra.mxu0 0.0
        %1434 = vmatprep.subr.mxu0 0.0
        %1435 = vmatpush2.msra.mxu0 0.0
        %1436 = vmatprep.subr.mxu0 0.0
        %1437 = vmatpush2.msra.mxu0 0.0
        %1438 = vmatprep.subr.mxu0 0.0
        %1439 = vmatpush2.msra.mxu0 0.0
        %1440 = vmatprep.subr.mxu0 0.0
        %1441 = vmatpush2.msra.mxu0 0.0
        %1442 = vmatprep.subr.mxu0 0.0
        %1443 = vmatpush2.msra.mxu0 0.0
        %1444 = vmatprep.subr.mxu0 0.0
        %1445 = vmatpush2.msra.mxu0 0.0
        %1446 = vmatprep.subr.mxu0 0.0
        %1447 = vmatpush2.msra.mxu0 0.0
        %1448 = vmatprep.subr.mxu0 0.0
        %1449 = vmatpush2.msra.mxu0 0.0
        %1450 = vmatprep.subr.mxu0 0.0
        %1451 = vmatpush2.msra.mxu0 0.0
        %1452 = vmatprep.subr.mxu0 0.0
        %1453 = vmatpush2.msra.mxu0 0.0
        %1454 = vmatprep.subr.mxu0 0.0
        %1455 = vmatpush2.msra.mxu0 0.0
        %1456 = vmatprep.subr.mxu0 0.0
        %1457 = vmatpush2.msra.mxu0 0.0
        %1458 = vmatprep.subr.mxu0 0.0
        %1459 = vmatpush2.msra.mxu0 0.0
        %1460 = vmatprep.mubr.f32.mxu0 0.0
        %1461 = vmatmul.mubr.f32.gmra.mxu0 %v1394
        %v1462 = vpop.f32.mrf.mxu0
        %v1463 = vadd.f32 0.0, %v1462
        %v1464 = vpop.f32.mrf.mxu0
        %1465 = vdwg.mxu0
        %v1467 = vsel %vm804, %v1387, 0
        %v1470 = vsel %vm804, %v1463, 0
        %1472 = vmatprep.subr.mxu0 0.0
        %1473 = vmatpush1.msra.mxu0 0.0
        %1474 = vmatprep.subr.mxu0 0.0
        %1475 = vmatpush1.msra.mxu0 0.0
        %1476 = vmatprep.subr.mxu0 0.0
        %1477 = vmatpush1.msra.mxu0 0.0
        %1478 = vmatprep.subr.mxu0 0.0
        %1479 = vmatpush1.msra.mxu0 0.0
        %1480 = vmatprep.subr.mxu0 0.0
        %1481 = vmatpush1.msra.mxu0 0.0
        %1482 = vmatprep.subr.mxu0 0.0
        %1483 = vmatpush1.msra.mxu0 0.0
        %1484 = vmatprep.subr.mxu0 0.0
        %1485 = vmatpush1.msra.mxu0 0.0
        %1486 = vmatprep.subr.mxu0 0.0
        %1487 = vmatpush1.msra.mxu0 0.0
        %1488 = vmatprep.subr.mxu0 0.0
        %1489 = vmatpush1.msra.mxu0 0.0
        %1490 = vmatprep.subr.mxu0 0.0
        %1491 = vmatpush1.msra.mxu0 0.0
        %1492 = vmatprep.subr.mxu0 0.0
        %1493 = vmatpush1.msra.mxu0 0.0
        %1494 = vmatprep.subr.mxu0 0.0
        %1495 = vmatpush1.msra.mxu0 0.0
        %1496 = vmatprep.subr.mxu0 0.0
        %1497 = vmatpush1.msra.mxu0 0.0
        %1498 = vmatprep.subr.mxu0 0.0
        %1499 = vmatpush1.msra.mxu0 0.0
        %1500 = vmatprep.subr.mxu0 0.0
        %1501 = vmatpush1.msra.mxu0 0.0
        %1502 = vmatprep.subr.mxu0 0.0
        %1503 = vmatpush1.msra.mxu0 %v798
        %1504 = vmatprep.subr.mxu0 0.0
        %1505 = vmatpush2.msra.mxu0 0.0
        %1506 = vmatprep.subr.mxu0 0.0
        %1507 = vmatpush2.msra.mxu0 0.0
        %1508 = vmatprep.subr.mxu0 0.0
        %1509 = vmatpush2.msra.mxu0 0.0
        %1510 = vmatprep.subr.mxu0 0.0
        %1511 = vmatpush2.msra.mxu0 0.0
        %1512 = vmatprep.subr.mxu0 0.0
        %1513 = vmatpush2.msra.mxu0 0.0
        %1514 = vmatprep.subr.mxu0 0.0
        %1515 = vmatpush2.msra.mxu0 0.0
        %1516 = vmatprep.subr.mxu0 0.0
        %1517 = vmatpush2.msra.mxu0 0.0
        %1518 = vmatprep.subr.mxu0 0.0
        %1519 = vmatpush2.msra.mxu0 0.0
        %1520 = vmatprep.subr.mxu0 0.0
        %1521 = vmatpush2.msra.mxu0 0.0
        %1522 = vmatprep.subr.mxu0 0.0
        %1523 = vmatpush2.msra.mxu0 0.0
        %1524 = vmatprep.subr.mxu0 0.0
        %1525 = vmatpush2.msra.mxu0 0.0
        %1526 = vmatprep.subr.mxu0 0.0
        %1527 = vmatpush2.msra.mxu0 0.0
        %1528 = vmatprep.subr.mxu0 0.0
        %1529 = vmatpush2.msra.mxu0 0.0
        %1530 = vmatprep.subr.mxu0 0.0
        %1531 = vmatpush2.msra.mxu0 0.0
        %1532 = vmatprep.subr.mxu0 0.0
        %1533 = vmatpush2.msra.mxu0 0.0
        %1534 = vmatprep.subr.mxu0 0.0
        %1535 = vmatpush2.msra.mxu0 0.0
        %1536 = vmatprep.mubr.f32.mxu0 0.0
        %1537 = vmatmul.mubr.f32.gmra.mxu0 %v1467
        %v1538 = vpop.f32.mrf.mxu0
        %v1539 = vadd.f32 0.0, %v1538
        %v1540 = vpop.f32.mrf.mxu0
        %1541 = vmatprep.mubr.f32.mxu0 0.0
        %1542 = vmatmul.mubr.f32.gmra.mxu0 %v1470
        %v1543 = vpop.f32.mrf.mxu0
        %v1544 = vadd.f32 0.0, %v1543
        %v1545 = vpop.f32.mrf.mxu0
        %1546 = vdwg.mxu0
        %v1548 = vsel %vm804, %v1055, 0
        %v1551 = vsel %vm804, %v1131, 0
        %1553 = vmatprep.subr.mxu0 0.0
        %1554 = vmatpush1.msra.mxu0 0.0
        %1555 = vmatprep.subr.mxu0 0.0
        %1556 = vmatpush1.msra.mxu0 0.0
        %1557 = vmatprep.subr.mxu0 0.0
        %1558 = vmatpush1.msra.mxu0 0.0
        %1559 = vmatprep.subr.mxu0 0.0
        %1560 = vmatpush1.msra.mxu0 0.0
        %1561 = vmatprep.subr.mxu0 0.0
        %1562 = vmatpush1.msra.mxu0 0.0
        %1563 = vmatprep.subr.mxu0 0.0
        %1564 = vmatpush1.msra.mxu0 0.0
        %1565 = vmatprep.subr.mxu0 0.0
        %1566 = vmatpush1.msra.mxu0 0.0
        %1567 = vmatprep.subr.mxu0 0.0
        %1568 = vmatpush1.msra.mxu0 0.0
        %1569 = vmatprep.subr.mxu0 0.0
        %1570 = vmatpush1.msra.mxu0 0.0
        %1571 = vmatprep.subr.mxu0 0.0
        %1572 = vmatpush1.msra.mxu0 0.0
        %1573 = vmatprep.subr.mxu0 0.0
        %1574 = vmatpush1.msra.mxu0 0.0
        %1575 = vmatprep.subr.mxu0 0.0
        %1576 = vmatpush1.msra.mxu0 0.0
        %1577 = vmatprep.subr.mxu0 0.0
        %1578 = vmatpush1.msra.mxu0 0.0
        %1579 = vmatprep.subr.mxu0 0.0
        %1580 = vmatpush1.msra.mxu0 0.0
        %1581 = vmatprep.subr.mxu0 0.0
        %1582 = vmatpush1.msra.mxu0 0.0
        %1583 = vmatprep.subr.mxu0 0.0
        %1584 = vmatpush1.msra.mxu0 %v797
        %1585 = vmatprep.subr.mxu0 0.0
        %1586 = vmatpush2.msra.mxu0 0.0
        %1587 = vmatprep.subr.mxu0 0.0
        %1588 = vmatpush2.msra.mxu0 0.0
        %1589 = vmatprep.subr.mxu0 0.0
        %1590 = vmatpush2.msra.mxu0 0.0
        %1591 = vmatprep.subr.mxu0 0.0
        %1592 = vmatpush2.msra.mxu0 0.0
        %1593 = vmatprep.subr.mxu0 0.0
        %1594 = vmatpush2.msra.mxu0 0.0
        %1595 = vmatprep.subr.mxu0 0.0
        %1596 = vmatpush2.msra.mxu0 0.0
        %1597 = vmatprep.subr.mxu0 0.0
        %1598 = vmatpush2.msra.mxu0 0.0
        %1599 = vmatprep.subr.mxu0 0.0
        %1600 = vmatpush2.msra.mxu0 0.0
        %1601 = vmatprep.subr.mxu0 0.0
        %1602 = vmatpush2.msra.mxu0 0.0
        %1603 = vmatprep.subr.mxu0 0.0
        %1604 = vmatpush2.msra.mxu0 0.0
        %1605 = vmatprep.subr.mxu0 0.0
        %1606 = vmatpush2.msra.mxu0 0.0
        %1607 = vmatprep.subr.mxu0 0.0
        %1608 = vmatpush2.msra.mxu0 0.0
        %1609 = vmatprep.subr.mxu0 0.0
        %1610 = vmatpush2.msra.mxu0 0.0
        %1611 = vmatprep.subr.mxu0 0.0
        %1612 = vmatpush2.msra.mxu0 0.0
        %1613 = vmatprep.subr.mxu0 0.0
        %1614 = vmatpush2.msra.mxu0 0.0
        %1615 = vmatprep.subr.mxu0 0.0
        %1616 = vmatpush2.msra.mxu0 0.0
        %1617 = vmatprep.mubr.f32.mxu0 0.0
        %1618 = vmatmul.mubr.f32.gmra.mxu0 %v1548
        %v1619 = vpop.f32.mrf.mxu0
        %v1620 = vadd.f32 %v1539, %v1619
        %v1621 = vpop.f32.mrf.mxu0
        %1622 = vmatprep.mubr.f32.mxu0 0.0
        %1623 = vmatmul.mubr.f32.gmra.mxu0 %v1551
        %v1624 = vpop.f32.mrf.mxu0
        %v1625 = vadd.f32 %v1544, %v1624
        %v1626 = vpop.f32.mrf.mxu0
        %1627 = vdwg.mxu0
        %1628 = vrot.lane.b32.xlu0 %v795, 112
        %v1629 = vpop.permute.xlu0 %1628
        %1630 = vrot.lane.b32.xlu0 %v787, 80
        %v1631 = vpop.permute.xlu0 %1630
        %v1632 = vsel %vm804, %v1629, 0
        %v1634 = vsel %vm804, %v1631, 0
        %1636 = vmatprep.subr.mxu0 0.0
        %1637 = vmatpush1.xpose.msra.mxu0 0.0
        %1638 = vmatprep.subr.mxu0 0.0
        %1639 = vmatpush1.xpose.msra.mxu0 0.0
        %1640 = vmatprep.subr.mxu0 0.0
        %1641 = vmatpush1.xpose.msra.mxu0 0.0
        %1642 = vmatprep.subr.mxu0 0.0
        %1643 = vmatpush1.xpose.msra.mxu0 0.0
        %1644 = vmatprep.subr.mxu0 0.0
        %1645 = vmatpush1.xpose.msra.mxu0 0.0
        %1646 = vmatprep.subr.mxu0 0.0
        %1647 = vmatpush1.xpose.msra.mxu0 0.0
        %1648 = vmatprep.subr.mxu0 0.0
        %1649 = vmatpush1.xpose.msra.mxu0 0.0
        %1650 = vmatprep.subr.mxu0 0.0
        %1651 = vmatpush1.xpose.msra.mxu0 0.0
        %1652 = vmatprep.subr.mxu0 0.0
        %1653 = vmatpush1.xpose.msra.mxu0 0.0
        %1654 = vmatprep.subr.mxu0 0.0
        %1655 = vmatpush1.xpose.msra.mxu0 0.0
        %1656 = vmatprep.subr.mxu0 0.0
        %1657 = vmatpush1.xpose.msra.mxu0 0.0
        %1658 = vmatprep.subr.mxu0 0.0
        %1659 = vmatpush1.xpose.msra.mxu0 0.0
        %1660 = vmatprep.subr.mxu0 0.0
        %1661 = vmatpush1.xpose.msra.mxu0 0.0
        %1662 = vmatprep.subr.mxu0 0.0
        %1663 = vmatpush1.xpose.msra.mxu0 0.0
        %1664 = vmatprep.subr.mxu0 0.0
        %1665 = vmatpush1.xpose.msra.mxu0 0.0
        %1666 = vmatprep.subr.mxu0 0.0
        %1667 = vmatpush1.xpose.msra.mxu0 %v1634
        %1668 = vmatprep.subr.mxu0 0.0
        %1669 = vmatpush2.xpose.msra.mxu0 0.0
        %1670 = vmatprep.subr.mxu0 0.0
        %1671 = vmatpush2.xpose.msra.mxu0 0.0
        %1672 = vmatprep.subr.mxu0 0.0
        %1673 = vmatpush2.xpose.msra.mxu0 0.0
        %1674 = vmatprep.subr.mxu0 0.0
        %1675 = vmatpush2.xpose.msra.mxu0 0.0
        %1676 = vmatprep.subr.mxu0 0.0
        %1677 = vmatpush2.xpose.msra.mxu0 0.0
        %1678 = vmatprep.subr.mxu0 0.0
        %1679 = vmatpush2.xpose.msra.mxu0 0.0
        %1680 = vmatprep.subr.mxu0 0.0
        %1681 = vmatpush2.xpose.msra.mxu0 0.0
        %1682 = vmatprep.subr.mxu0 0.0
        %1683 = vmatpush2.xpose.msra.mxu0 0.0
        %1684 = vmatprep.subr.mxu0 0.0
        %1685 = vmatpush2.xpose.msra.mxu0 0.0
        %1686 = vmatprep.subr.mxu0 0.0
        %1687 = vmatpush2.xpose.msra.mxu0 0.0
        %1688 = vmatprep.subr.mxu0 0.0
        %1689 = vmatpush2.xpose.msra.mxu0 0.0
        %1690 = vmatprep.subr.mxu0 0.0
        %1691 = vmatpush2.xpose.msra.mxu0 0.0
        %1692 = vmatprep.subr.mxu0 0.0
        %1693 = vmatpush2.xpose.msra.mxu0 0.0
        %1694 = vmatprep.subr.mxu0 0.0
        %1695 = vmatpush2.xpose.msra.mxu0 0.0
        %1696 = vmatprep.subr.mxu0 0.0
        %1697 = vmatpush2.xpose.msra.mxu0 0.0
        %1698 = vmatprep.subr.mxu0 0.0
        %1699 = vmatpush2.xpose.msra.mxu0 0.0
        %1700 = vmatprep.mubr.f32.mxu0 0.0
        %1701 = vmatmul.mubr.f32.gmra.mxu0 %v1632
        %v1702 = vpop.f32.mrf.mxu0
        %v1703 = vadd.f32 0.0, %v1702
        %v1704 = vpop.f32.mrf.mxu0
        %1705 = vdwg.mxu0
        %1706 = vrot.lane.b32.xlu0 %v796, 112
        %v1707 = vpop.permute.xlu0 %1706
        %1708 = vrot.lane.b32.xlu0 %v792, 80
        %v1709 = vpop.permute.xlu0 %1708
        %v1710 = vsel %vm804, %v1707, 0
        %v1712 = vsel %vm804, %v1709, 0
        %1714 = vmatprep.subr.mxu0 0.0
        %1715 = vmatpush1.xpose.msra.mxu0 0.0
        %1716 = vmatprep.subr.mxu0 0.0
        %1717 = vmatpush1.xpose.msra.mxu0 0.0
        %1718 = vmatprep.subr.mxu0 0.0
        %1719 = vmatpush1.xpose.msra.mxu0 0.0
        %1720 = vmatprep.subr.mxu0 0.0
        %1721 = vmatpush1.xpose.msra.mxu0 0.0
        %1722 = vmatprep.subr.mxu0 0.0
        %1723 = vmatpush1.xpose.msra.mxu0 0.0
        %1724 = vmatprep.subr.mxu0 0.0
        %1725 = vmatpush1.xpose.msra.mxu0 0.0
        %1726 = vmatprep.subr.mxu0 0.0
        %1727 = vmatpush1.xpose.msra.mxu0 0.0
        %1728 = vmatprep.subr.mxu0 0.0
        %1729 = vmatpush1.xpose.msra.mxu0 0.0
        %1730 = vmatprep.subr.mxu0 0.0
        %1731 = vmatpush1.xpose.msra.mxu0 0.0
        %1732 = vmatprep.subr.mxu0 0.0
        %1733 = vmatpush1.xpose.msra.mxu0 0.0
        %1734 = vmatprep.subr.mxu0 0.0
        %1735 = vmatpush1.xpose.msra.mxu0 0.0
        %1736 = vmatprep.subr.mxu0 0.0
        %1737 = vmatpush1.xpose.msra.mxu0 0.0
        %1738 = vmatprep.subr.mxu0 0.0
        %1739 = vmatpush1.xpose.msra.mxu0 0.0
        %1740 = vmatprep.subr.mxu0 0.0
        %1741 = vmatpush1.xpose.msra.mxu0 0.0
        %1742 = vmatprep.subr.mxu0 0.0
        %1743 = vmatpush1.xpose.msra.mxu0 0.0
        %1744 = vmatprep.subr.mxu0 0.0
        %1745 = vmatpush1.xpose.msra.mxu0 %v1712
        %1746 = vmatprep.subr.mxu0 0.0
        %1747 = vmatpush2.xpose.msra.mxu0 0.0
        %1748 = vmatprep.subr.mxu0 0.0
        %1749 = vmatpush2.xpose.msra.mxu0 0.0
        %1750 = vmatprep.subr.mxu0 0.0
        %1751 = vmatpush2.xpose.msra.mxu0 0.0
        %1752 = vmatprep.subr.mxu0 0.0
        %1753 = vmatpush2.xpose.msra.mxu0 0.0
        %1754 = vmatprep.subr.mxu0 0.0
        %1755 = vmatpush2.xpose.msra.mxu0 0.0
        %1756 = vmatprep.subr.mxu0 0.0
        %1757 = vmatpush2.xpose.msra.mxu0 0.0
        %1758 = vmatprep.subr.mxu0 0.0
        %1759 = vmatpush2.xpose.msra.mxu0 0.0
        %1760 = vmatprep.subr.mxu0 0.0
        %1761 = vmatpush2.xpose.msra.mxu0 0.0
        %1762 = vmatprep.subr.mxu0 0.0
        %1763 = vmatpush2.xpose.msra.mxu0 0.0
        %1764 = vmatprep.subr.mxu0 0.0
        %1765 = vmatpush2.xpose.msra.mxu0 0.0
        %1766 = vmatprep.subr.mxu0 0.0
        %1767 = vmatpush2.xpose.msra.mxu0 0.0
        %1768 = vmatprep.subr.mxu0 0.0
        %1769 = vmatpush2.xpose.msra.mxu0 0.0
        %1770 = vmatprep.subr.mxu0 0.0
        %1771 = vmatpush2.xpose.msra.mxu0 0.0
        %1772 = vmatprep.subr.mxu0 0.0
        %1773 = vmatpush2.xpose.msra.mxu0 0.0
        %1774 = vmatprep.subr.mxu0 0.0
        %1775 = vmatpush2.xpose.msra.mxu0 0.0
        %1776 = vmatprep.subr.mxu0 0.0
        %1777 = vmatpush2.xpose.msra.mxu0 0.0
        %1778 = vmatprep.mubr.f32.mxu0 0.0
        %1779 = vmatmul.mubr.f32.gmra.mxu0 %v1710
        %v1780 = vpop.f32.mrf.mxu0
        %v1781 = vadd.f32 0.0, %v1780
        %v1782 = vpop.f32.mrf.mxu0
        %1783 = vdwg.mxu0
        %v1784 = vsel %vm804, %v1703, -inf
        %1785 = vmax.xlane.f32.xlu0 %v1784
        %v1786 = vpop.xlane.xlu0 %1785
        %v1787 = vsel %vm804, %v1781, -inf
        %1788 = vmax.xlane.f32.xlu0 %v1787
        %v1789 = vpop.xlane.xlu0 %1788
        %v1790 = vsub.f32 %v1703, %v1786
        %v1791 = vsub.f32 %v1781, %v1789
        %v1792 = vmul.f32 %v1790, 1.442695
        %v1793 = vpow.pop %v1792
        %v1794 = vmul.f32 %v1791, 1.442695
        %v1795 = vpow.pop %v1794
        %v1796 = vsel %vm804, %v1793, 0.0
        %1797 = vadd.xlane.f32.xlu0 %v1796
        %v1798 = vpop.xlane.xlu0 %1797
        %v1799 = vsel %vm804, %v1795, 0.0
        %1800 = vadd.xlane.f32.xlu0 %v1799
        %v1801 = vpop.xlane.xlu0 %1800
        %v1802 = vrcp.pop %v1798
        %v1803 = vrcp.pop %v1801
        %v1804 = vmul.f32 %v1793, %v1802
        %v1805 = vmul.f32 %v1795, %v1803
        %v1806 = vadd.f32 %v1312, %v1804
        %v1807 = vadd.f32 %v1313, %v1805
        %1808 = vrot.lane.b32.xlu0 %v787, 48
        %v1809 = vpop.permute.xlu0 %1808
        %v1812 = vsel %vm804, %v1804, 0
        %1814 = vmatprep.subr.mxu0 0.0
        %1815 = vmatpush1.msra.mxu0 0.0
        %1816 = vmatprep.subr.mxu0 0.0
        %1817 = vmatpush1.msra.mxu0 0.0
        %1818 = vmatprep.subr.mxu0 0.0
        %1819 = vmatpush1.msra.mxu0 0.0
        %1820 = vmatprep.subr.mxu0 0.0
        %1821 = vmatpush1.msra.mxu0 0.0
        %1822 = vmatprep.subr.mxu0 0.0
        %1823 = vmatpush1.msra.mxu0 0.0
        %1824 = vmatprep.subr.mxu0 0.0
        %1825 = vmatpush1.msra.mxu0 0.0
        %1826 = vmatprep.subr.mxu0 0.0
        %1827 = vmatpush1.msra.mxu0 0.0
        %1828 = vmatprep.subr.mxu0 0.0
        %1829 = vmatpush1.msra.mxu0 0.0
        %1830 = vmatprep.subr.mxu0 0.0
        %1831 = vmatpush1.msra.mxu0 0.0
        %1832 = vmatprep.subr.mxu0 0.0
        %1833 = vmatpush1.msra.mxu0 0.0
        %1834 = vmatprep.subr.mxu0 0.0
        %1835 = vmatpush1.msra.mxu0 0.0
        %1836 = vmatprep.subr.mxu0 0.0
        %1837 = vmatpush1.msra.mxu0 0.0
        %1838 = vmatprep.subr.mxu0 0.0
        %1839 = vmatpush1.msra.mxu0 0.0
        %1840 = vmatprep.subr.mxu0 0.0
        %1841 = vmatpush1.msra.mxu0 0.0
        %1842 = vmatprep.subr.mxu0 0.0
        %1843 = vmatpush1.msra.mxu0 0.0
        %1844 = vmatprep.subr.mxu0 0.0
        %1845 = vmatpush1.msra.mxu0 %v1809
        %1846 = vmatprep.subr.mxu0 0.0
        %1847 = vmatpush2.msra.mxu0 0.0
        %1848 = vmatprep.subr.mxu0 0.0
        %1849 = vmatpush2.msra.mxu0 0.0
        %1850 = vmatprep.subr.mxu0 0.0
        %1851 = vmatpush2.msra.mxu0 0.0
        %1852 = vmatprep.subr.mxu0 0.0
        %1853 = vmatpush2.msra.mxu0 0.0
        %1854 = vmatprep.subr.mxu0 0.0
        %1855 = vmatpush2.msra.mxu0 0.0
        %1856 = vmatprep.subr.mxu0 0.0
        %1857 = vmatpush2.msra.mxu0 0.0
        %1858 = vmatprep.subr.mxu0 0.0
        %1859 = vmatpush2.msra.mxu0 0.0
        %1860 = vmatprep.subr.mxu0 0.0
        %1861 = vmatpush2.msra.mxu0 0.0
        %1862 = vmatprep.subr.mxu0 0.0
        %1863 = vmatpush2.msra.mxu0 0.0
        %1864 = vmatprep.subr.mxu0 0.0
        %1865 = vmatpush2.msra.mxu0 0.0
        %1866 = vmatprep.subr.mxu0 0.0
        %1867 = vmatpush2.msra.mxu0 0.0
        %1868 = vmatprep.subr.mxu0 0.0
        %1869 = vmatpush2.msra.mxu0 0.0
        %1870 = vmatprep.subr.mxu0 0.0
        %1871 = vmatpush2.msra.mxu0 0.0
        %1872 = vmatprep.subr.mxu0 0.0
        %1873 = vmatpush2.msra.mxu0 0.0
        %1874 = vmatprep.subr.mxu0 0.0
        %1875 = vmatpush2.msra.mxu0 0.0
        %1876 = vmatprep.subr.mxu0 0.0
        %1877 = vmatpush2.msra.mxu0 0.0
        %1878 = vmatprep.mubr.f32.mxu0 0.0
        %1879 = vmatmul.mubr.f32.gmra.mxu0 %v1812
        %v1880 = vpop.f32.mrf.mxu0
        %v1881 = vadd.f32 0.0, %v1880
        %v1882 = vpop.f32.mrf.mxu0
        %1883 = vdwg.mxu0
        %1884 = vrot.lane.b32.xlu0 %v792, 48
        %v1885 = vpop.permute.xlu0 %1884
        %v1888 = vsel %vm804, %v1805, 0
        %1890 = vmatprep.subr.mxu0 0.0
        %1891 = vmatpush1.msra.mxu0 0.0
        %1892 = vmatprep.subr.mxu0 0.0
        %1893 = vmatpush1.msra.mxu0 0.0
        %1894 = vmatprep.subr.mxu0 0.0
        %1895 = vmatpush1.msra.mxu0 0.0
        %1896 = vmatprep.subr.mxu0 0.0
        %1897 = vmatpush1.msra.mxu0 0.0
        %1898 = vmatprep.subr.mxu0 0.0
        %1899 = vmatpush1.msra.mxu0 0.0
        %1900 = vmatprep.subr.mxu0 0.0
        %1901 = vmatpush1.msra.mxu0 0.0
        %1902 = vmatprep.subr.mxu0 0.0
        %1903 = vmatpush1.msra.mxu0 0.0
        %1904 = vmatprep.subr.mxu0 0.0
        %1905 = vmatpush1.msra.mxu0 0.0
        %1906 = vmatprep.subr.mxu0 0.0
        %1907 = vmatpush1.msra.mxu0 0.0
        %1908 = vmatprep.subr.mxu0 0.0
        %1909 = vmatpush1.msra.mxu0 0.0
        %1910 = vmatprep.subr.mxu0 0.0
        %1911 = vmatpush1.msra.mxu0 0.0
        %1912 = vmatprep.subr.mxu0 0.0
        %1913 = vmatpush1.msra.mxu0 0.0
        %1914 = vmatprep.subr.mxu0 0.0
        %1915 = vmatpush1.msra.mxu0 0.0
        %1916 = vmatprep.subr.mxu0 0.0
        %1917 = vmatpush1.msra.mxu0 0.0
        %1918 = vmatprep.subr.mxu0 0.0
        %1919 = vmatpush1.msra.mxu0 0.0
        %1920 = vmatprep.subr.mxu0 0.0
        %1921 = vmatpush1.msra.mxu0 %v1885
        %1922 = vmatprep.subr.mxu0 0.0
        %1923 = vmatpush2.msra.mxu0 0.0
        %1924 = vmatprep.subr.mxu0 0.0
        %1925 = vmatpush2.msra.mxu0 0.0
        %1926 = vmatprep.subr.mxu0 0.0
        %1927 = vmatpush2.msra.mxu0 0.0
        %1928 = vmatprep.subr.mxu0 0.0
        %1929 = vmatpush2.msra.mxu0 0.0
        %1930 = vmatprep.subr.mxu0 0.0
        %1931 = vmatpush2.msra.mxu0 0.0
        %1932 = vmatprep.subr.mxu0 0.0
        %1933 = vmatpush2.msra.mxu0 0.0
        %1934 = vmatprep.subr.mxu0 0.0
        %1935 = vmatpush2.msra.mxu0 0.0
        %1936 = vmatprep.subr.mxu0 0.0
        %1937 = vmatpush2.msra.mxu0 0.0
        %1938 = vmatprep.subr.mxu0 0.0
        %1939 = vmatpush2.msra.mxu0 0.0
        %1940 = vmatprep.subr.mxu0 0.0
        %1941 = vmatpush2.msra.mxu0 0.0
        %1942 = vmatprep.subr.mxu0 0.0
        %1943 = vmatpush2.msra.mxu0 0.0
        %1944 = vmatprep.subr.mxu0 0.0
        %1945 = vmatpush2.msra.mxu0 0.0
        %1946 = vmatprep.subr.mxu0 0.0
        %1947 = vmatpush2.msra.mxu0 0.0
        %1948 = vmatprep.subr.mxu0 0.0
        %1949 = vmatpush2.msra.mxu0 0.0
        %1950 = vmatprep.subr.mxu0 0.0
        %1951 = vmatpush2.msra.mxu0 0.0
        %1952 = vmatprep.subr.mxu0 0.0
        %1953 = vmatpush2.msra.mxu0 0.0
        %1954 = vmatprep.mubr.f32.mxu0 0.0
        %1955 = vmatmul.mubr.f32.gmra.mxu0 %v1888
        %v1956 = vpop.f32.mrf.mxu0
        %v1957 = vadd.f32 0.0, %v1956
        %v1958 = vpop.f32.mrf.mxu0
        %1959 = vdwg.mxu0
        %v1961 = vsel %vm804, %v1881, 0
        %v1964 = vsel %vm804, %v1957, 0
        %1966 = vmatprep.subr.mxu0 0.0
        %1967 = vmatpush1.msra.mxu0 0.0
        %1968 = vmatprep.subr.mxu0 0.0
        %1969 = vmatpush1.msra.mxu0 0.0
        %1970 = vmatprep.subr.mxu0 0.0
        %1971 = vmatpush1.msra.mxu0 0.0
        %1972 = vmatprep.subr.mxu0 0.0
        %1973 = vmatpush1.msra.mxu0 0.0
        %1974 = vmatprep.subr.mxu0 0.0
        %1975 = vmatpush1.msra.mxu0 0.0
        %1976 = vmatprep.subr.mxu0 0.0
        %1977 = vmatpush1.msra.mxu0 0.0
        %1978 = vmatprep.subr.mxu0 0.0
        %1979 = vmatpush1.msra.mxu0 0.0
        %1980 = vmatprep.subr.mxu0 0.0
        %1981 = vmatpush1.msra.mxu0 0.0
        %1982 = vmatprep.subr.mxu0 0.0
        %1983 = vmatpush1.msra.mxu0 0.0
        %1984 = vmatprep.subr.mxu0 0.0
        %1985 = vmatpush1.msra.mxu0 0.0
        %1986 = vmatprep.subr.mxu0 0.0
        %1987 = vmatpush1.msra.mxu0 0.0
        %1988 = vmatprep.subr.mxu0 0.0
        %1989 = vmatpush1.msra.mxu0 0.0
        %1990 = vmatprep.subr.mxu0 0.0
        %1991 = vmatpush1.msra.mxu0 0.0
        %1992 = vmatprep.subr.mxu0 0.0
        %1993 = vmatpush1.msra.mxu0 0.0
        %1994 = vmatprep.subr.mxu0 0.0
        %1995 = vmatpush1.msra.mxu0 0.0
        %1996 = vmatprep.subr.mxu0 0.0
        %1997 = vmatpush1.msra.mxu0 %v799
        %1998 = vmatprep.subr.mxu0 0.0
        %1999 = vmatpush2.msra.mxu0 0.0
        %2000 = vmatprep.subr.mxu0 0.0
        %2001 = vmatpush2.msra.mxu0 0.0
        %2002 = vmatprep.subr.mxu0 0.0
        %2003 = vmatpush2.msra.mxu0 0.0
        %2004 = vmatprep.subr.mxu0 0.0
        %2005 = vmatpush2.msra.mxu0 0.0
        %2006 = vmatprep.subr.mxu0 0.0
        %2007 = vmatpush2.msra.mxu0 0.0
        %2008 = vmatprep.subr.mxu0 0.0
        %2009 = vmatpush2.msra.mxu0 0.0
        %2010 = vmatprep.subr.mxu0 0.0
        %2011 = vmatpush2.msra.mxu0 0.0
        %2012 = vmatprep.subr.mxu0 0.0
        %2013 = vmatpush2.msra.mxu0 0.0
        %2014 = vmatprep.subr.mxu0 0.0
        %2015 = vmatpush2.msra.mxu0 0.0
        %2016 = vmatprep.subr.mxu0 0.0
        %2017 = vmatpush2.msra.mxu0 0.0
        %2018 = vmatprep.subr.mxu0 0.0
        %2019 = vmatpush2.msra.mxu0 0.0
        %2020 = vmatprep.subr.mxu0 0.0
        %2021 = vmatpush2.msra.mxu0 0.0
        %2022 = vmatprep.subr.mxu0 0.0
        %2023 = vmatpush2.msra.mxu0 0.0
        %2024 = vmatprep.subr.mxu0 0.0
        %2025 = vmatpush2.msra.mxu0 0.0
        %2026 = vmatprep.subr.mxu0 0.0
        %2027 = vmatpush2.msra.mxu0 0.0
        %2028 = vmatprep.subr.mxu0 0.0
        %2029 = vmatpush2.msra.mxu0 0.0
        %2030 = vmatprep.mubr.f32.mxu0 0.0
        %2031 = vmatmul.mubr.f32.gmra.mxu0 %v1961
        %v2032 = vpop.f32.mrf.mxu0
        %v2033 = vadd.f32 0.0, %v2032
        %v2034 = vpop.f32.mrf.mxu0
        %2035 = vmatprep.mubr.f32.mxu0 0.0
        %2036 = vmatmul.mubr.f32.gmra.mxu0 %v1964
        %v2037 = vpop.f32.mrf.mxu0
        %v2038 = vadd.f32 0.0, %v2037
        %v2039 = vpop.f32.mrf.mxu0
        %2040 = vdwg.mxu0
        %v2041 = vadd.f32 %v1620, %v2033
        %v2042 = vadd.f32 %v1625, %v2038
        %2043 = vrot.lane.b32.xlu0 %v795, 104
        %v2044 = vpop.permute.xlu0 %2043
        %2045 = vrot.lane.b32.xlu0 %v787, 72
        %v2046 = vpop.permute.xlu0 %2045
        %v2047 = vsel %vm804, %v2044, 0
        %v2049 = vsel %vm804, %v2046, 0
        %2051 = vmatprep.subr.mxu0 0.0
        %2052 = vmatpush1.xpose.msra.mxu0 0.0
        %2053 = vmatprep.subr.mxu0 0.0
        %2054 = vmatpush1.xpose.msra.mxu0 0.0
        %2055 = vmatprep.subr.mxu0 0.0
        %2056 = vmatpush1.xpose.msra.mxu0 0.0
        %2057 = vmatprep.subr.mxu0 0.0
        %2058 = vmatpush1.xpose.msra.mxu0 0.0
        %2059 = vmatprep.subr.mxu0 0.0
        %2060 = vmatpush1.xpose.msra.mxu0 0.0
        %2061 = vmatprep.subr.mxu0 0.0
        %2062 = vmatpush1.xpose.msra.mxu0 0.0
        %2063 = vmatprep.subr.mxu0 0.0
        %2064 = vmatpush1.xpose.msra.mxu0 0.0
        %2065 = vmatprep.subr.mxu0 0.0
        %2066 = vmatpush1.xpose.msra.mxu0 0.0
        %2067 = vmatprep.subr.mxu0 0.0
        %2068 = vmatpush1.xpose.msra.mxu0 0.0
        %2069 = vmatprep.subr.mxu0 0.0
        %2070 = vmatpush1.xpose.msra.mxu0 0.0
        %2071 = vmatprep.subr.mxu0 0.0
        %2072 = vmatpush1.xpose.msra.mxu0 0.0
        %2073 = vmatprep.subr.mxu0 0.0
        %2074 = vmatpush1.xpose.msra.mxu0 0.0
        %2075 = vmatprep.subr.mxu0 0.0
        %2076 = vmatpush1.xpose.msra.mxu0 0.0
        %2077 = vmatprep.subr.mxu0 0.0
        %2078 = vmatpush1.xpose.msra.mxu0 0.0
        %2079 = vmatprep.subr.mxu0 0.0
        %2080 = vmatpush1.xpose.msra.mxu0 0.0
        %2081 = vmatprep.subr.mxu0 0.0
        %2082 = vmatpush1.xpose.msra.mxu0 %v2049
        %2083 = vmatprep.subr.mxu0 0.0
        %2084 = vmatpush2.xpose.msra.mxu0 0.0
        %2085 = vmatprep.subr.mxu0 0.0
        %2086 = vmatpush2.xpose.msra.mxu0 0.0
        %2087 = vmatprep.subr.mxu0 0.0
        %2088 = vmatpush2.xpose.msra.mxu0 0.0
        %2089 = vmatprep.subr.mxu0 0.0
        %2090 = vmatpush2.xpose.msra.mxu0 0.0
        %2091 = vmatprep.subr.mxu0 0.0
        %2092 = vmatpush2.xpose.msra.mxu0 0.0
        %2093 = vmatprep.subr.mxu0 0.0
        %2094 = vmatpush2.xpose.msra.mxu0 0.0
        %2095 = vmatprep.subr.mxu0 0.0
        %2096 = vmatpush2.xpose.msra.mxu0 0.0
        %2097 = vmatprep.subr.mxu0 0.0
        %2098 = vmatpush2.xpose.msra.mxu0 0.0
        %2099 = vmatprep.subr.mxu0 0.0
        %2100 = vmatpush2.xpose.msra.mxu0 0.0
        %2101 = vmatprep.subr.mxu0 0.0
        %2102 = vmatpush2.xpose.msra.mxu0 0.0
        %2103 = vmatprep.subr.mxu0 0.0
        %2104 = vmatpush2.xpose.msra.mxu0 0.0
        %2105 = vmatprep.subr.mxu0 0.0
        %2106 = vmatpush2.xpose.msra.mxu0 0.0
        %2107 = vmatprep.subr.mxu0 0.0
        %2108 = vmatpush2.xpose.msra.mxu0 0.0
        %2109 = vmatprep.subr.mxu0 0.0
        %2110 = vmatpush2.xpose.msra.mxu0 0.0
        %2111 = vmatprep.subr.mxu0 0.0
        %2112 = vmatpush2.xpose.msra.mxu0 0.0
        %2113 = vmatprep.subr.mxu0 0.0
        %2114 = vmatpush2.xpose.msra.mxu0 0.0
        %2115 = vmatprep.mubr.f32.mxu0 0.0
        %2116 = vmatmul.mubr.f32.gmra.mxu0 %v2047
        %v2117 = vpop.f32.mrf.mxu0
        %v2118 = vadd.f32 0.0, %v2117
        %v2119 = vpop.f32.mrf.mxu0
        %2120 = vdwg.mxu0
        %2121 = vrot.lane.b32.xlu0 %v796, 104
        %v2122 = vpop.permute.xlu0 %2121
        %2123 = vrot.lane.b32.xlu0 %v792, 72
        %v2124 = vpop.permute.xlu0 %2123
        %v2125 = vsel %vm804, %v2122, 0
        %v2127 = vsel %vm804, %v2124, 0
        %2129 = vmatprep.subr.mxu0 0.0
        %2130 = vmatpush1.xpose.msra.mxu0 0.0
        %2131 = vmatprep.subr.mxu0 0.0
        %2132 = vmatpush1.xpose.msra.mxu0 0.0
        %2133 = vmatprep.subr.mxu0 0.0
        %2134 = vmatpush1.xpose.msra.mxu0 0.0
        %2135 = vmatprep.subr.mxu0 0.0
        %2136 = vmatpush1.xpose.msra.mxu0 0.0
        %2137 = vmatprep.subr.mxu0 0.0
        %2138 = vmatpush1.xpose.msra.mxu0 0.0
        %2139 = vmatprep.subr.mxu0 0.0
        %2140 = vmatpush1.xpose.msra.mxu0 0.0
        %2141 = vmatprep.subr.mxu0 0.0
        %2142 = vmatpush1.xpose.msra.mxu0 0.0
        %2143 = vmatprep.subr.mxu0 0.0
        %2144 = vmatpush1.xpose.msra.mxu0 0.0
        %2145 = vmatprep.subr.mxu0 0.0
        %2146 = vmatpush1.xpose.msra.mxu0 0.0
        %2147 = vmatprep.subr.mxu0 0.0
        %2148 = vmatpush1.xpose.msra.mxu0 0.0
        %2149 = vmatprep.subr.mxu0 0.0
        %2150 = vmatpush1.xpose.msra.mxu0 0.0
        %2151 = vmatprep.subr.mxu0 0.0
        %2152 = vmatpush1.xpose.msra.mxu0 0.0
        %2153 = vmatprep.subr.mxu0 0.0
        %2154 = vmatpush1.xpose.msra.mxu0 0.0
        %2155 = vmatprep.subr.mxu0 0.0
        %2156 = vmatpush1.xpose.msra.mxu0 0.0
        %2157 = vmatprep.subr.mxu0 0.0
        %2158 = vmatpush1.xpose.msra.mxu0 0.0
        %2159 = vmatprep.subr.mxu0 0.0
        %2160 = vmatpush1.xpose.msra.mxu0 %v2127
        %2161 = vmatprep.subr.mxu0 0.0
        %2162 = vmatpush2.xpose.msra.mxu0 0.0
        %2163 = vmatprep.subr.mxu0 0.0
        %2164 = vmatpush2.xpose.msra.mxu0 0.0
        %2165 = vmatprep.subr.mxu0 0.0
        %2166 = vmatpush2.xpose.msra.mxu0 0.0
        %2167 = vmatprep.subr.mxu0 0.0
        %2168 = vmatpush2.xpose.msra.mxu0 0.0
        %2169 = vmatprep.subr.mxu0 0.0
        %2170 = vmatpush2.xpose.msra.mxu0 0.0
        %2171 = vmatprep.subr.mxu0 0.0
        %2172 = vmatpush2.xpose.msra.mxu0 0.0
        %2173 = vmatprep.subr.mxu0 0.0
        %2174 = vmatpush2.xpose.msra.mxu0 0.0
        %2175 = vmatprep.subr.mxu0 0.0
        %2176 = vmatpush2.xpose.msra.mxu0 0.0
        %2177 = vmatprep.subr.mxu0 0.0
        %2178 = vmatpush2.xpose.msra.mxu0 0.0
        %2179 = vmatprep.subr.mxu0 0.0
        %2180 = vmatpush2.xpose.msra.mxu0 0.0
        %2181 = vmatprep.subr.mxu0 0.0
        %2182 = vmatpush2.xpose.msra.mxu0 0.0
        %2183 = vmatprep.subr.mxu0 0.0
        %2184 = vmatpush2.xpose.msra.mxu0 0.0
        %2185 = vmatprep.subr.mxu0 0.0
        %2186 = vmatpush2.xpose.msra.mxu0 0.0
        %2187 = vmatprep.subr.mxu0 0.0
        %2188 = vmatpush2.xpose.msra.mxu0 0.0
        %2189 = vmatprep.subr.mxu0 0.0
        %2190 = vmatpush2.xpose.msra.mxu0 0.0
        %2191 = vmatprep.subr.mxu0 0.0
        %2192 = vmatpush2.xpose.msra.mxu0 0.0
        %2193 = vmatprep.mubr.f32.mxu0 0.0
        %2194 = vmatmul.mubr.f32.gmra.mxu0 %v2125
        %v2195 = vpop.f32.mrf.mxu0
        %v2196 = vadd.f32 0.0, %v2195
        %v2197 = vpop.f32.mrf.mxu0
        %2198 = vdwg.mxu0
        %v2199 = vsel %vm804, %v2118, -inf
        %2200 = vmax.xlane.f32.xlu0 %v2199
        %v2201 = vpop.xlane.xlu0 %2200
        %v2202 = vsel %vm804, %v2196, -inf
        %2203 = vmax.xlane.f32.xlu0 %v2202
        %v2204 = vpop.xlane.xlu0 %2203
        %v2205 = vsub.f32 %v2118, %v2201
        %v2206 = vsub.f32 %v2196, %v2204
        %v2207 = vmul.f32 %v2205, 1.442695
        %v2208 = vpow.pop %v2207
        %v2209 = vmul.f32 %v2206, 1.442695
        %v2210 = vpow.pop %v2209
        %v2211 = vsel %vm804, %v2208, 0.0
        %2212 = vadd.xlane.f32.xlu0 %v2211
        %v2213 = vpop.xlane.xlu0 %2212
        %v2214 = vsel %vm804, %v2210, 0.0
        %2215 = vadd.xlane.f32.xlu0 %v2214
        %v2216 = vpop.xlane.xlu0 %2215
        %v2217 = vrcp.pop %v2213
        %v2218 = vrcp.pop %v2216
        %v2219 = vmul.f32 %v2208, %v2217
        %v2220 = vmul.f32 %v2210, %v2218
        %v2221 = vadd.f32 %v1806, %v2219
        %v2222 = vadd.f32 %v1807, %v2220
        %2223 = vrot.lane.b32.xlu0 %v787, 40
        %v2224 = vpop.permute.xlu0 %2223
        %v2227 = vsel %vm804, %v2219, 0
        %2229 = vmatprep.subr.mxu0 0.0
        %2230 = vmatpush1.msra.mxu0 0.0
        %2231 = vmatprep.subr.mxu0 0.0
        %2232 = vmatpush1.msra.mxu0 0.0
        %2233 = vmatprep.subr.mxu0 0.0
        %2234 = vmatpush1.msra.mxu0 0.0
        %2235 = vmatprep.subr.mxu0 0.0
        %2236 = vmatpush1.msra.mxu0 0.0
        %2237 = vmatprep.subr.mxu0 0.0
        %2238 = vmatpush1.msra.mxu0 0.0
        %2239 = vmatprep.subr.mxu0 0.0
        %2240 = vmatpush1.msra.mxu0 0.0
        %2241 = vmatprep.subr.mxu0 0.0
        %2242 = vmatpush1.msra.mxu0 0.0
        %2243 = vmatprep.subr.mxu0 0.0
        %2244 = vmatpush1.msra.mxu0 0.0
        %2245 = vmatprep.subr.mxu0 0.0
        %2246 = vmatpush1.msra.mxu0 0.0
        %2247 = vmatprep.subr.mxu0 0.0
        %2248 = vmatpush1.msra.mxu0 0.0
        %2249 = vmatprep.subr.mxu0 0.0
        %2250 = vmatpush1.msra.mxu0 0.0
        %2251 = vmatprep.subr.mxu0 0.0
        %2252 = vmatpush1.msra.mxu0 0.0
        %2253 = vmatprep.subr.mxu0 0.0
        %2254 = vmatpush1.msra.mxu0 0.0
        %2255 = vmatprep.subr.mxu0 0.0
        %2256 = vmatpush1.msra.mxu0 0.0
        %2257 = vmatprep.subr.mxu0 0.0
        %2258 = vmatpush1.msra.mxu0 0.0
        %2259 = vmatprep.subr.mxu0 0.0
        %2260 = vmatpush1.msra.mxu0 %v2224
        %2261 = vmatprep.subr.mxu0 0.0
        %2262 = vmatpush2.msra.mxu0 0.0
        %2263 = vmatprep.subr.mxu0 0.0
        %2264 = vmatpush2.msra.mxu0 0.0
        %2265 = vmatprep.subr.mxu0 0.0
        %2266 = vmatpush2.msra.mxu0 0.0
        %2267 = vmatprep.subr.mxu0 0.0
        %2268 = vmatpush2.msra.mxu0 0.0
        %2269 = vmatprep.subr.mxu0 0.0
        %2270 = vmatpush2.msra.mxu0 0.0
        %2271 = vmatprep.subr.mxu0 0.0
        %2272 = vmatpush2.msra.mxu0 0.0
        %2273 = vmatprep.subr.mxu0 0.0
        %2274 = vmatpush2.msra.mxu0 0.0
        %2275 = vmatprep.subr.mxu0 0.0
        %2276 = vmatpush2.msra.mxu0 0.0
        %2277 = vmatprep.subr.mxu0 0.0
        %2278 = vmatpush2.msra.mxu0 0.0
        %2279 = vmatprep.subr.mxu0 0.0
        %2280 = vmatpush2.msra.mxu0 0.0
        %2281 = vmatprep.subr.mxu0 0.0
        %2282 = vmatpush2.msra.mxu0 0.0
        %2283 = vmatprep.subr.mxu0 0.0
        %2284 = vmatpush2.msra.mxu0 0.0
        %2285 = vmatprep.subr.mxu0 0.0
        %2286 = vmatpush2.msra.mxu0 0.0
        %2287 = vmatprep.subr.mxu0 0.0
        %2288 = vmatpush2.msra.mxu0 0.0
        %2289 = vmatprep.subr.mxu0 0.0
        %2290 = vmatpush2.msra.mxu0 0.0
        %2291 = vmatprep.subr.mxu0 0.0
        %2292 = vmatpush2.msra.mxu0 0.0
        %2293 = vmatprep.mubr.f32.mxu0 0.0
        %2294 = vmatmul.mubr.f32.gmra.mxu0 %v2227
        %v2295 = vpop.f32.mrf.mxu0
        %v2296 = vadd.f32 0.0, %v2295
        %v2297 = vpop.f32.mrf.mxu0
        %2298 = vdwg.mxu0
        %2299 = vrot.lane.b32.xlu0 %v792, 40
        %v2300 = vpop.permute.xlu0 %2299
        %v2303 = vsel %vm804, %v2220, 0
        %2305 = vmatprep.subr.mxu0 0.0
        %2306 = vmatpush1.msra.mxu0 0.0
        %2307 = vmatprep.subr.mxu0 0.0
        %2308 = vmatpush1.msra.mxu0 0.0
        %2309 = vmatprep.subr.mxu0 0.0
        %2310 = vmatpush1.msra.mxu0 0.0
        %2311 = vmatprep.subr.mxu0 0.0
        %2312 = vmatpush1.msra.mxu0 0.0
        %2313 = vmatprep.subr.mxu0 0.0
        %2314 = vmatpush1.msra.mxu0 0.0
        %2315 = vmatprep.subr.mxu0 0.0
        %2316 = vmatpush1.msra.mxu0 0.0
        %2317 = vmatprep.subr.mxu0 0.0
        %2318 = vmatpush1.msra.mxu0 0.0
        %2319 = vmatprep.subr.mxu0 0.0
        %2320 = vmatpush1.msra.mxu0 0.0
        %2321 = vmatprep.subr.mxu0 0.0
        %2322 = vmatpush1.msra.mxu0 0.0
        %2323 = vmatprep.subr.mxu0 0.0
        %2324 = vmatpush1.msra.mxu0 0.0
        %2325 = vmatprep.subr.mxu0 0.0
        %2326 = vmatpush1.msra.mxu0 0.0
        %2327 = vmatprep.subr.mxu0 0.0
        %2328 = vmatpush1.msra.mxu0 0.0
        %2329 = vmatprep.subr.mxu0 0.0
        %2330 = vmatpush1.msra.mxu0 0.0
        %2331 = vmatprep.subr.mxu0 0.0
        %2332 = vmatpush1.msra.mxu0 0.0
        %2333 = vmatprep.subr.mxu0 0.0
        %2334 = vmatpush1.msra.mxu0 0.0
        %2335 = vmatprep.subr.mxu0 0.0
        %2336 = vmatpush1.msra.mxu0 %v2300
        %2337 = vmatprep.subr.mxu0 0.0
        %2338 = vmatpush2.msra.mxu0 0.0
        %2339 = vmatprep.subr.mxu0 0.0
        %2340 = vmatpush2.msra.mxu0 0.0
        %2341 = vmatprep.subr.mxu0 0.0
        %2342 = vmatpush2.msra.mxu0 0.0
        %2343 = vmatprep.subr.mxu0 0.0
        %2344 = vmatpush2.msra.mxu0 0.0
        %2345 = vmatprep.subr.mxu0 0.0
        %2346 = vmatpush2.msra.mxu0 0.0
        %2347 = vmatprep.subr.mxu0 0.0
        %2348 = vmatpush2.msra.mxu0 0.0
        %2349 = vmatprep.subr.mxu0 0.0
        %2350 = vmatpush2.msra.mxu0 0.0
        %2351 = vmatprep.subr.mxu0 0.0
        %2352 = vmatpush2.msra.mxu0 0.0
        %2353 = vmatprep.subr.mxu0 0.0
        %2354 = vmatpush2.msra.mxu0 0.0
        %2355 = vmatprep.subr.mxu0 0.0
        %2356 = vmatpush2.msra.mxu0 0.0
        %2357 = vmatprep.subr.mxu0 0.0
        %2358 = vmatpush2.msra.mxu0 0.0
        %2359 = vmatprep.subr.mxu0 0.0
        %2360 = vmatpush2.msra.mxu0 0.0
        %2361 = vmatprep.subr.mxu0 0.0
        %2362 = vmatpush2.msra.mxu0 0.0
        %2363 = vmatprep.subr.mxu0 0.0
        %2364 = vmatpush2.msra.mxu0 0.0
        %2365 = vmatprep.subr.mxu0 0.0
        %2366 = vmatpush2.msra.mxu0 0.0
        %2367 = vmatprep.subr.mxu0 0.0
        %2368 = vmatpush2.msra.mxu0 0.0
        %2369 = vmatprep.mubr.f32.mxu0 0.0
        %2370 = vmatmul.mubr.f32.gmra.mxu0 %v2303
        %v2371 = vpop.f32.mrf.mxu0
        %v2372 = vadd.f32 0.0, %v2371
        %v2373 = vpop.f32.mrf.mxu0
        %2374 = vdwg.mxu0
        %v2376 = vsel %vm804, %v2296, 0
        %v2379 = vsel %vm804, %v2372, 0
        %2381 = vmatprep.subr.mxu0 0.0
        %2382 = vmatpush1.msra.mxu0 0.0
        %2383 = vmatprep.subr.mxu0 0.0
        %2384 = vmatpush1.msra.mxu0 0.0
        %2385 = vmatprep.subr.mxu0 0.0
        %2386 = vmatpush1.msra.mxu0 0.0
        %2387 = vmatprep.subr.mxu0 0.0
        %2388 = vmatpush1.msra.mxu0 0.0
        %2389 = vmatprep.subr.mxu0 0.0
        %2390 = vmatpush1.msra.mxu0 0.0
        %2391 = vmatprep.subr.mxu0 0.0
        %2392 = vmatpush1.msra.mxu0 0.0
        %2393 = vmatprep.subr.mxu0 0.0
        %2394 = vmatpush1.msra.mxu0 0.0
        %2395 = vmatprep.subr.mxu0 0.0
        %2396 = vmatpush1.msra.mxu0 0.0
        %2397 = vmatprep.subr.mxu0 0.0
        %2398 = vmatpush1.msra.mxu0 0.0
        %2399 = vmatprep.subr.mxu0 0.0
        %2400 = vmatpush1.msra.mxu0 0.0
        %2401 = vmatprep.subr.mxu0 0.0
        %2402 = vmatpush1.msra.mxu0 0.0
        %2403 = vmatprep.subr.mxu0 0.0
        %2404 = vmatpush1.msra.mxu0 0.0
        %2405 = vmatprep.subr.mxu0 0.0
        %2406 = vmatpush1.msra.mxu0 0.0
        %2407 = vmatprep.subr.mxu0 0.0
        %2408 = vmatpush1.msra.mxu0 0.0
        %2409 = vmatprep.subr.mxu0 0.0
        %2410 = vmatpush1.msra.mxu0 0.0
        %2411 = vmatprep.subr.mxu0 0.0
        %2412 = vmatpush1.msra.mxu0 %v800
        %2413 = vmatprep.subr.mxu0 0.0
        %2414 = vmatpush2.msra.mxu0 0.0
        %2415 = vmatprep.subr.mxu0 0.0
        %2416 = vmatpush2.msra.mxu0 0.0
        %2417 = vmatprep.subr.mxu0 0.0
        %2418 = vmatpush2.msra.mxu0 0.0
        %2419 = vmatprep.subr.mxu0 0.0
        %2420 = vmatpush2.msra.mxu0 0.0
        %2421 = vmatprep.subr.mxu0 0.0
        %2422 = vmatpush2.msra.mxu0 0.0
        %2423 = vmatprep.subr.mxu0 0.0
        %2424 = vmatpush2.msra.mxu0 0.0
        %2425 = vmatprep.subr.mxu0 0.0
        %2426 = vmatpush2.msra.mxu0 0.0
        %2427 = vmatprep.subr.mxu0 0.0
        %2428 = vmatpush2.msra.mxu0 0.0
        %2429 = vmatprep.subr.mxu0 0.0
        %2430 = vmatpush2.msra.mxu0 0.0
        %2431 = vmatprep.subr.mxu0 0.0
        %2432 = vmatpush2.msra.mxu0 0.0
        %2433 = vmatprep.subr.mxu0 0.0
        %2434 = vmatpush2.msra.mxu0 0.0
        %2435 = vmatprep.subr.mxu0 0.0
        %2436 = vmatpush2.msra.mxu0 0.0
        %2437 = vmatprep.subr.mxu0 0.0
        %2438 = vmatpush2.msra.mxu0 0.0
        %2439 = vmatprep.subr.mxu0 0.0
        %2440 = vmatpush2.msra.mxu0 0.0
        %2441 = vmatprep.subr.mxu0 0.0
        %2442 = vmatpush2.msra.mxu0 0.0
        %2443 = vmatprep.subr.mxu0 0.0
        %2444 = vmatpush2.msra.mxu0 0.0
        %2445 = vmatprep.mubr.f32.mxu0 0.0
        %2446 = vmatmul.mubr.f32.gmra.mxu0 %v2376
        %v2447 = vpop.f32.mrf.mxu0
        %v2448 = vadd.f32 0.0, %v2447
        %v2449 = vpop.f32.mrf.mxu0
        %2450 = vmatprep.mubr.f32.mxu0 0.0
        %2451 = vmatmul.mubr.f32.gmra.mxu0 %v2379
        %v2452 = vpop.f32.mrf.mxu0
        %v2453 = vadd.f32 0.0, %v2452
        %v2454 = vpop.f32.mrf.mxu0
        %2455 = vdwg.mxu0
        %v2456 = vadd.f32 %v2041, %v2448
        %v2457 = vadd.f32 %v2042, %v2453
        %v2458 = vmul.f32 %v2221, 0.25
        %v2459 = vmul.f32 %v2222, 0.25
        %2460 = vst.msk [vmem:[%s643] sm:$0xff] %vm804, %v2458
        %2461 = vst.msk [vmem:[%s643 + $0x8] sm:$0xff] %vm804, %v2459
        %v2462 = vld [vmem:[%s660] sm:$0x1]
        %v2464 = vlaneseq
        %v2465 = vshrl.u32 %v2464, 7
        %v2466 = vsub.s32 0, %v2465
        %v2467 = vrot.slane %v2462, %v2466
        %v2469 = vadd.f32 %v2456, %v2467
        %v2470 = vadd.f32 %v2457, %v2467
        %v2471 = vadd.f32 %v700, %v2469
        %v2472 = vadd.f32 %v701, %v2470
        %v2473 = vld [vmem:[%s663] sm:$0x1]
        %v2474 = vld [vmem:[%s666] sm:$0x1]
        %v2475 = vsel %vm713, %v2471, 0.0
        %2476 = vadd.xlane.f32.xlu0 %v2475
        %v2477 = vpop.xlane.xlu0 %2476
        %v2478 = vsel %vm713, %v2472, 0.0
        %2479 = vadd.xlane.f32.xlu0 %v2478
        %v2480 = vpop.xlane.xlu0 %2479
        %v2481 = vrcp.pop 32.0
        %v2482 = vmul.f32 %v2477, %v2481
        %v2483 = vmul.f32 %v2480, %v2481
        %v2484 = vsub.f32 %v2471, %v2482
        %v2485 = vsub.f32 %v2472, %v2483
        %v2486 = vmul.f32 %v2484, %v2484
        %v2487 = vmul.f32 %v2485, %v2485
        %v2488 = vsel %vm713, %v2486, 0.0
        %2489 = vadd.xlane.f32.xlu0 %v2488
        %v2490 = vpop.xlane.xlu0 %2489
        %v2491 = vsel %vm713, %v2487, 0.0
        %2492 = vadd.xlane.f32.xlu0 %v2491
        %v2493 = vpop.xlane.xlu0 %2492
        %v2494 = vmul.f32 %v2490, %v2481
        %v2495 = vmul.f32 %v2493, %v2481
        %v2496 = vadd.f32 %v2494, 1e-05
        %v2497 = vadd.f32 %v2495, 1e-05
        %v2498 = vrsqrt.pop %v2496
        %v2499 = vrsqrt.pop %v2497
        %v2500 = vmul.f32 %v2484, %v2498
        %v2501 = vmul.f32 %v2485, %v2499
        %v2503 = vlaneseq
        %v2504 = vshrl.u32 %v2503, 7
        %v2505 = vsub.s32 0, %v2504
        %v2506 = vrot.slane %v2473, %v2505
        %v2508 = vmul.f32 %v2500, %v2506
        %v2509 = vmul.f32 %v2501, %v2506
        %v2511 = vlaneseq
        %v2512 = vshrl.u32 %v2511, 7
        %v2513 = vsub.s32 0, %v2512
        %v2514 = vrot.slane %v2474, %v2513
        %v2516 = vadd.f32 %v2508, %v2514
        %v2517 = vadd.f32 %v2509, %v2514
        %v2518 = vld [vmem:[%s671] sm:$0xff]
        %v2519 = vld [vmem:[%s671 + $0x8] sm:$0xff]
        %v2520 = vld [vmem:[%s671 + $0x10] sm:$0xff]
        %v2521 = vld [vmem:[%s671 + $0x18] sm:$0xff]
        %v2522 = vld [vmem:[%s674] sm:$0x1]
        %v2524 = vlaneseq
        %v2525 = vshrl.u32 %v2524, 7
        %v2526 = vsub.s32 0, %v2525
        %v2527 = vrot.slane %v2522, %v2526
        %v2530 = vsel %vm713, %v2516, 0
        %v2533 = vsel %vm713, %v2517, 0
        %2535 = vmatprep.subr.mxu0 0.0
        %2536 = vmatpush1.msra.mxu0 0.0
        %2537 = vmatprep.subr.mxu0 0.0
        %2538 = vmatpush1.msra.mxu0 0.0
        %2539 = vmatprep.subr.mxu0 0.0
        %2540 = vmatpush1.msra.mxu0 0.0
        %2541 = vmatprep.subr.mxu0 0.0
        %2542 = vmatpush1.msra.mxu0 0.0
        %2543 = vmatprep.subr.mxu0 0.0
        %2544 = vmatpush1.msra.mxu0 0.0
        %2545 = vmatprep.subr.mxu0 0.0
        %2546 = vmatpush1.msra.mxu0 0.0
        %2547 = vmatprep.subr.mxu0 0.0
        %2548 = vmatpush1.msra.mxu0 0.0
        %2549 = vmatprep.subr.mxu0 0.0
        %2550 = vmatpush1.msra.mxu0 0.0
        %2551 = vmatprep.subr.mxu0 0.0
        %2552 = vmatpush1.msra.mxu0 0.0
        %2553 = vmatprep.subr.mxu0 0.0
        %2554 = vmatpush1.msra.mxu0 0.0
        %2555 = vmatprep.subr.mxu0 0.0
        %2556 = vmatpush1.msra.mxu0 0.0
        %2557 = vmatprep.subr.mxu0 0.0
        %2558 = vmatpush1.msra.mxu0 0.0
        %2559 = vmatprep.subr.mxu0 0.0
        %2560 = vmatpush1.msra.mxu0 %v2521
        %2561 = vmatprep.subr.mxu0 0.0
        %2562 = vmatpush1.msra.mxu0 %v2520
        %2563 = vmatprep.subr.mxu0 0.0
        %2564 = vmatpush1.msra.mxu0 %v2519
        %2565 = vmatprep.subr.mxu0 0.0
        %2566 = vmatpush1.msra.mxu0 %v2518
        %2567 = vmatprep.subr.mxu0 0.0
        %2568 = vmatpush2.msra.mxu0 0.0
        %2569 = vmatprep.subr.mxu0 0.0
        %2570 = vmatpush2.msra.mxu0 0.0
        %2571 = vmatprep.subr.mxu0 0.0
        %2572 = vmatpush2.msra.mxu0 0.0
        %2573 = vmatprep.subr.mxu0 0.0
        %2574 = vmatpush2.msra.mxu0 0.0
        %2575 = vmatprep.subr.mxu0 0.0
        %2576 = vmatpush2.msra.mxu0 0.0
        %2577 = vmatprep.subr.mxu0 0.0
        %2578 = vmatpush2.msra.mxu0 0.0
        %2579 = vmatprep.subr.mxu0 0.0
        %2580 = vmatpush2.msra.mxu0 0.0
        %2581 = vmatprep.subr.mxu0 0.0
        %2582 = vmatpush2.msra.mxu0 0.0
        %2583 = vmatprep.subr.mxu0 0.0
        %2584 = vmatpush2.msra.mxu0 0.0
        %2585 = vmatprep.subr.mxu0 0.0
        %2586 = vmatpush2.msra.mxu0 0.0
        %2587 = vmatprep.subr.mxu0 0.0
        %2588 = vmatpush2.msra.mxu0 0.0
        %2589 = vmatprep.subr.mxu0 0.0
        %2590 = vmatpush2.msra.mxu0 0.0
        %2591 = vmatprep.subr.mxu0 0.0
        %2592 = vmatpush2.msra.mxu0 0.0
        %2593 = vmatprep.subr.mxu0 0.0
        %2594 = vmatpush2.msra.mxu0 0.0
        %2595 = vmatprep.subr.mxu0 0.0
        %2596 = vmatpush2.msra.mxu0 0.0
        %2597 = vmatprep.subr.mxu0 0.0
        %2598 = vmatpush2.msra.mxu0 0.0
        %2599 = vmatprep.mubr.f32.mxu0 0.0
        %2600 = vmatmul.mubr.f32.gmra.mxu0 %v2530
        %v2601 = vpop.f32.mrf.mxu0
        %v2602 = vadd.f32 %v2527, %v2601
        %v2603 = vpop.f32.mrf.mxu0
        %2604 = vmatprep.mubr.f32.mxu0 0.0
        %2605 = vmatmul.mubr.f32.gmra.mxu0 %v2533
        %v2606 = vpop.f32.mrf.mxu0
        %v2607 = vadd.f32 %v2527, %v2606
        %v2608 = vpop.f32.mrf.mxu0
        %2609 = vdwg.mxu0
        %v2610 = vmax.f32 %v2602, 0.0
        %v2611 = vmax.f32 %v2607, 0.0
        %v2612 = vld [vmem:[%s679] sm:$0xff]
        %v2613 = vld [vmem:[%s679 + $0x8] sm:$0xff]
        %v2614 = vld [vmem:[%s679 + $0x10] sm:$0xff]
        %v2615 = vld [vmem:[%s679 + $0x18] sm:$0xff]
        %v2616 = vld [vmem:[%s679 + $0x20] sm:$0xff]
        %v2617 = vld [vmem:[%s679 + $0x28] sm:$0xff]
        %v2618 = vld [vmem:[%s679 + $0x30] sm:$0xff]
        %v2619 = vld [vmem:[%s679 + $0x38] sm:$0xff]
        %v2620 = vld [vmem:[%s682] sm:$0x1]
        %v2622 = vlaneseq
        %v2623 = vshrl.u32 %v2622, 7
        %v2624 = vsub.s32 0, %v2623
        %v2625 = vrot.slane %v2620, %v2624
        %vm2627 = vcmask 523264
        %v2629 = vsel %vm2627, %v2610, 0
        %v2632 = vsel %vm2627, %v2611, 0
        %2634 = vmatprep.subr.mxu0 0.0
        %2635 = vmatpush1.msra.mxu0 0.0
        %2636 = vmatprep.subr.mxu0 0.0
        %2637 = vmatpush1.msra.mxu0 0.0
        %2638 = vmatprep.subr.mxu0 0.0
        %2639 = vmatpush1.msra.mxu0 0.0
        %2640 = vmatprep.subr.mxu0 0.0
        %2641 = vmatpush1.msra.mxu0 0.0
        %2642 = vmatprep.subr.mxu0 0.0
        %2643 = vmatpush1.msra.mxu0 0.0
        %2644 = vmatprep.subr.mxu0 0.0
        %2645 = vmatpush1.msra.mxu0 0.0
        %2646 = vmatprep.subr.mxu0 0.0
        %2647 = vmatpush1.msra.mxu0 0.0
        %2648 = vmatprep.subr.mxu0 0.0
        %2649 = vmatpush1.msra.mxu0 0.0
        %2650 = vmatprep.subr.mxu0 0.0
        %2651 = vmatpush1.msra.mxu0 %v2619
        %2652 = vmatprep.subr.mxu0 0.0
        %2653 = vmatpush1.msra.mxu0 %v2618
        %2654 = vmatprep.subr.mxu0 0.0
        %2655 = vmatpush1.msra.mxu0 %v2617
        %2656 = vmatprep.subr.mxu0 0.0
        %2657 = vmatpush1.msra.mxu0 %v2616
        %2658 = vmatprep.subr.mxu0 0.0
        %2659 = vmatpush1.msra.mxu0 %v2615
        %2660 = vmatprep.subr.mxu0 0.0
        %2661 = vmatpush1.msra.mxu0 %v2614
        %2662 = vmatprep.subr.mxu0 0.0
        %2663 = vmatpush1.msra.mxu0 %v2613
        %2664 = vmatprep.subr.mxu0 0.0
        %2665 = vmatpush1.msra.mxu0 %v2612
        %2666 = vmatprep.subr.mxu0 0.0
        %2667 = vmatpush2.msra.mxu0 0.0
        %2668 = vmatprep.subr.mxu0 0.0
        %2669 = vmatpush2.msra.mxu0 0.0
        %2670 = vmatprep.subr.mxu0 0.0
        %2671 = vmatpush2.msra.mxu0 0.0
        %2672 = vmatprep.subr.mxu0 0.0
        %2673 = vmatpush2.msra.mxu0 0.0
        %2674 = vmatprep.subr.mxu0 0.0
        %2675 = vmatpush2.msra.mxu0 0.0
        %2676 = vmatprep.subr.mxu0 0.0
        %2677 = vmatpush2.msra.mxu0 0.0
        %2678 = vmatprep.subr.mxu0 0.0
        %2679 = vmatpush2.msra.mxu0 0.0
        %2680 = vmatprep.subr.mxu0 0.0
        %2681 = vmatpush2.msra.mxu0 0.0
        %2682 = vmatprep.subr.mxu0 0.0
        %2683 = vmatpush2.msra.mxu0 0.0
        %2684 = vmatprep.subr.mxu0 0.0
        %2685 = vmatpush2.msra.mxu0 0.0
        %2686 = vmatprep.subr.mxu0 0.0
        %2687 = vmatpush2.msra.mxu0 0.0
        %2688 = vmatprep.subr.mxu0 0.0
        %2689 = vmatpush2.msra.mxu0 0.0
        %2690 = vmatprep.subr.mxu0 0.0
        %2691 = vmatpush2.msra.mxu0 0.0
        %2692 = vmatprep.subr.mxu0 0.0
        %2693 = vmatpush2.msra.mxu0 0.0
        %2694 = vmatprep.subr.mxu0 0.0
        %2695 = vmatpush2.msra.mxu0 0.0
        %2696 = vmatprep.subr.mxu0 0.0
        %2697 = vmatpush2.msra.mxu0 0.0
        %2698 = vmatprep.mubr.f32.mxu0 0.0
        %2699 = vmatmul.mubr.f32.gmra.mxu0 %v2629
        %v2700 = vpop.f32.mrf.mxu0
        %v2701 = vadd.f32 %v2625, %v2700
        %v2702 = vpop.f32.mrf.mxu0
        %2703 = vmatprep.mubr.f32.mxu0 0.0
        %2704 = vmatmul.mubr.f32.gmra.mxu0 %v2632
        %v2705 = vpop.f32.mrf.mxu0
        %v2706 = vadd.f32 %v2625, %v2705
        %v2707 = vpop.f32.mrf.mxu0
        %2708 = vdwg.mxu0
        %v2709 = vadd.f32 %v2516, %v2701
        %v2710 = vadd.f32 %v2517, %v2706
        %v2711 = vld [vmem:[%s685] sm:$0x1]
        %v2712 = vld [vmem:[%s688] sm:$0x1]
        %v2713 = vsel %vm713, %v2709, 0.0
        %2714 = vadd.xlane.f32.xlu0 %v2713
        %v2715 = vpop.xlane.xlu0 %2714
        %v2716 = vsel %vm713, %v2710, 0.0
        %2717 = vadd.xlane.f32.xlu0 %v2716
        %v2718 = vpop.xlane.xlu0 %2717
        %v2719 = vmul.f32 %v2715, %v2481
        %v2720 = vmul.f32 %v2718, %v2481
        %v2721 = vsub.f32 %v2709, %v2719
        %v2722 = vsub.f32 %v2710, %v2720
        %v2723 = vmul.f32 %v2721, %v2721
        %v2724 = vmul.f32 %v2722, %v2722
        %v2725 = vsel %vm713, %v2723, 0.0
        %2726 = vadd.xlane.f32.xlu0 %v2725
        %v2727 = vpop.xlane.xlu0 %2726
        %v2728 = vsel %vm713, %v2724, 0.0
        %2729 = vadd.xlane.f32.xlu0 %v2728
        %v2730 = vpop.xlane.xlu0 %2729
        %v2731 = vmul.f32 %v2727, %v2481
        %v2732 = vmul.f32 %v2730, %v2481
        %v2733 = vadd.f32 %v2731, 1e-05
        %v2734 = vadd.f32 %v2732, 1e-05
        %v2735 = vrsqrt.pop %v2733
        %v2736 = vrsqrt.pop %v2734
        %v2737 = vmul.f32 %v2721, %v2735
        %v2738 = vmul.f32 %v2722, %v2736
        %v2740 = vlaneseq
        %v2741 = vshrl.u32 %v2740, 7
        %v2742 = vsub.s32 0, %v2741
        %v2743 = vrot.slane %v2711, %v2742
        %v2745 = vmul.f32 %v2737, %v2743
        %v2746 = vmul.f32 %v2738, %v2743
        %v2748 = vlaneseq
        %v2749 = vshrl.u32 %v2748, 7
        %v2750 = vsub.s32 0, %v2749
        %v2751 = vrot.slane %v2712, %v2750
        %v2753 = vadd.f32 %v2745, %v2751
        %v2754 = vadd.f32 %v2746, %v2751
        %2755 = vst.msk [vmem:[%s636] sm:$0xff] %vm713, %v2753
        %2756 = vst.msk [vmem:[%s636 + $0x8] sm:$0xff] %vm713, %v2754
        %2757 = vst.msk [vmem:[#allocation2] sm:$0xff] %vm713, %v2753
        %2758 = vst.msk [vmem:[#allocation2 + $0x8] sm:$0xff] %vm713, %v2754
        %s2759 = sand.u32 %s393, 1
        %s2760 = scalar_lea.sflag [#allocation5], %s2759
        %s2761 = sand.u32 %s393, 1
        %s2762 = smul.addr %s2761, 16
        %s2763 = scalar_lea.vmem [#allocation6], %s2762
        %s2764 = sand.u32 %s421, 1
        %s2765 = scalar_lea.sflag [#allocation8], %s2764
        %s2766 = sand.u32 %s421, 1
        %s2767 = smul.addr %s2766, 16
        %s2768 = scalar_lea.vmem [#allocation7], %s2767
        // Predicated region
        $region81: #{tpu_custom_call.1} parent=71 // pred_check
          %p2769 = pneg %p403
        $region82: #{tpu_custom_call.1} parent=71 // pred_check_branch
          %2771 = sbr.rel (%p2769) target = $region84
        $region83: #{tpu_custom_call.1} parent=71 // pred_region
          %s2772 = smul.u32 2, %s37
          %s2774 = ssub.s32 256, 256
          %2775 = vsyncadd %s2760, %s2774
          %s2776 = smul.addr %s38, 2
          %s2777 = sadd.s32 %s2772, %s2776
          %s2778 = smul.addr %s2777, 128
          %s2779 = scalar_lea.hbm %s13, %s2778
          %s2780 = sshll.u32 %s2763, 4
          %s2781 = int_to_ptr.vmem [resolvable:$true] %s2780
          %2786 = dma.vmem_to_hbm [thread:$0]  %s2781, 256, %s2779, %s2760, 128, 128, 8
        $region84: #{tpu_custom_call.1} parent=71 // pred_fallthru
          _
        // Predicated region
        $region85: #{tpu_custom_call.1} parent=71 // pred_check
          %p2787 = pneg %p431
        $region86: #{tpu_custom_call.1} parent=71 // pred_check_branch
          %2789 = sbr.rel (%p2787) target = $region88
        $region87: #{tpu_custom_call.1} parent=71 // pred_region
          %s2790 = smul.u32 2, %s37
          %s2792 = ssub.s32 256, 256
          %2793 = vsyncadd %s2765, %s2792
          %s2794 = smul.addr %s38, 2
          %s2795 = sadd.s32 %s2790, %s2794
          %s2796 = smul.addr %s2795, 128
          %s2797 = scalar_lea.hbm %s14, %s2796
          %s2798 = sshll.u32 %s2768, 4
          %s2799 = int_to_ptr.vmem [resolvable:$true] %s2798
          %2804 = dma.vmem_to_hbm [thread:$0]  %s2799, 256, %s2797, %s2765, 128, 128, 8
        $region88: #{tpu_custom_call.1} parent=71 // pred_fallthru
          _
      $region72: #{tpu_custom_call.1} parent=5 // pred_fallthru
        _
      %p2805 = scmp.le.s32.totalorder 2, %s28
      // Predicated region
      $region89: #{tpu_custom_call.1} parent=5 // pred_check
        %p2806 = pneg %p2805
      $region90: #{tpu_custom_call.1} parent=5 // pred_check_branch
        %2808 = sbr.rel (%p2806) target = $region92
      $region91: #{tpu_custom_call.1} parent=5 // pred_region
        %s2809 = ssub.s32 %s28, 2
        // Predicated region
        $region93: #{tpu_custom_call.1} parent=91 // pred_check
          %p2810 = pneg %p409
        $region94: #{tpu_custom_call.1} parent=91 // pred_check_branch
          %2812 = sbr.rel (%p2810) target = $region96
        $region95: #{tpu_custom_call.1} parent=91 // pred_region
          %s2813 = sand.u32 %s394, 1
          %s2814 = scalar_lea.sflag [#allocation5], %s2813
          %s2815 = sand.u32 %s394, 1
          %s2816 = smul.addr %s2815, 16
          %s2817 = scalar_lea.vmem [#allocation6], %s2816
          %2818 = dma.done %s2814, 256
        $region96: #{tpu_custom_call.1} parent=91 // pred_fallthru
          _
        // Predicated region
        $region97: #{tpu_custom_call.1} parent=91 // pred_check
          %p2819 = pneg %p437
        $region98: #{tpu_custom_call.1} parent=91 // pred_check_branch
          %2821 = sbr.rel (%p2819) target = $region100
        $region99: #{tpu_custom_call.1} parent=91 // pred_region
          %s2822 = sand.u32 %s422, 1
          %s2823 = scalar_lea.sflag [#allocation8], %s2822
          %s2824 = sand.u32 %s422, 1
          %s2825 = smul.addr %s2824, 16
          %s2826 = scalar_lea.vmem [#allocation7], %s2825
          %2827 = dma.done %s2823, 256
        $region100: #{tpu_custom_call.1} parent=91 // pred_fallthru
          _
      $region92: #{tpu_custom_call.1} parent=5 // pred_fallthru
        _
    $region6: #{tpu_custom_call.1} parent=1 // loop_footer
      %s32 = sadd.s32 1, %s28
    $region7: #{tpu_custom_call.1} parent=1 // loop_footer_branch
      %27 = sbr.rel target = $region3
    $region8: #{tpu_custom_call.1} parent=1 // loop_exit
      _
    %2828 = vsyncpa [#allocation4], 1
    %s2829 = scalar_lea.sflag [#allocation4], 1
    %2830 = vsyncpa %s2829, 1
    %2831 = vsyncpa [#allocation5], 1
    %s2832 = scalar_lea.sflag [#allocation5], 1
    %2833 = vsyncpa %s2832, 1
    %2834 = vsyncpa [#allocation8], 1
    %s2835 = scalar_lea.sflag [#allocation8], 1
    %2836 = vsyncpa %s2835, 1

</llo_original>
